<compile_context>
chip_gen: v5e
topology: v5e:2x2
jax: 0.10.0
libtpu: 0.0.40
codegen_flags: <defaults>
</compile_context>

<pallas_src>
import jax
import jax.numpy as jnp
from jax import lax
from jax.experimental import pallas as pl
from jax.experimental.pallas import tpu as pltpu

WIN = (64, 128, 128)
WIN_SIZE = float(WIN[0] * WIN[1] * WIN[2])  # 1048576


def _make_ncc_kernel(tr, sub):
    """Build the kernel for a row tile of `tr` rows, processed `sub` rows at
    a time (sub % 8 == 0 so each chunk is whole (8,128) vregs)."""
    n_sub = tr // sub
    sub_vregs = sub // 8

    def kernel(i_ref, j_ref, o_ref, si, sj, si2, sj2, sij):
        step = pl.program_id(1)

        @pl.when(step == 0)
        def _():
            si[...] = jnp.zeros_like(si)
            sj[...] = jnp.zeros_like(sj)
            si2[...] = jnp.zeros_like(si2)
            sj2[...] = jnp.zeros_like(sj2)
            sij[...] = jnp.zeros_like(sij)

        # Accumulate (8,128) vreg partial sums over fixed-size sub-chunks.
        def body(s, carry):
            p_i, p_j, p_i2, p_j2, p_ij = carry
            off = pl.multiple_of(s * sub, sub)
            Ic = i_ref[0, pl.ds(off, sub), :].astype(jnp.float32)  # (sub,128)
            Jc = j_ref[0, pl.ds(off, sub), :].astype(jnp.float32)
            I3 = Ic.reshape(sub_vregs, 8, 128)   # layout-preserving reshape
            J3 = Jc.reshape(sub_vregs, 8, 128)
            p_i = p_i + jnp.sum(I3, axis=0)
            p_j = p_j + jnp.sum(J3, axis=0)
            p_i2 = p_i2 + jnp.sum(I3 * I3, axis=0)
            p_j2 = p_j2 + jnp.sum(J3 * J3, axis=0)
            p_ij = p_ij + jnp.sum(I3 * J3, axis=0)
            return (p_i, p_j, p_i2, p_j2, p_ij)

        zeros = jnp.zeros((8, 128), jnp.float32)
        p_i, p_j, p_i2, p_j2, p_ij = lax.fori_loop(
            0, n_sub, body, (zeros, zeros, zeros, zeros, zeros), unroll=True)

        si[...] += p_i
        sj[...] += p_j
        si2[...] += p_i2
        sj2[...] += p_j2
        sij[...] += p_ij

        @pl.when(step == pl.num_programs(1) - 1)
        def _():
            def fullsum(a):  # (8,128) -> (1,1)
                return jnp.sum(jnp.sum(a, axis=0, keepdims=True),
                               axis=1, keepdims=True)

            I_sum = fullsum(si[...])
            J_sum = fullsum(sj[...])
            I2_sum = fullsum(si2[...])
            J2_sum = fullsum(sj2[...])
            IJ_sum = fullsum(sij[...])

            win_size = WIN_SIZE
            u_I = I_sum / win_size
            u_J = J_sum / win_size
            cross = IJ_sum - u_J * I_sum - u_I * J_sum + u_I * u_J * win_size
            I_var = I2_sum - 2.0 * u_I * I_sum + u_I * u_I * win_size
            J_var = J2_sum - 2.0 * u_J * J_sum + u_J * u_J * win_size
            cc = cross * cross / (I_var * J_var + 1e-05)

            o_ref[...] = jnp.broadcast_to(cc, o_ref.shape).astype(o_ref.dtype)

    return kernel


def ncc_ori_loss(I, J, *, tr=4096, sub=512):
    """Equivalent of NCC_ori().forward(I, J) for NCDHW inputs with
    C == 1 and (D, H, W) == (64, 128, 128)."""
    N, C, D, H, W = I.shape
    assert J.shape == I.shape
    assert C == 1, "sum filter has in_channels=1"
    assert (D, H, W) == WIN, "this kernel implements spatial dims == win"

    R = D * H  # 8192 rows of width 128
    assert W == 128 and R % tr == 0 and tr % sub == 0 and sub % 8 == 0

    # Keep the native dtype; the cast to f32 happens on the loaded tile inside
    # the kernel so sub-f32 inputs don't pay doubled HBM traffic.
    Ir = I.reshape(N, R, W)
    Jr = J.reshape(N, R, W)

    kernel = _make_ncc_kernel(tr, sub)

    cc = pl.pallas_call(
        kernel,
        out_shape=jax.ShapeDtypeStruct((N, 8, 128), jnp.float32),
        grid=(N, R // tr),
        in_specs=[
            pl.BlockSpec((1, tr, W), lambda n, j: (n, j, 0)),
            pl.BlockSpec((1, tr, W), lambda n, j: (n, j, 0)),
        ],
        out_specs=pl.BlockSpec((1, 8, 128), lambda n, j: (n, 0, 0)),
        scratch_shapes=[pltpu.VMEM((8, 128), jnp.float32)] * 5,
        compiler_params=pltpu.CompilerParams(
            # TODO(synk): on v7x, shard the batch axis across the two
            # TensorCores (pltpu.CORE_PARALLEL / pl.core_map) for ~2x.
            dimension_semantics=("parallel", "arbitrary"),
            vmem_limit_bytes=32 * 1024 * 1024,
        ),
    )(Ir, Jr)

    # conv output is one element per (n, c=1) window -> mean(-cc) over batch
    return jnp.mean(-cc[:, 0, 0])


def _ncc_ref(I, J):
    """Pure-JAX reference replicating the PyTorch math for spatial == win."""
    N = I.shape[0]
    If = I.reshape(N, -1).astype(jnp.float32)
    Jf = J.reshape(N, -1).astype(jnp.float32)
    I_sum = jnp.sum(If, axis=1)
    J_sum = jnp.sum(Jf, axis=1)
    I2_sum = jnp.sum(If * If, axis=1)
    J2_sum = jnp.sum(Jf * Jf, axis=1)
    IJ_sum = jnp.sum(If * Jf, axis=1)
    win_size = WIN_SIZE
    u_I = I_sum / win_size
    u_J = J_sum / win_size
    cross = IJ_sum - u_J * I_sum - u_I * J_sum + u_I * u_J * win_size
    I_var = I2_sum - 2 * u_I * I_sum + u_I * u_I * win_size
    J_var = J2_sum - 2 * u_J * J_sum + u_J * u_J * win_size
    cc = cross * cross / (I_var * J_var + 1e-05)
    return jnp.mean(-cc)


if __name__ == "__main__":
    key = jax.random.PRNGKey(0)
    k1, k2 = jax.random.split(key)
    N = 2
    shape = (N, 1, *WIN)  # (2, 1, 64, 128, 128)
    I = jax.random.normal(k1, shape, dtype=jnp.float32)
    J = jax.random.normal(k2, shape, dtype=jnp.float32)

    loss = jax.jit(ncc_ori_loss)(I, J)
    loss = jax.block_until_ready(loss)

    ref = jax.block_until_ready(_ncc_ref(I, J))
    assert jnp.allclose(loss, ref, rtol=5e-3, atol=1e-9), (loss, ref)

    print("KERNEL_OK")
</pallas_src>

<mosaic_0001>
module attributes {stable_mosaic.version = 11 : i64} {
  func.func @kernel(%arg0: i32, %arg1: i32, %arg2: memref<1x4096x128xf32, #tpu.memory_space<vmem>>, %arg3: memref<1x4096x128xf32, #tpu.memory_space<vmem>>, %arg4: memref<1x8x128xf32, #tpu.memory_space<vmem>>, %arg5: memref<8x128xf32, #tpu.memory_space<vmem>>, %arg6: memref<8x128xf32, #tpu.memory_space<vmem>>, %arg7: memref<8x128xf32, #tpu.memory_space<vmem>>, %arg8: memref<8x128xf32, #tpu.memory_space<vmem>>, %arg9: memref<8x128xf32, #tpu.memory_space<vmem>>) attributes {dimension_semantics = [#tpu.dimension_semantics<parallel>, #tpu.dimension_semantics<arbitrary>], iteration_bounds = array<i64: 2, 2>, scalar_prefetch = 0 : i64, scratch_operands = 5 : i64, tpu.core_type = #tpu.core_type<tc>, window_params = [{transform_indices = @transform_0, window_bounds = array<i64: 1, 4096, 128>}, {transform_indices = @transform_1, window_bounds = array<i64: 1, 4096, 128>}, {transform_indices = @transform_2, window_bounds = array<i64: 1, 8, 128>}]} {
    %c0_i32 = arith.constant 0 : i32
    %0 = arith.cmpi eq, %arg1, %c0_i32 : i32
    %1 = arith.extui %0 : i1 to i32
    %c0_i32_0 = arith.constant 0 : i32
    %2 = arith.cmpi ne, %1, %c0_i32_0 : i32
    scf.if %2 {
      %cst_102 = arith.constant 0.000000e+00 : f32
      %206 = vector.broadcast %cst_102 : f32 to vector<8x128xf32>
      %c0_103 = arith.constant 0 : index
      %c0_104 = arith.constant 0 : index
      %207 = vector.load %arg5[%c0_103, %c0_104] : memref<8x128xf32, #tpu.memory_space<vmem>>, vector<8x128xf32>
      tpu.vector_store %arg5[%c0_103, %c0_104], %206 {strides = array<i32>} : memref<8x128xf32, #tpu.memory_space<vmem>>, vector<8x128xf32>,
      %cst_105 = arith.constant 0.000000e+00 : f32
      %208 = vector.broadcast %cst_105 : f32 to vector<8x128xf32>
      %c0_106 = arith.constant 0 : index
      %c0_107 = arith.constant 0 : index
      %209 = vector.load %arg6[%c0_106, %c0_107] : memref<8x128xf32, #tpu.memory_space<vmem>>, vector<8x128xf32>
      tpu.vector_store %arg6[%c0_106, %c0_107], %208 {strides = array<i32>} : memref<8x128xf32, #tpu.memory_space<vmem>>, vector<8x128xf32>,
      %cst_108 = arith.constant 0.000000e+00 : f32
      %210 = vector.broadcast %cst_108 : f32 to vector<8x128xf32>
      %c0_109 = arith.constant 0 : index
      %c0_110 = arith.constant 0 : index
      %211 = vector.load %arg7[%c0_109, %c0_110] : memref<8x128xf32, #tpu.memory_space<vmem>>, vector<8x128xf32>
      tpu.vector_store %arg7[%c0_109, %c0_110], %210 {strides = array<i32>} : memref<8x128xf32, #tpu.memory_space<vmem>>, vector<8x128xf32>,
      %cst_111 = arith.constant 0.000000e+00 : f32
      %212 = vector.broadcast %cst_111 : f32 to vector<8x128xf32>
      %c0_112 = arith.constant 0 : index
      %c0_113 = arith.constant 0 : index
      %213 = vector.load %arg8[%c0_112, %c0_113] : memref<8x128xf32, #tpu.memory_space<vmem>>, vector<8x128xf32>
      tpu.vector_store %arg8[%c0_112, %c0_113], %212 {strides = array<i32>} : memref<8x128xf32, #tpu.memory_space<vmem>>, vector<8x128xf32>,
      %cst_114 = arith.constant 0.000000e+00 : f32
      %214 = vector.broadcast %cst_114 : f32 to vector<8x128xf32>
      %c0_115 = arith.constant 0 : index
      %c0_116 = arith.constant 0 : index
      %215 = vector.load %arg9[%c0_115, %c0_116] : memref<8x128xf32, #tpu.memory_space<vmem>>, vector<8x128xf32>
      tpu.vector_store %arg9[%c0_115, %c0_116], %214 {strides = array<i32>} : memref<8x128xf32, #tpu.memory_space<vmem>>, vector<8x128xf32>,
    } else {
    }
    %cst = arith.constant 0.000000e+00 : f32
    %3 = vector.broadcast %cst : f32 to vector<8x128xf32>
    %c0_i32_1 = arith.constant 0 : i32
    %c512_i32 = arith.constant 512 : i32
    %4 = arith.muli %c0_i32_1, %c512_i32 : i32
    %5 = tpu.assume_multiple %4, 512 : i32
    %c0 = arith.constant 0 : index
    %6 = arith.index_cast %5 : i32 to index
    %c0_2 = arith.constant 0 : index
    %7 = vector.load %arg2[%c0, %6, %c0_2] : memref<1x4096x128xf32, #tpu.memory_space<vmem>>, vector<1x512x128xf32>
    %8 = vector.shape_cast %7 : vector<1x512x128xf32> to vector<512x128xf32>
    %c0_3 = arith.constant 0 : index
    %9 = arith.index_cast %5 : i32 to index
    %c0_4 = arith.constant 0 : index
    %10 = vector.load %arg3[%c0_3, %9, %c0_4] : memref<1x4096x128xf32, #tpu.memory_space<vmem>>, vector<1x512x128xf32>
    %11 = vector.shape_cast %10 : vector<1x512x128xf32> to vector<512x128xf32>
    %12 = vector.shape_cast %8 : vector<512x128xf32> to vector<64x8x128xf32>
    %13 = vector.shape_cast %11 : vector<512x128xf32> to vector<64x8x128xf32>
    %cst_5 = arith.constant dense<0.000000e+00> : vector<8x128xf32>
    %14 = vector.multi_reduction <add>, %12, %cst_5 [0] : vector<64x8x128xf32> to vector<8x128xf32>
    %15 = arith.addf %3, %14 : vector<8x128xf32>
    %cst_6 = arith.constant dense<0.000000e+00> : vector<8x128xf32>
    %16 = vector.multi_reduction <add>, %13, %cst_6 [0] : vector<64x8x128xf32> to vector<8x128xf32>
    %17 = arith.addf %3, %16 : vector<8x128xf32>
    %18 = arith.mulf %12, %12 : vector<64x8x128xf32>
    %cst_7 = arith.constant dense<0.000000e+00> : vector<8x128xf32>
    %19 = vector.multi_reduction <add>, %18, %cst_7 [0] : vector<64x8x128xf32> to vector<8x128xf32>
    %20 = arith.addf %3, %19 : vector<8x128xf32>
    %21 = arith.mulf %13, %13 : vector<64x8x128xf32>
    %cst_8 = arith.constant dense<0.000000e+00> : vector<8x128xf32>
    %22 = vector.multi_reduction <add>, %21, %cst_8 [0] : vector<64x8x128xf32> to vector<8x128xf32>
    %23 = arith.addf %3, %22 : vector<8x128xf32>
    %24 = arith.mulf %12, %13 : vector<64x8x128xf32>
    %cst_9 = arith.constant dense<0.000000e+00> : vector<8x128xf32>
    %25 = vector.multi_reduction <add>, %24, %cst_9 [0] : vector<64x8x128xf32> to vector<8x128xf32>
    %26 = arith.addf %3, %25 : vector<8x128xf32>
    %c1_i32 = arith.constant 1 : i32
    %c512_i32_10 = arith.constant 512 : i32
    %27 = arith.muli %c1_i32, %c512_i32_10 : i32
    %28 = tpu.assume_multiple %27, 512 : i32
    %c0_11 = arith.constant 0 : index
    %29 = arith.index_cast %28 : i32 to index
    %c0_12 = arith.constant 0 : index
    %30 = vector.load %arg2[%c0_11, %29, %c0_12] : memref<1x4096x128xf32, #tpu.memory_space<vmem>>, vector<1x512x128xf32>
    %31 = vector.shape_cast %30 : vector<1x512x128xf32> to vector<512x128xf32>
    %c0_13 = arith.constant 0 : index
    %32 = arith.index_cast %28 : i32 to index
    %c0_14 = arith.constant 0 : index
    %33 = vector.load %arg3[%c0_13, %32, %c0_14] : memref<1x4096x128xf32, #tpu.memory_space<vmem>>, vector<1x512x128xf32>
    %34 = vector.shape_cast %33 : vector<1x512x128xf32> to vector<512x128xf32>
    %35 = vector.shape_cast %31 : vector<512x128xf32> to vector<64x8x128xf32>
    %36 = vector.shape_cast %34 : vector<512x128xf32> to vector<64x8x128xf32>
    %cst_15 = arith.constant dense<0.000000e+00> : vector<8x128xf32>
    %37 = vector.multi_reduction <add>, %35, %cst_15 [0] : vector<64x8x128xf32> to vector<8x128xf32>
    %38 = arith.addf %15, %37 : vector<8x128xf32>
    %cst_16 = arith.constant dense<0.000000e+00> : vector<8x128xf32>
    %39 = vector.multi_reduction <add>, %36, %cst_16 [0] : vector<64x8x128xf32> to vector<8x128xf32>
    %40 = arith.addf %17, %39 : vector<8x128xf32>
    %41 = arith.mulf %35, %35 : vector<64x8x128xf32>
    %cst_17 = arith.constant dense<0.000000e+00> : vector<8x128xf32>
    %42 = vector.multi_reduction <add>, %41, %cst_17 [0] : vector<64x8x128xf32> to vector<8x128xf32>
    %43 = arith.addf %20, %42 : vector<8x128xf32>
    %44 = arith.mulf %36, %36 : vector<64x8x128xf32>
    %cst_18 = arith.constant dense<0.000000e+00> : vector<8x128xf32>
    %45 = vector.multi_reduction <add>, %44, %cst_18 [0] : vector<64x8x128xf32> to vector<8x128xf32>
    %46 = arith.addf %23, %45 : vector<8x128xf32>
    %47 = arith.mulf %35, %36 : vector<64x8x128xf32>
    %cst_19 = arith.constant dense<0.000000e+00> : vector<8x128xf32>
    %48 = vector.multi_reduction <add>, %47, %cst_19 [0] : vector<64x8x128xf32> to vector<8x128xf32>
    %49 = arith.addf %26, %48 : vector<8x128xf32>
    %c2_i32 = arith.constant 2 : i32
    %c512_i32_20 = arith.constant 512 : i32
    %50 = arith.muli %c2_i32, %c512_i32_20 : i32
    %51 = tpu.assume_multiple %50, 512 : i32
    %c0_21 = arith.constant 0 : index
    %52 = arith.index_cast %51 : i32 to index
    %c0_22 = arith.constant 0 : index
    %53 = vector.load %arg2[%c0_21, %52, %c0_22] : memref<1x4096x128xf32, #tpu.memory_space<vmem>>, vector<1x512x128xf32>
    %54 = vector.shape_cast %53 : vector<1x512x128xf32> to vector<512x128xf32>
    %c0_23 = arith.constant 0 : index
    %55 = arith.index_cast %51 : i32 to index
    %c0_24 = arith.constant 0 : index
    %56 = vector.load %arg3[%c0_23, %55, %c0_24] : memref<1x4096x128xf32, #tpu.memory_space<vmem>>, vector<1x512x128xf32>
    %57 = vector.shape_cast %56 : vector<1x512x128xf32> to vector<512x128xf32>
    %58 = vector.shape_cast %54 : vector<512x128xf32> to vector<64x8x128xf32>
    %59 = vector.shape_cast %57 : vector<512x128xf32> to vector<64x8x128xf32>
    %cst_25 = arith.constant dense<0.000000e+00> : vector<8x128xf32>
    %60 = vector.multi_reduction <add>, %58, %cst_25 [0] : vector<64x8x128xf32> to vector<8x128xf32>
    %61 = arith.addf %38, %60 : vector<8x128xf32>
    %cst_26 = arith.constant dense<0.000000e+00> : vector<8x128xf32>
    %62 = vector.multi_reduction <add>, %59, %cst_26 [0] : vector<64x8x128xf32> to vector<8x128xf32>
    %63 = arith.addf %40, %62 : vector<8x128xf32>
    %64 = arith.mulf %58, %58 : vector<64x8x128xf32>
    %cst_27 = arith.constant dense<0.000000e+00> : vector<8x128xf32>
    %65 = vector.multi_reduction <add>, %64, %cst_27 [0] : vector<64x8x128xf32> to vector<8x128xf32>
    %66 = arith.addf %43, %65 : vector<8x128xf32>
    %67 = arith.mulf %59, %59 : vector<64x8x128xf32>
    %cst_28 = arith.constant dense<0.000000e+00> : vector<8x128xf32>
    %68 = vector.multi_reduction <add>, %67, %cst_28 [0] : vector<64x8x128xf32> to vector<8x128xf32>
    %69 = arith.addf %46, %68 : vector<8x128xf32>
    %70 = arith.mulf %58, %59 : vector<64x8x128xf32>
    %cst_29 = arith.constant dense<0.000000e+00> : vector<8x128xf32>
    %71 = vector.multi_reduction <add>, %70, %cst_29 [0] : vector<64x8x128xf32> to vector<8x128xf32>
    %72 = arith.addf %49, %71 : vector<8x128xf32>
    %c3_i32 = arith.constant 3 : i32
    %c512_i32_30 = arith.constant 512 : i32
    %73 = arith.muli %c3_i32, %c512_i32_30 : i32
    %74 = tpu.assume_multiple %73, 512 : i32
    %c0_31 = arith.constant 0 : index
    %75 = arith.index_cast %74 : i32 to index
    %c0_32 = arith.constant 0 : index
    %76 = vector.load %arg2[%c0_31, %75, %c0_32] : memref<1x4096x128xf32, #tpu.memory_space<vmem>>, vector<1x512x128xf32>
    %77 = vector.shape_cast %76 : vector<1x512x128xf32> to vector<512x128xf32>
    %c0_33 = arith.constant 0 : index
    %78 = arith.index_cast %74 : i32 to index
    %c0_34 = arith.constant 0 : index
    %79 = vector.load %arg3[%c0_33, %78, %c0_34] : memref<1x4096x128xf32, #tpu.memory_space<vmem>>, vector<1x512x128xf32>
    %80 = vector.shape_cast %79 : vector<1x512x128xf32> to vector<512x128xf32>
    %81 = vector.shape_cast %77 : vector<512x128xf32> to vector<64x8x128xf32>
    %82 = vector.shape_cast %80 : vector<512x128xf32> to vector<64x8x128xf32>
    %cst_35 = arith.constant dense<0.000000e+00> : vector<8x128xf32>
    %83 = vector.multi_reduction <add>, %81, %cst_35 [0] : vector<64x8x128xf32> to vector<8x128xf32>
    %84 = arith.addf %61, %83 : vector<8x128xf32>
    %cst_36 = arith.constant dense<0.000000e+00> : vector<8x128xf32>
    %85 = vector.multi_reduction <add>, %82, %cst_36 [0] : vector<64x8x128xf32> to vector<8x128xf32>
    %86 = arith.addf %63, %85 : vector<8x128xf32>
    %87 = arith.mulf %81, %81 : vector<64x8x128xf32>
    %cst_37 = arith.constant dense<0.000000e+00> : vector<8x128xf32>
    %88 = vector.multi_reduction <add>, %87, %cst_37 [0] : vector<64x8x128xf32> to vector<8x128xf32>
    %89 = arith.addf %66, %88 : vector<8x128xf32>
    %90 = arith.mulf %82, %82 : vector<64x8x128xf32>
    %cst_38 = arith.constant dense<0.000000e+00> : vector<8x128xf32>
    %91 = vector.multi_reduction <add>, %90, %cst_38 [0] : vector<64x8x128xf32> to vector<8x128xf32>
    %92 = arith.addf %69, %91 : vector<8x128xf32>
    %93 = arith.mulf %81, %82 : vector<64x8x128xf32>
    %cst_39 = arith.constant dense<0.000000e+00> : vector<8x128xf32>
    %94 = vector.multi_reduction <add>, %93, %cst_39 [0] : vector<64x8x128xf32> to vector<8x128xf32>
    %95 = arith.addf %72, %94 : vector<8x128xf32>
    %c4_i32 = arith.constant 4 : i32
    %c512_i32_40 = arith.constant 512 : i32
    %96 = arith.muli %c4_i32, %c512_i32_40 : i32
    %97 = tpu.assume_multiple %96, 512 : i32
    %c0_41 = arith.constant 0 : index
    %98 = arith.index_cast %97 : i32 to index
    %c0_42 = arith.constant 0 : index
    %99 = vector.load %arg2[%c0_41, %98, %c0_42] : memref<1x4096x128xf32, #tpu.memory_space<vmem>>, vector<1x512x128xf32>
    %100 = vector.shape_cast %99 : vector<1x512x128xf32> to vector<512x128xf32>
    %c0_43 = arith.constant 0 : index
    %101 = arith.index_cast %97 : i32 to index
    %c0_44 = arith.constant 0 : index
    %102 = vector.load %arg3[%c0_43, %101, %c0_44] : memref<1x4096x128xf32, #tpu.memory_space<vmem>>, vector<1x512x128xf32>
    %103 = vector.shape_cast %102 : vector<1x512x128xf32> to vector<512x128xf32>
    %104 = vector.shape_cast %100 : vector<512x128xf32> to vector<64x8x128xf32>
    %105 = vector.shape_cast %103 : vector<512x128xf32> to vector<64x8x128xf32>
    %cst_45 = arith.constant dense<0.000000e+00> : vector<8x128xf32>
    %106 = vector.multi_reduction <add>, %104, %cst_45 [0] : vector<64x8x128xf32> to vector<8x128xf32>
    %107 = arith.addf %84, %106 : vector<8x128xf32>
    %cst_46 = arith.constant dense<0.000000e+00> : vector<8x128xf32>
    %108 = vector.multi_reduction <add>, %105, %cst_46 [0] : vector<64x8x128xf32> to vector<8x128xf32>
    %109 = arith.addf %86, %108 : vector<8x128xf32>
    %110 = arith.mulf %104, %104 : vector<64x8x128xf32>
    %cst_47 = arith.constant dense<0.000000e+00> : vector<8x128xf32>
    %111 = vector.multi_reduction <add>, %110, %cst_47 [0] : vector<64x8x128xf32> to vector<8x128xf32>
    %112 = arith.addf %89, %111 : vector<8x128xf32>
    %113 = arith.mulf %105, %105 : vector<64x8x128xf32>
    %cst_48 = arith.constant dense<0.000000e+00> : vector<8x128xf32>
    %114 = vector.multi_reduction <add>, %113, %cst_48 [0] : vector<64x8x128xf32> to vector<8x128xf32>
    %115 = arith.addf %92, %114 : vector<8x128xf32>
    %116 = arith.mulf %104, %105 : vector<64x8x128xf32>
    %cst_49 = arith.constant dense<0.000000e+00> : vector<8x128xf32>
    %117 = vector.multi_reduction <add>, %116, %cst_49 [0] : vector<64x8x128xf32> to vector<8x128xf32>
    %118 = arith.addf %95, %117 : vector<8x128xf32>
    %c5_i32 = arith.constant 5 : i32
    %c512_i32_50 = arith.constant 512 : i32
    %119 = arith.muli %c5_i32, %c512_i32_50 : i32
    %120 = tpu.assume_multiple %119, 512 : i32
    %c0_51 = arith.constant 0 : index
    %121 = arith.index_cast %120 : i32 to index
    %c0_52 = arith.constant 0 : index
    %122 = vector.load %arg2[%c0_51, %121, %c0_52] : memref<1x4096x128xf32, #tpu.memory_space<vmem>>, vector<1x512x128xf32>
    %123 = vector.shape_cast %122 : vector<1x512x128xf32> to vector<512x128xf32>
    %c0_53 = arith.constant 0 : index
    %124 = arith.index_cast %120 : i32 to index
    %c0_54 = arith.constant 0 : index
    %125 = vector.load %arg3[%c0_53, %124, %c0_54] : memref<1x4096x128xf32, #tpu.memory_space<vmem>>, vector<1x512x128xf32>
    %126 = vector.shape_cast %125 : vector<1x512x128xf32> to vector<512x128xf32>
    %127 = vector.shape_cast %123 : vector<512x128xf32> to vector<64x8x128xf32>
    %128 = vector.shape_cast %126 : vector<512x128xf32> to vector<64x8x128xf32>
    %cst_55 = arith.constant dense<0.000000e+00> : vector<8x128xf32>
    %129 = vector.multi_reduction <add>, %127, %cst_55 [0] : vector<64x8x128xf32> to vector<8x128xf32>
    %130 = arith.addf %107, %129 : vector<8x128xf32>
    %cst_56 = arith.constant dense<0.000000e+00> : vector<8x128xf32>
    %131 = vector.multi_reduction <add>, %128, %cst_56 [0] : vector<64x8x128xf32> to vector<8x128xf32>
    %132 = arith.addf %109, %131 : vector<8x128xf32>
    %133 = arith.mulf %127, %127 : vector<64x8x128xf32>
    %cst_57 = arith.constant dense<0.000000e+00> : vector<8x128xf32>
    %134 = vector.multi_reduction <add>, %133, %cst_57 [0] : vector<64x8x128xf32> to vector<8x128xf32>
    %135 = arith.addf %112, %134 : vector<8x128xf32>
    %136 = arith.mulf %128, %128 : vector<64x8x128xf32>
    %cst_58 = arith.constant dense<0.000000e+00> : vector<8x128xf32>
    %137 = vector.multi_reduction <add>, %136, %cst_58 [0] : vector<64x8x128xf32> to vector<8x128xf32>
    %138 = arith.addf %115, %137 : vector<8x128xf32>
    %139 = arith.mulf %127, %128 : vector<64x8x128xf32>
    %cst_59 = arith.constant dense<0.000000e+00> : vector<8x128xf32>
    %140 = vector.multi_reduction <add>, %139, %cst_59 [0] : vector<64x8x128xf32> to vector<8x128xf32>
    %141 = arith.addf %118, %140 : vector<8x128xf32>
    %c6_i32 = arith.constant 6 : i32
    %c512_i32_60 = arith.constant 512 : i32
    %142 = arith.muli %c6_i32, %c512_i32_60 : i32
    %143 = tpu.assume_multiple %142, 512 : i32
    %c0_61 = arith.constant 0 : index
    %144 = arith.index_cast %143 : i32 to index
    %c0_62 = arith.constant 0 : index
    %145 = vector.load %arg2[%c0_61, %144, %c0_62] : memref<1x4096x128xf32, #tpu.memory_space<vmem>>, vector<1x512x128xf32>
    %146 = vector.shape_cast %145 : vector<1x512x128xf32> to vector<512x128xf32>
    %c0_63 = arith.constant 0 : index
    %147 = arith.index_cast %143 : i32 to index
    %c0_64 = arith.constant 0 : index
    %148 = vector.load %arg3[%c0_63, %147, %c0_64] : memref<1x4096x128xf32, #tpu.memory_space<vmem>>, vector<1x512x128xf32>
    %149 = vector.shape_cast %148 : vector<1x512x128xf32> to vector<512x128xf32>
    %150 = vector.shape_cast %146 : vector<512x128xf32> to vector<64x8x128xf32>
    %151 = vector.shape_cast %149 : vector<512x128xf32> to vector<64x8x128xf32>
    %cst_65 = arith.constant dense<0.000000e+00> : vector<8x128xf32>
    %152 = vector.multi_reduction <add>, %150, %cst_65 [0] : vector<64x8x128xf32> to vector<8x128xf32>
    %153 = arith.addf %130, %152 : vector<8x128xf32>
    %cst_66 = arith.constant dense<0.000000e+00> : vector<8x128xf32>
    %154 = vector.multi_reduction <add>, %151, %cst_66 [0] : vector<64x8x128xf32> to vector<8x128xf32>
    %155 = arith.addf %132, %154 : vector<8x128xf32>
    %156 = arith.mulf %150, %150 : vector<64x8x128xf32>
    %cst_67 = arith.constant dense<0.000000e+00> : vector<8x128xf32>
    %157 = vector.multi_reduction <add>, %156, %cst_67 [0] : vector<64x8x128xf32> to vector<8x128xf32>
    %158 = arith.addf %135, %157 : vector<8x128xf32>
    %159 = arith.mulf %151, %151 : vector<64x8x128xf32>
    %cst_68 = arith.constant dense<0.000000e+00> : vector<8x128xf32>
    %160 = vector.multi_reduction <add>, %159, %cst_68 [0] : vector<64x8x128xf32> to vector<8x128xf32>
    %161 = arith.addf %138, %160 : vector<8x128xf32>
    %162 = arith.mulf %150, %151 : vector<64x8x128xf32>
    %cst_69 = arith.constant dense<0.000000e+00> : vector<8x128xf32>
    %163 = vector.multi_reduction <add>, %162, %cst_69 [0] : vector<64x8x128xf32> to vector<8x128xf32>
    %164 = arith.addf %141, %163 : vector<8x128xf32>
    %c7_i32 = arith.constant 7 : i32
    %c512_i32_70 = arith.constant 512 : i32
    %165 = arith.muli %c7_i32, %c512_i32_70 : i32
    %166 = tpu.assume_multiple %165, 512 : i32
    %c0_71 = arith.constant 0 : index
    %167 = arith.index_cast %166 : i32 to index
    %c0_72 = arith.constant 0 : index
    %168 = vector.load %arg2[%c0_71, %167, %c0_72] : memref<1x4096x128xf32, #tpu.memory_space<vmem>>, vector<1x512x128xf32>
    %169 = vector.shape_cast %168 : vector<1x512x128xf32> to vector<512x128xf32>
    %c0_73 = arith.constant 0 : index
    %170 = arith.index_cast %166 : i32 to index
    %c0_74 = arith.constant 0 : index
    %171 = vector.load %arg3[%c0_73, %170, %c0_74] : memref<1x4096x128xf32, #tpu.memory_space<vmem>>, vector<1x512x128xf32>
    %172 = vector.shape_cast %171 : vector<1x512x128xf32> to vector<512x128xf32>
    %173 = vector.shape_cast %169 : vector<512x128xf32> to vector<64x8x128xf32>
    %174 = vector.shape_cast %172 : vector<512x128xf32> to vector<64x8x128xf32>
    %cst_75 = arith.constant dense<0.000000e+00> : vector<8x128xf32>
    %175 = vector.multi_reduction <add>, %173, %cst_75 [0] : vector<64x8x128xf32> to vector<8x128xf32>
    %176 = arith.addf %153, %175 : vector<8x128xf32>
    %cst_76 = arith.constant dense<0.000000e+00> : vector<8x128xf32>
    %177 = vector.multi_reduction <add>, %174, %cst_76 [0] : vector<64x8x128xf32> to vector<8x128xf32>
    %178 = arith.addf %155, %177 : vector<8x128xf32>
    %179 = arith.mulf %173, %173 : vector<64x8x128xf32>
    %cst_77 = arith.constant dense<0.000000e+00> : vector<8x128xf32>
    %180 = vector.multi_reduction <add>, %179, %cst_77 [0] : vector<64x8x128xf32> to vector<8x128xf32>
    %181 = arith.addf %158, %180 : vector<8x128xf32>
    %182 = arith.mulf %174, %174 : vector<64x8x128xf32>
    %cst_78 = arith.constant dense<0.000000e+00> : vector<8x128xf32>
    %183 = vector.multi_reduction <add>, %182, %cst_78 [0] : vector<64x8x128xf32> to vector<8x128xf32>
    %184 = arith.addf %161, %183 : vector<8x128xf32>
    %185 = arith.mulf %173, %174 : vector<64x8x128xf32>
    %cst_79 = arith.constant dense<0.000000e+00> : vector<8x128xf32>
    %186 = vector.multi_reduction <add>, %185, %cst_79 [0] : vector<64x8x128xf32> to vector<8x128xf32>
    %187 = arith.addf %164, %186 : vector<8x128xf32>
    %c8_i32 = arith.constant 8 : i32
    %c0_80 = arith.constant 0 : index
    %c0_81 = arith.constant 0 : index
    %188 = vector.load %arg5[%c0_80, %c0_81] : memref<8x128xf32, #tpu.memory_space<vmem>>, vector<8x128xf32>
    %189 = arith.addf %188, %176 : vector<8x128xf32>
    %c0_82 = arith.constant 0 : index
    %c0_83 = arith.constant 0 : index
    %190 = vector.load %arg5[%c0_82, %c0_83] : memref<8x128xf32, #tpu.memory_space<vmem>>, vector<8x128xf32>
    tpu.vector_store %arg5[%c0_82, %c0_83], %189 {strides = array<i32>} : memref<8x128xf32, #tpu.memory_space<vmem>>, vector<8x128xf32>,
    %c0_84 = arith.constant 0 : index
    %c0_85 = arith.constant 0 : index
    %191 = vector.load %arg6[%c0_84, %c0_85] : memref<8x128xf32, #tpu.memory_space<vmem>>, vector<8x128xf32>
    %192 = arith.addf %191, %178 : vector<8x128xf32>
    %c0_86 = arith.constant 0 : index
    %c0_87 = arith.constant 0 : index
    %193 = vector.load %arg6[%c0_86, %c0_87] : memref<8x128xf32, #tpu.memory_space<vmem>>, vector<8x128xf32>
    tpu.vector_store %arg6[%c0_86, %c0_87], %192 {strides = array<i32>} : memref<8x128xf32, #tpu.memory_space<vmem>>, vector<8x128xf32>,
    %c0_88 = arith.constant 0 : index
    %c0_89 = arith.constant 0 : index
    %194 = vector.load %arg7[%c0_88, %c0_89] : memref<8x128xf32, #tpu.memory_space<vmem>>, vector<8x128xf32>
    %195 = arith.addf %194, %181 : vector<8x128xf32>
    %c0_90 = arith.constant 0 : index
    %c0_91 = arith.constant 0 : index
    %196 = vector.load %arg7[%c0_90, %c0_91] : memref<8x128xf32, #tpu.memory_space<vmem>>, vector<8x128xf32>
    tpu.vector_store %arg7[%c0_90, %c0_91], %195 {strides = array<i32>} : memref<8x128xf32, #tpu.memory_space<vmem>>, vector<8x128xf32>,
    %c0_92 = arith.constant 0 : index
    %c0_93 = arith.constant 0 : index
    %197 = vector.load %arg8[%c0_92, %c0_93] : memref<8x128xf32, #tpu.memory_space<vmem>>, vector<8x128xf32>
    %198 = arith.addf %197, %184 : vector<8x128xf32>
    %c0_94 = arith.constant 0 : index
    %c0_95 = arith.constant 0 : index
    %199 = vector.load %arg8[%c0_94, %c0_95] : memref<8x128xf32, #tpu.memory_space<vmem>>, vector<8x128xf32>
    tpu.vector_store %arg8[%c0_94, %c0_95], %198 {strides = array<i32>} : memref<8x128xf32, #tpu.memory_space<vmem>>, vector<8x128xf32>,
    %c0_96 = arith.constant 0 : index
    %c0_97 = arith.constant 0 : index
    %200 = vector.load %arg9[%c0_96, %c0_97] : memref<8x128xf32, #tpu.memory_space<vmem>>, vector<8x128xf32>
    %201 = arith.addf %200, %187 : vector<8x128xf32>
    %c0_98 = arith.constant 0 : index
    %c0_99 = arith.constant 0 : index
    %202 = vector.load %arg9[%c0_98, %c0_99] : memref<8x128xf32, #tpu.memory_space<vmem>>, vector<8x128xf32>
    tpu.vector_store %arg9[%c0_98, %c0_99], %201 {strides = array<i32>} : memref<8x128xf32, #tpu.memory_space<vmem>>, vector<8x128xf32>,
    %c1_i32_100 = arith.constant 1 : i32
    %203 = arith.cmpi eq, %arg1, %c1_i32_100 : i32
    %204 = arith.extui %203 : i1 to i32
    %c0_i32_101 = arith.constant 0 : i32
    %205 = arith.cmpi ne, %204, %c0_i32_101 : i32
    scf.if %205 {
      %c0_102 = arith.constant 0 : index
      %c0_103 = arith.constant 0 : index
      %206 = vector.load %arg5[%c0_102, %c0_103] : memref<8x128xf32, #tpu.memory_space<vmem>>, vector<8x128xf32>
      %cst_104 = arith.constant dense<0.000000e+00> : vector<128xf32>
      %207 = vector.multi_reduction <add>, %206, %cst_104 [0] : vector<8x128xf32> to vector<128xf32>
      %208 = vector.shape_cast %207 : vector<128xf32> to vector<1x128xf32>
      %cst_105 = arith.constant dense<0.000000e+00> : vector<1xf32>
      %209 = vector.multi_reduction <add>, %208, %cst_105 [1] : vector<1x128xf32> to vector<1xf32>
      %210 = vector.shape_cast %209 : vector<1xf32> to vector<1x1xf32>
      %c0_106 = arith.constant 0 : index
      %c0_107 = arith.constant 0 : index
      %211 = vector.load %arg6[%c0_106, %c0_107] : memref<8x128xf32, #tpu.memory_space<vmem>>, vector<8x128xf32>
      %cst_108 = arith.constant dense<0.000000e+00> : vector<128xf32>
      %212 = vector.multi_reduction <add>, %211, %cst_108 [0] : vector<8x128xf32> to vector<128xf32>
      %213 = vector.shape_cast %212 : vector<128xf32> to vector<1x128xf32>
      %cst_109 = arith.constant dense<0.000000e+00> : vector<1xf32>
      %214 = vector.multi_reduction <add>, %213, %cst_109 [1] : vector<1x128xf32> to vector<1xf32>
      %215 = vector.shape_cast %214 : vector<1xf32> to vector<1x1xf32>
      %c0_110 = arith.constant 0 : index
      %c0_111 = arith.constant 0 : index
      %216 = vector.load %arg7[%c0_110, %c0_111] : memref<8x128xf32, #tpu.memory_space<vmem>>, vector<8x128xf32>
      %cst_112 = arith.constant dense<0.000000e+00> : vector<128xf32>
      %217 = vector.multi_reduction <add>, %216, %cst_112 [0] : vector<8x128xf32> to vector<128xf32>
      %218 = vector.shape_cast %217 : vector<128xf32> to vector<1x128xf32>
      %cst_113 = arith.constant dense<0.000000e+00> : vector<1xf32>
      %219 = vector.multi_reduction <add>, %218, %cst_113 [1] : vector<1x128xf32> to vector<1xf32>
      %220 = vector.shape_cast %219 : vector<1xf32> to vector<1x1xf32>
      %c0_114 = arith.constant 0 : index
      %c0_115 = arith.constant 0 : index
      %221 = vector.load %arg8[%c0_114, %c0_115] : memref<8x128xf32, #tpu.memory_space<vmem>>, vector<8x128xf32>
      %cst_116 = arith.constant dense<0.000000e+00> : vector<128xf32>
      %222 = vector.multi_reduction <add>, %221, %cst_116 [0] : vector<8x128xf32> to vector<128xf32>
      %223 = vector.shape_cast %222 : vector<128xf32> to vector<1x128xf32>
      %cst_117 = arith.constant dense<0.000000e+00> : vector<1xf32>
      %224 = vector.multi_reduction <add>, %223, %cst_117 [1] : vector<1x128xf32> to vector<1xf32>
      %225 = vector.shape_cast %224 : vector<1xf32> to vector<1x1xf32>
      %c0_118 = arith.constant 0 : index
      %c0_119 = arith.constant 0 : index
      %226 = vector.load %arg9[%c0_118, %c0_119] : memref<8x128xf32, #tpu.memory_space<vmem>>, vector<8x128xf32>
      %cst_120 = arith.constant dense<0.000000e+00> : vector<128xf32>
      %227 = vector.multi_reduction <add>, %226, %cst_120 [0] : vector<8x128xf32> to vector<128xf32>
      %228 = vector.shape_cast %227 : vector<128xf32> to vector<1x128xf32>
      %cst_121 = arith.constant dense<0.000000e+00> : vector<1xf32>
      %229 = vector.multi_reduction <add>, %228, %cst_121 [1] : vector<1x128xf32> to vector<1xf32>
      %230 = vector.shape_cast %229 : vector<1xf32> to vector<1x1xf32>
      %cst_122 = arith.constant 0x49800000 : f32
      %231 = vector.broadcast %cst_122 : f32 to vector<1x1xf32>
      %232 = arith.divf %210, %231 : vector<1x1xf32>
      %cst_123 = arith.constant 0x49800000 : f32
      %233 = vector.broadcast %cst_123 : f32 to vector<1x1xf32>
      %234 = arith.divf %215, %233 : vector<1x1xf32>
      %235 = arith.mulf %234, %210 : vector<1x1xf32>
      %236 = arith.subf %230, %235 : vector<1x1xf32>
      %237 = arith.mulf %232, %215 : vector<1x1xf32>
      %238 = arith.subf %236, %237 : vector<1x1xf32>
      %239 = arith.mulf %232, %234 : vector<1x1xf32>
      %cst_124 = arith.constant 0x49800000 : f32
      %240 = vector.broadcast %cst_124 : f32 to vector<1x1xf32>
      %241 = arith.mulf %239, %240 : vector<1x1xf32>
      %242 = arith.addf %238, %241 : vector<1x1xf32>
      %cst_125 = arith.constant 2.000000e+00 : f32
      %243 = vector.broadcast %cst_125 : f32 to vector<1x1xf32>
      %244 = arith.mulf %243, %232 : vector<1x1xf32>
      %245 = arith.mulf %244, %210 : vector<1x1xf32>
      %246 = arith.subf %220, %245 : vector<1x1xf32>
      %247 = arith.mulf %232, %232 : vector<1x1xf32>
      %cst_126 = arith.constant 0x49800000 : f32
      %248 = vector.broadcast %cst_126 : f32 to vector<1x1xf32>
      %249 = arith.mulf %247, %248 : vector<1x1xf32>
      %250 = arith.addf %246, %249 : vector<1x1xf32>
      %cst_127 = arith.constant 2.000000e+00 : f32
      %251 = vector.broadcast %cst_127 : f32 to vector<1x1xf32>
      %252 = arith.mulf %251, %234 : vector<1x1xf32>
      %253 = arith.mulf %252, %215 : vector<1x1xf32>
      %254 = arith.subf %225, %253 : vector<1x1xf32>
      %255 = arith.mulf %234, %234 : vector<1x1xf32>
      %cst_128 = arith.constant 0x49800000 : f32
      %256 = vector.broadcast %cst_128 : f32 to vector<1x1xf32>
      %257 = arith.mulf %255, %256 : vector<1x1xf32>
      %258 = arith.addf %254, %257 : vector<1x1xf32>
      %259 = arith.mulf %242, %242 : vector<1x1xf32>
      %260 = arith.mulf %250, %258 : vector<1x1xf32>
      %cst_129 = arith.constant 9.99999974E-6 : f32
      %261 = vector.broadcast %cst_129 : f32 to vector<1x1xf32>
      %262 = arith.addf %260, %261 : vector<1x1xf32>
      %263 = arith.divf %259, %262 : vector<1x1xf32>
      %264 = vector.shape_cast %263 : vector<1x1xf32> to vector<1x1x1xf32>
      %265 = vector.broadcast %264 : vector<1x1x1xf32> to vector<1x8x128xf32>
      %c0_130 = arith.constant 0 : index
      %c0_131 = arith.constant 0 : index
      %c0_132 = arith.constant 0 : index
      %266 = vector.load %arg4[%c0_130, %c0_131, %c0_132] : memref<1x8x128xf32, #tpu.memory_space<vmem>>, vector<1x8x128xf32>
      tpu.vector_store %arg4[%c0_130, %c0_131, %c0_132], %265 {strides = array<i32>} : memref<1x8x128xf32, #tpu.memory_space<vmem>>, vector<1x8x128xf32>,
    } else {
    }
    return
  }
  func.func @transform_0(%arg0: i32, %arg1: i32) -> (i32, i32, i32) {
    %c0_i32 = arith.constant 0 : i32
    %c0_i32_0 = arith.constant 0 : i32
    return %arg0, %arg1, %c0_i32 : i32, i32, i32
  }
  func.func @transform_1(%arg0: i32, %arg1: i32) -> (i32, i32, i32) {
    %c0_i32 = arith.constant 0 : i32
    %c0_i32_0 = arith.constant 0 : i32
    return %arg0, %arg1, %c0_i32 : i32, i32, i32
  }
  func.func @transform_2(%arg0: i32, %arg1: i32) -> (i32, i32, i32) {
    %c0_i32 = arith.constant 0 : i32
    %c0_i32_0 = arith.constant 0 : i32
    %c0_i32_1 = arith.constant 0 : i32
    return %arg0, %c0_i32, %c0_i32_0 : i32, i32, i32
  }
}

</mosaic_0001>

<llo_original>
// kernel: ncc_ori_loss.1
$region0: #{ncc_ori_loss.1}
  #allocation0 [shape = 'u32[]', space=smem, size = 0x4, offset = 0x4, fixed_abs, tag = 'smem constant byte address 0x4 - core index']
  #allocation1 [shape = 'u32[72,128]{1,0:T(1,128)}', space=vmem, size = 0x9000, scoped, tag = 'internal scratch']
  #allocation2 [shape = 'f32[8,128]{1,0:T(8,128)}', space=vmem, size = 0x1000, scoped, tag = 'scratch operand']
  #allocation3 [shape = 'f32[8,128]{1,0:T(8,128)}', space=vmem, size = 0x1000, scoped, tag = 'scratch operand']
  #allocation4 [shape = 'f32[8,128]{1,0:T(8,128)}', space=vmem, size = 0x1000, scoped, tag = 'scratch operand']
  #allocation5 [shape = 'f32[8,128]{1,0:T(8,128)}', space=vmem, size = 0x1000, scoped, tag = 'scratch operand']
  #allocation6 [shape = 'f32[8,128]{1,0:T(8,128)}', space=vmem, size = 0x1000, scoped, tag = 'scratch operand']
  %s0 = inlined_call_operand.hbm [shape: f32[2,8192,128], index: 0, kind: input, shape index: {}]
  %s1 = inlined_call_operand.hbm [shape: f32[2,8192,128], index: 1, kind: input, shape index: {}]
  %s2 = inlined_call_operand.vmem [shape: f32[2,8,128], index: 2, kind: output, shape index: {}]
  %s3 = sld [smem:[#allocation0]]
  $region57: #{ncc_ori_loss.1} parent=0
    _
  %s5 = ssub.s32 1, %s3
  %s6 = scalar_select 0, %s5, %s3
  $region1: #{ncc_ori_loss.1} parent=0
    #allocation7 [shape = 'u8[4194304]{0}', space=vmem, size = 0x400000, scoped, tag = 'input window, operand 0']
    #allocation8 [shape = 's32[2]{0}', space=sflag, size = 0x8, scoped, tag = 'scoped memory for ncc_ori_loss.1']
    #allocation9 [shape = 'u8[4194304]{0}', space=vmem, size = 0x400000, scoped, tag = 'input window, operand 1']
    #allocation10 [shape = 's32[2]{0}', space=sflag, size = 0x8, scoped, tag = 'scoped memory for ncc_ori_loss.1']
    %7 = vsyncpa [#allocation8], 0
    %s8 = scalar_lea.sflag [#allocation8], 1
    %9 = vsyncpa %s8, 0
    %10 = vsyncpa [#allocation10], 0
    %s11 = scalar_lea.sflag [#allocation10], 1
    %12 = vsyncpa %s11, 0
    loop: start=0, step=1, limit=6
    $region2: #{ncc_ori_loss.1} parent=1 // loop_pre_header
      _
    $region3: #{ncc_ori_loss.1} parent=1 // loop_header
      %s14 = sphi 0, %s18
      %p15 = scmp.ge.s32.totalorder %s14, 6
      %s21 = sphi 0, %s33
      %s22 = sphi 0, %s29
      %s23 = sphi 0, %s21
      %s24 = sphi 0, %s22
      %s25 = sphi 0, %s23
      %s26 = sphi 0, %s24
      %s38 = sphi 0, %s40
      %s41 = sphi 0, %s38
      %s42 = sphi 0, %s41
      %s58 = sphi 0, %s42
      %s66 = sphi 0, %s68
      %s69 = sphi 0, %s66
      %s70 = sphi 0, %s69
      %s86 = sphi 0, %s70
      %s92 = sphi 0, %s94
      %s95 = sphi 0, %s92
      %s96 = sphi 0, %s95
      %s112 = sphi 0, %s96
    $region4: #{ncc_ori_loss.1} parent=1 // loop_header_branch
      %17 = sbr.rel (%p15) target = $region8
    $region5: #{ncc_ori_loss.1} parent=1 // loop_body
      %s19 = ssub.s32 %s14, 1
      %s20 = ssub.s32 %s14, 2
      %s27 = sadd.s32 1, %s22
      %p28 = scmp.ge.s32.totalorder %s27, 2
      %s29 = scalar_select %p28, 0, %s27
      %s30 = sadd.s32 1, %s21
      %s31 = scalar_select %p28, %s30, %s21
      %p32 = scmp.ge.s32.totalorder %s31, 2
      %s33 = scalar_select %p32, 0, %s31
      %s34 = ssub.s32 %s21, %s33
      %s35 = ssub.s32 %s22, %s29
      %s36 = sor.u32 %s34, %s35
      %p37 = scmp.eq.s32.totalorder %s36, 0
      %s39 = sadd.s32 %s38, 1
      %s40 = scalar_select %p37, %s38, %s39
      %p43 = pneg %p37
      %p44 = scmp.eq.s32.totalorder %s14, 3
      %p45 = por %p43, %p44
      %p46 = scmp.ne.s32.totalorder %s38, %s41
      %p47 = scmp.eq.s32.totalorder %s14, 0
      %p48 = por %p46, %p47
      %p49 = scmp.ne.s32.totalorder %s38, %s41
      %p50 = scmp.eq.s32.totalorder %s19, 3
      %p51 = por %p49, %p50
      %p52 = scmp.ne.s32.totalorder %s41, %s42
      %p53 = scmp.eq.s32.totalorder %s19, 0
      %p54 = por %p52, %p53
      %p55 = scmp.ne.s32.totalorder %s41, %s42
      %p56 = scmp.eq.s32.totalorder %s20, 3
      %p57 = por %p55, %p56
      %p59 = scmp.ne.s32.totalorder %s42, %s58
      %p60 = scmp.eq.s32.totalorder %s20, 0
      %p61 = por %p59, %p60
      %s62 = ssub.s32 %s21, %s33
      %s63 = ssub.s32 %s22, %s29
      %s64 = sor.u32 %s62, %s63
      %p65 = scmp.eq.s32.totalorder %s64, 0
      %s67 = sadd.s32 %s66, 1
      %s68 = scalar_select %p65, %s66, %s67
      %p71 = pneg %p65
      %p72 = scmp.eq.s32.totalorder %s14, 3
      %p73 = por %p71, %p72
      %p74 = scmp.ne.s32.totalorder %s66, %s69
      %p75 = scmp.eq.s32.totalorder %s14, 0
      %p76 = por %p74, %p75
      %p77 = scmp.ne.s32.totalorder %s66, %s69
      %p78 = scmp.eq.s32.totalorder %s19, 3
      %p79 = por %p77, %p78
      %p80 = scmp.ne.s32.totalorder %s69, %s70
      %p81 = scmp.eq.s32.totalorder %s19, 0
      %p82 = por %p80, %p81
      %p83 = scmp.ne.s32.totalorder %s69, %s70
      %p84 = scmp.eq.s32.totalorder %s20, 3
      %p85 = por %p83, %p84
      %p87 = scmp.ne.s32.totalorder %s70, %s86
      %p88 = scmp.eq.s32.totalorder %s20, 0
      %p89 = por %p87, %p88
      %s90 = ssub.s32 %s21, %s33
      %p91 = scmp.eq.s32.totalorder %s90, 0
      %s93 = sadd.s32 %s92, 1
      %s94 = scalar_select %p91, %s92, %s93
      %p97 = pneg %p91
      %p98 = scmp.eq.s32.totalorder %s14, 3
      %p99 = por %p97, %p98
      %p100 = scmp.ne.s32.totalorder %s92, %s95
      %p101 = scmp.eq.s32.totalorder %s14, 0
      %p102 = por %p100, %p101
      %p103 = scmp.ne.s32.totalorder %s92, %s95
      %p104 = scmp.eq.s32.totalorder %s19, 3
      %p105 = por %p103, %p104
      %p106 = scmp.ne.s32.totalorder %s95, %s96
      %p107 = scmp.eq.s32.totalorder %s19, 0
      %p108 = por %p106, %p107
      %p109 = scmp.ne.s32.totalorder %s95, %s96
      %p110 = scmp.eq.s32.totalorder %s20, 3
      %p111 = por %p109, %p110
      %p113 = scmp.ne.s32.totalorder %s96, %s112
      %p114 = scmp.eq.s32.totalorder %s20, 0
      %p115 = por %p113, %p114
      %p116 = scmp.le.s32.totalorder 1, %s14
      %p117 = scmp.lt.s32.totalorder %s14, 5
      %p118 = pnand %p116, %p117
      %p119 = pneg %p118
      // Predicated region
      $region9: #{ncc_ori_loss.1} parent=5 // pred_check
        _
      $region10: #{ncc_ori_loss.1} parent=5 // pred_check_branch
        %121 = sbr.rel (%p118) target = $region12
      $region11: #{ncc_ori_loss.1} parent=5 // pred_region
        %s122 = ssub.s32 %s14, 1
      $region12: #{ncc_ori_loss.1} parent=5 // pred_fallthru
        _
      %p123 = scmp.lt.s32.totalorder %s14, 4
      // Predicated region
      $region13: #{ncc_ori_loss.1} parent=5 // pred_check
        %p124 = pneg %p123
      $region14: #{ncc_ori_loss.1} parent=5 // pred_check_branch
        %126 = sbr.rel (%p124) target = $region16
      $region15: #{ncc_ori_loss.1} parent=5 // pred_region
        // Predicated region
        $region17: #{ncc_ori_loss.1} parent=15 // pred_check
          %p127 = pneg %p48
        $region18: #{ncc_ori_loss.1} parent=15 // pred_check_branch
          %129 = sbr.rel (%p127) target = $region20
        $region19: #{ncc_ori_loss.1} parent=15 // pred_region
          %s130 = sand.u32 %s38, 1
          %s131 = scalar_lea.sflag [#allocation8], %s130
          %s132 = sand.u32 %s38, 1
          %s133 = smul.addr %s132, 4096
          %s134 = scalar_lea.vmem [#allocation7], %s133
          %s135 = smul.u32 512, %s22
          %137 = vsyncadd %s131, 0
          %s138 = smul.addr %s21, 1024
          %s139 = sadd.s32 %s135, %s138
          %s140 = smul.addr %s139, 8
          %s141 = scalar_lea.hbm %s0, %s140
          %s142 = sshll.u32 %s141, 4
          %s143 = int_to_ptr.hbm [resolvable:$true] %s142
          %s144 = sshll.u32 %s134, 4
          %s145 = int_to_ptr.vmem [resolvable:$true] %s144
          %150 = dma.hbm_to_vmem [thread:$0]  %s143, 65536, %s145, %s131, 128, 128, 8
        $region20: #{ncc_ori_loss.1} parent=15 // pred_fallthru
          _
        // Predicated region
        $region21: #{ncc_ori_loss.1} parent=15 // pred_check
          %p151 = pneg %p76
        $region22: #{ncc_ori_loss.1} parent=15 // pred_check_branch
          %153 = sbr.rel (%p151) target = $region24
        $region23: #{ncc_ori_loss.1} parent=15 // pred_region
          %s154 = sand.u32 %s66, 1
          %s155 = scalar_lea.sflag [#allocation10], %s154
          %s156 = sand.u32 %s66, 1
          %s157 = smul.addr %s156, 4096
          %s158 = scalar_lea.vmem [#allocation9], %s157
          %s159 = smul.u32 512, %s22
          %161 = vsyncadd %s155, 0
          %s162 = smul.addr %s21, 1024
          %s163 = sadd.s32 %s159, %s162
          %s164 = smul.addr %s163, 8
          %s165 = scalar_lea.hbm %s1, %s164
          %s166 = sshll.u32 %s165, 4
          %s167 = int_to_ptr.hbm [resolvable:$true] %s166
          %s168 = sshll.u32 %s158, 4
          %s169 = int_to_ptr.vmem [resolvable:$true] %s168
          %174 = dma.hbm_to_vmem [thread:$0]  %s167, 65536, %s169, %s155, 128, 128, 8
        $region24: #{ncc_ori_loss.1} parent=15 // pred_fallthru
          _
      $region16: #{ncc_ori_loss.1} parent=5 // pred_fallthru
        _
      %p175 = scmp.le.s32.totalorder 1, %s14
      %p176 = scmp.lt.s32.totalorder %s14, 5
      %p177 = pnand %p175, %p176
      %p178 = pneg %p177
      // Predicated region
      $region25: #{ncc_ori_loss.1} parent=5 // pred_check
        _
      $region26: #{ncc_ori_loss.1} parent=5 // pred_check_branch
        %180 = sbr.rel (%p177) target = $region28
      $region27: #{ncc_ori_loss.1} parent=5 // pred_region
        %s181 = ssub.s32 %s14, 1
        %s182 = sand.u32 %s41, 1
        %s183 = scalar_lea.sflag [#allocation8], %s182
        %s184 = sand.u32 %s41, 1
        %s185 = smul.addr %s184, 4096
        %s186 = scalar_lea.vmem [#allocation7], %s185
        // Predicated region
        $region29: #{ncc_ori_loss.1} parent=27 // pred_check
          %p187 = pneg %p54
        $region30: #{ncc_ori_loss.1} parent=27 // pred_check_branch
          %189 = sbr.rel (%p187) target = $region32
        $region31: #{ncc_ori_loss.1} parent=27 // pred_region
          %191 = dma.done %s183, 65536
        $region32: #{ncc_ori_loss.1} parent=27 // pred_fallthru
          _
        %s192 = sand.u32 %s69, 1
        %s193 = scalar_lea.sflag [#allocation10], %s192
        %s194 = sand.u32 %s69, 1
        %s195 = smul.addr %s194, 4096
        %s196 = scalar_lea.vmem [#allocation9], %s195
        // Predicated region
        $region33: #{ncc_ori_loss.1} parent=27 // pred_check
          %p197 = pneg %p82
        $region34: #{ncc_ori_loss.1} parent=27 // pred_check_branch
          %199 = sbr.rel (%p197) target = $region36
        $region35: #{ncc_ori_loss.1} parent=27 // pred_region
          %201 = dma.done %s193, 65536
        $region36: #{ncc_ori_loss.1} parent=27 // pred_fallthru
          _
        %s202 = sand.u32 %s41, 1
        %s203 = scalar_lea.sflag [#allocation8], %s202
        %s204 = sand.u32 %s41, 1
        %s205 = smul.addr %s204, 4096
        %s206 = scalar_lea.vmem [#allocation7], %s205
        %p207 = pneg %p54
        %p208 = pneg %p51
        %s209 = sand.u32 %s69, 1
        %s210 = scalar_lea.sflag [#allocation10], %s209
        %s211 = sand.u32 %s69, 1
        %s212 = smul.addr %s211, 4096
        %s213 = scalar_lea.vmem [#allocation9], %s212
        %p214 = pneg %p82
        %p215 = pneg %p79
        %p216 = pneg %p108
        %p217 = pneg %p105
        %p218 = scmp.lt.s32.totalorder %s23, 1
        %s219 = scalar_select %p218, %s23, 1
        %s220 = smul.addr %s219, 8
        %s221 = scalar_lea.vmem %s2, %s220
        %s222 = smul.u32 512, %s24
        %s223 = smul.u32 512, %s24
        %p224 = scmp.lt.s32.totalorder %s23, 1
        %s225 = scalar_select %p224, %s23, 1
        %s226 = smul.addr %s225, 8
        %s227 = scalar_lea.vmem %s2, %s226
        %p228 = scmp.eq.s32.totalorder %s24, 0
        // Predicated region
        $region37: #{ncc_ori_loss.1} parent=27 // pred_check
          %p229 = pneg %p228
        $region38: #{ncc_ori_loss.1} parent=27 // pred_check_branch
          %231 = sbr.rel (%p229) target = $region40
        $region39: #{ncc_ori_loss.1} parent=27 // pred_region
          %232 = vst [vmem:[#allocation2] sm:$0xff] 0.0
          %233 = vst [vmem:[#allocation3] sm:$0xff] 0.0
          %234 = vst [vmem:[#allocation4] sm:$0xff] 0.0
          %235 = vst [vmem:[#allocation5] sm:$0xff] 0.0
          %236 = vst [vmem:[#allocation6] sm:$0xff] 0.0
        $region40: #{ncc_ori_loss.1} parent=27 // pred_fallthru
          _
        %v237 = vld [vmem:[%s186] sm:$0xff]
        %v238 = vld [vmem:[%s186 + $0x8] sm:$0xff]
        %v239 = vld [vmem:[%s186 + $0x10] sm:$0xff]
        %v240 = vld [vmem:[%s186 + $0x18] sm:$0xff]
        %v241 = vld [vmem:[%s186 + $0x20] sm:$0xff]
        %v242 = vld [vmem:[%s186 + $0x28] sm:$0xff]
        %v243 = vld [vmem:[%s186 + $0x30] sm:$0xff]
        %v244 = vld [vmem:[%s186 + $0x38] sm:$0xff]
        %v245 = vld [vmem:[%s186 + $0x40] sm:$0xff]
        %v246 = vld [vmem:[%s186 + $0x48] sm:$0xff]
        %v247 = vld [vmem:[%s186 + $0x50] sm:$0xff]
        %v248 = vld [vmem:[%s186 + $0x58] sm:$0xff]
        %v249 = vld [vmem:[%s186 + $0x60] sm:$0xff]
        %v250 = vld [vmem:[%s186 + $0x68] sm:$0xff]
        %v251 = vld [vmem:[%s186 + $0x70] sm:$0xff]
        %v252 = vld [vmem:[%s186 + $0x78] sm:$0xff]
        %v253 = vld [vmem:[%s186 + $0x80] sm:$0xff]
        %v254 = vld [vmem:[%s186 + $0x88] sm:$0xff]
        %v255 = vld [vmem:[%s186 + $0x90] sm:$0xff]
        %v256 = vld [vmem:[%s186 + $0x98] sm:$0xff]
        %v257 = vld [vmem:[%s186 + $0xa0] sm:$0xff]
        %v258 = vld [vmem:[%s186 + $0xa8] sm:$0xff]
        %v259 = vld [vmem:[%s186 + $0xb0] sm:$0xff]
        %v260 = vld [vmem:[%s186 + $0xb8] sm:$0xff]
        %v261 = vld [vmem:[%s186 + $0xc0] sm:$0xff]
        %v262 = vld [vmem:[%s186 + $0xc8] sm:$0xff]
        %v263 = vld [vmem:[%s186 + $0xd0] sm:$0xff]
        %v264 = vld [vmem:[%s186 + $0xd8] sm:$0xff]
        %v265 = vld [vmem:[%s186 + $0xe0] sm:$0xff]
        %v266 = vld [vmem:[%s186 + $0xe8] sm:$0xff]
        %v267 = vld [vmem:[%s186 + $0xf0] sm:$0xff]
        %v268 = vld [vmem:[%s186 + $0xf8] sm:$0xff]
        %v269 = vld [vmem:[%s186 + $0x100] sm:$0xff]
        %v270 = vld [vmem:[%s186 + $0x108] sm:$0xff]
        %v271 = vld [vmem:[%s186 + $0x110] sm:$0xff]
        %v272 = vld [vmem:[%s186 + $0x118] sm:$0xff]
        %v273 = vld [vmem:[%s186 + $0x120] sm:$0xff]
        %v274 = vld [vmem:[%s186 + $0x128] sm:$0xff]
        %v275 = vld [vmem:[%s186 + $0x130] sm:$0xff]
        %v276 = vld [vmem:[%s186 + $0x138] sm:$0xff]
        %v277 = vld [vmem:[%s186 + $0x140] sm:$0xff]
        %v278 = vld [vmem:[%s186 + $0x148] sm:$0xff]
        %v279 = vld [vmem:[%s186 + $0x150] sm:$0xff]
        %v280 = vld [vmem:[%s186 + $0x158] sm:$0xff]
        %v281 = vld [vmem:[%s186 + $0x160] sm:$0xff]
        %v282 = vld [vmem:[%s186 + $0x168] sm:$0xff]
        %v283 = vld [vmem:[%s186 + $0x170] sm:$0xff]
        %v284 = vld [vmem:[%s186 + $0x178] sm:$0xff]
        %v285 = vld [vmem:[%s186 + $0x180] sm:$0xff]
        %v286 = vld [vmem:[%s186 + $0x188] sm:$0xff]
        %v287 = vld [vmem:[%s186 + $0x190] sm:$0xff]
        %v288 = vld [vmem:[%s186 + $0x198] sm:$0xff]
        %v289 = vld [vmem:[%s186 + $0x1a0] sm:$0xff]
        %v290 = vld [vmem:[%s186 + $0x1a8] sm:$0xff]
        %v291 = vld [vmem:[%s186 + $0x1b0] sm:$0xff]
        %v292 = vld [vmem:[%s186 + $0x1b8] sm:$0xff]
        %v293 = vld [vmem:[%s186 + $0x1c0] sm:$0xff]
        %v294 = vld [vmem:[%s186 + $0x1c8] sm:$0xff]
        %v295 = vld [vmem:[%s186 + $0x1d0] sm:$0xff]
        %v296 = vld [vmem:[%s186 + $0x1d8] sm:$0xff]
        %v297 = vld [vmem:[%s186 + $0x1e0] sm:$0xff]
        %v298 = vld [vmem:[%s186 + $0x1e8] sm:$0xff]
        %v299 = vld [vmem:[%s186 + $0x1f0] sm:$0xff]
        %v300 = vld [vmem:[%s186 + $0x1f8] sm:$0xff]
        %v301 = vld [vmem:[%s196] sm:$0xff]
        %v302 = vld [vmem:[%s196 + $0x8] sm:$0xff]
        %v303 = vld [vmem:[%s196 + $0x10] sm:$0xff]
        %v304 = vld [vmem:[%s196 + $0x18] sm:$0xff]
        %v305 = vld [vmem:[%s196 + $0x20] sm:$0xff]
        %v306 = vld [vmem:[%s196 + $0x28] sm:$0xff]
        %v307 = vld [vmem:[%s196 + $0x30] sm:$0xff]
        %v308 = vld [vmem:[%s196 + $0x38] sm:$0xff]
        %v309 = vld [vmem:[%s196 + $0x40] sm:$0xff]
        %v310 = vld [vmem:[%s196 + $0x48] sm:$0xff]
        %v311 = vld [vmem:[%s196 + $0x50] sm:$0xff]
        %v312 = vld [vmem:[%s196 + $0x58] sm:$0xff]
        %v313 = vld [vmem:[%s196 + $0x60] sm:$0xff]
        %v314 = vld [vmem:[%s196 + $0x68] sm:$0xff]
        %v315 = vld [vmem:[%s196 + $0x70] sm:$0xff]
        %v316 = vld [vmem:[%s196 + $0x78] sm:$0xff]
        %v317 = vld [vmem:[%s196 + $0x80] sm:$0xff]
        %v318 = vld [vmem:[%s196 + $0x88] sm:$0xff]
        %v319 = vld [vmem:[%s196 + $0x90] sm:$0xff]
        %v320 = vld [vmem:[%s196 + $0x98] sm:$0xff]
        %v321 = vld [vmem:[%s196 + $0xa0] sm:$0xff]
        %v322 = vld [vmem:[%s196 + $0xa8] sm:$0xff]
        %v323 = vld [vmem:[%s196 + $0xb0] sm:$0xff]
        %v324 = vld [vmem:[%s196 + $0xb8] sm:$0xff]
        %v325 = vld [vmem:[%s196 + $0xc0] sm:$0xff]
        %v326 = vld [vmem:[%s196 + $0xc8] sm:$0xff]
        %v327 = vld [vmem:[%s196 + $0xd0] sm:$0xff]
        %v328 = vld [vmem:[%s196 + $0xd8] sm:$0xff]
        %v329 = vld [vmem:[%s196 + $0xe0] sm:$0xff]
        %v330 = vld [vmem:[%s196 + $0xe8] sm:$0xff]
        %v331 = vld [vmem:[%s196 + $0xf0] sm:$0xff]
        %v332 = vld [vmem:[%s196 + $0xf8] sm:$0xff]
        %v333 = vld [vmem:[%s196 + $0x100] sm:$0xff]
        %v334 = vld [vmem:[%s196 + $0x108] sm:$0xff]
        %v335 = vld [vmem:[%s196 + $0x110] sm:$0xff]
        %v336 = vld [vmem:[%s196 + $0x118] sm:$0xff]
        %v337 = vld [vmem:[%s196 + $0x120] sm:$0xff]
        %v338 = vld [vmem:[%s196 + $0x128] sm:$0xff]
        %v339 = vld [vmem:[%s196 + $0x130] sm:$0xff]
        %v340 = vld [vmem:[%s196 + $0x138] sm:$0xff]
        %v341 = vld [vmem:[%s196 + $0x140] sm:$0xff]
        %v342 = vld [vmem:[%s196 + $0x148] sm:$0xff]
        %v343 = vld [vmem:[%s196 + $0x150] sm:$0xff]
        %v344 = vld [vmem:[%s196 + $0x158] sm:$0xff]
        %v345 = vld [vmem:[%s196 + $0x160] sm:$0xff]
        %v346 = vld [vmem:[%s196 + $0x168] sm:$0xff]
        %v347 = vld [vmem:[%s196 + $0x170] sm:$0xff]
        %v348 = vld [vmem:[%s196 + $0x178] sm:$0xff]
        %v349 = vld [vmem:[%s196 + $0x180] sm:$0xff]
        %v350 = vld [vmem:[%s196 + $0x188] sm:$0xff]
        %v351 = vld [vmem:[%s196 + $0x190] sm:$0xff]
        %v352 = vld [vmem:[%s196 + $0x198] sm:$0xff]
        %v353 = vld [vmem:[%s196 + $0x1a0] sm:$0xff]
        %v354 = vld [vmem:[%s196 + $0x1a8] sm:$0xff]
        %v355 = vld [vmem:[%s196 + $0x1b0] sm:$0xff]
        %v356 = vld [vmem:[%s196 + $0x1b8] sm:$0xff]
        %v357 = vld [vmem:[%s196 + $0x1c0] sm:$0xff]
        %v358 = vld [vmem:[%s196 + $0x1c8] sm:$0xff]
        %v359 = vld [vmem:[%s196 + $0x1d0] sm:$0xff]
        %v360 = vld [vmem:[%s196 + $0x1d8] sm:$0xff]
        %v361 = vld [vmem:[%s196 + $0x1e0] sm:$0xff]
        %v362 = vld [vmem:[%s196 + $0x1e8] sm:$0xff]
        %v363 = vld [vmem:[%s196 + $0x1f0] sm:$0xff]
        %v364 = vld [vmem:[%s196 + $0x1f8] sm:$0xff]
        %v365 = vadd.f32 %v237, %v238
        %v366 = vadd.f32 %v365, %v239
        %v367 = vadd.f32 %v366, %v240
        %v368 = vadd.f32 %v367, %v241
        %v369 = vadd.f32 %v368, %v242
        %v370 = vadd.f32 %v369, %v243
        %v371 = vadd.f32 %v370, %v244
        %v372 = vadd.f32 %v371, %v245
        %v373 = vadd.f32 %v372, %v246
        %v374 = vadd.f32 %v373, %v247
        %v375 = vadd.f32 %v374, %v248
        %v376 = vadd.f32 %v375, %v249
        %v377 = vadd.f32 %v376, %v250
        %v378 = vadd.f32 %v377, %v251
        %v379 = vadd.f32 %v378, %v252
        %v380 = vadd.f32 %v379, %v253
        %v381 = vadd.f32 %v380, %v254
        %v382 = vadd.f32 %v381, %v255
        %v383 = vadd.f32 %v382, %v256
        %v384 = vadd.f32 %v383, %v257
        %v385 = vadd.f32 %v384, %v258
        %v386 = vadd.f32 %v385, %v259
        %v387 = vadd.f32 %v386, %v260
        %v388 = vadd.f32 %v387, %v261
        %v389 = vadd.f32 %v388, %v262
        %v390 = vadd.f32 %v389, %v263
        %v391 = vadd.f32 %v390, %v264
        %v392 = vadd.f32 %v391, %v265
        %v393 = vadd.f32 %v392, %v266
        %v394 = vadd.f32 %v393, %v267
        %v395 = vadd.f32 %v394, %v268
        %v396 = vadd.f32 %v395, %v269
        %v397 = vadd.f32 %v396, %v270
        %v398 = vadd.f32 %v397, %v271
        %v399 = vadd.f32 %v398, %v272
        %v400 = vadd.f32 %v399, %v273
        %v401 = vadd.f32 %v400, %v274
        %v402 = vadd.f32 %v401, %v275
        %v403 = vadd.f32 %v402, %v276
        %v404 = vadd.f32 %v403, %v277
        %v405 = vadd.f32 %v404, %v278
        %v406 = vadd.f32 %v405, %v279
        %v407 = vadd.f32 %v406, %v280
        %v408 = vadd.f32 %v407, %v281
        %v409 = vadd.f32 %v408, %v282
        %v410 = vadd.f32 %v409, %v283
        %v411 = vadd.f32 %v410, %v284
        %v412 = vadd.f32 %v411, %v285
        %v413 = vadd.f32 %v412, %v286
        %v414 = vadd.f32 %v413, %v287
        %v415 = vadd.f32 %v414, %v288
        %v416 = vadd.f32 %v415, %v289
        %v417 = vadd.f32 %v416, %v290
        %v418 = vadd.f32 %v417, %v291
        %v419 = vadd.f32 %v418, %v292
        %v420 = vadd.f32 %v419, %v293
        %v421 = vadd.f32 %v420, %v294
        %v422 = vadd.f32 %v421, %v295
        %v423 = vadd.f32 %v422, %v296
        %v424 = vadd.f32 %v423, %v297
        %v425 = vadd.f32 %v424, %v298
        %v426 = vadd.f32 %v425, %v299
        %v427 = vadd.f32 %v426, %v300
        %v428 = vadd.f32 %v427, 0.0
        %v429 = vadd.f32 %v301, %v302
        %v430 = vadd.f32 %v429, %v303
        %v431 = vadd.f32 %v430, %v304
        %v432 = vadd.f32 %v431, %v305
        %v433 = vadd.f32 %v432, %v306
        %v434 = vadd.f32 %v433, %v307
        %v435 = vadd.f32 %v434, %v308
        %v436 = vadd.f32 %v435, %v309
        %v437 = vadd.f32 %v436, %v310
        %v438 = vadd.f32 %v437, %v311
        %v439 = vadd.f32 %v438, %v312
        %v440 = vadd.f32 %v439, %v313
        %v441 = vadd.f32 %v440, %v314
        %v442 = vadd.f32 %v441, %v315
        %v443 = vadd.f32 %v442, %v316
        %v444 = vadd.f32 %v443, %v317
        %v445 = vadd.f32 %v444, %v318
        %v446 = vadd.f32 %v445, %v319
        %v447 = vadd.f32 %v446, %v320
        %v448 = vadd.f32 %v447, %v321
        %v449 = vadd.f32 %v448, %v322
        %v450 = vadd.f32 %v449, %v323
        %v451 = vadd.f32 %v450, %v324
        %v452 = vadd.f32 %v451, %v325
        %v453 = vadd.f32 %v452, %v326
        %v454 = vadd.f32 %v453, %v327
        %v455 = vadd.f32 %v454, %v328
        %v456 = vadd.f32 %v455, %v329
        %v457 = vadd.f32 %v456, %v330
        %v458 = vadd.f32 %v457, %v331
        %v459 = vadd.f32 %v458, %v332
        %v460 = vadd.f32 %v459, %v333
        %v461 = vadd.f32 %v460, %v334
        %v462 = vadd.f32 %v461, %v335
        %v463 = vadd.f32 %v462, %v336
        %v464 = vadd.f32 %v463, %v337
        %v465 = vadd.f32 %v464, %v338
        %v466 = vadd.f32 %v465, %v339
        %v467 = vadd.f32 %v466, %v340
        %v468 = vadd.f32 %v467, %v341
        %v469 = vadd.f32 %v468, %v342
        %v470 = vadd.f32 %v469, %v343
        %v471 = vadd.f32 %v470, %v344
        %v472 = vadd.f32 %v471, %v345
        %v473 = vadd.f32 %v472, %v346
        %v474 = vadd.f32 %v473, %v347
        %v475 = vadd.f32 %v474, %v348
        %v476 = vadd.f32 %v475, %v349
        %v477 = vadd.f32 %v476, %v350
        %v478 = vadd.f32 %v477, %v351
        %v479 = vadd.f32 %v478, %v352
        %v480 = vadd.f32 %v479, %v353
        %v481 = vadd.f32 %v480, %v354
        %v482 = vadd.f32 %v481, %v355
        %v483 = vadd.f32 %v482, %v356
        %v484 = vadd.f32 %v483, %v357
        %v485 = vadd.f32 %v484, %v358
        %v486 = vadd.f32 %v485, %v359
        %v487 = vadd.f32 %v486, %v360
        %v488 = vadd.f32 %v487, %v361
        %v489 = vadd.f32 %v488, %v362
        %v490 = vadd.f32 %v489, %v363
        %v491 = vadd.f32 %v490, %v364
        %v492 = vadd.f32 %v491, 0.0
        %v493 = vmul.f32 %v237, %v237
        %v494 = vmul.f32 %v238, %v238
        %v495 = vmul.f32 %v239, %v239
        %v496 = vmul.f32 %v240, %v240
        %v497 = vmul.f32 %v241, %v241
        %v498 = vmul.f32 %v242, %v242
        %v499 = vmul.f32 %v243, %v243
        %v500 = vmul.f32 %v244, %v244
        %v501 = vmul.f32 %v245, %v245
        %v502 = vmul.f32 %v246, %v246
        %v503 = vmul.f32 %v247, %v247
        %v504 = vmul.f32 %v248, %v248
        %v505 = vmul.f32 %v249, %v249
        %v506 = vmul.f32 %v250, %v250
        %v507 = vmul.f32 %v251, %v251
        %v508 = vmul.f32 %v252, %v252
        %v509 = vmul.f32 %v253, %v253
        %v510 = vmul.f32 %v254, %v254
        %v511 = vmul.f32 %v255, %v255
        %v512 = vmul.f32 %v256, %v256
        %v513 = vmul.f32 %v257, %v257
        %v514 = vmul.f32 %v258, %v258
        %v515 = vmul.f32 %v259, %v259
        %v516 = vmul.f32 %v260, %v260
        %v517 = vmul.f32 %v261, %v261
        %v518 = vmul.f32 %v262, %v262
        %v519 = vmul.f32 %v263, %v263
        %v520 = vmul.f32 %v264, %v264
        %v521 = vmul.f32 %v265, %v265
        %v522 = vmul.f32 %v266, %v266
        %v523 = vmul.f32 %v267, %v267
        %v524 = vmul.f32 %v268, %v268
        %v525 = vmul.f32 %v269, %v269
        %v526 = vmul.f32 %v270, %v270
        %v527 = vmul.f32 %v271, %v271
        %v528 = vmul.f32 %v272, %v272
        %v529 = vmul.f32 %v273, %v273
        %v530 = vmul.f32 %v274, %v274
        %v531 = vmul.f32 %v275, %v275
        %v532 = vmul.f32 %v276, %v276
        %v533 = vmul.f32 %v277, %v277
        %v534 = vmul.f32 %v278, %v278
        %v535 = vmul.f32 %v279, %v279
        %v536 = vmul.f32 %v280, %v280
        %v537 = vmul.f32 %v281, %v281
        %v538 = vmul.f32 %v282, %v282
        %v539 = vmul.f32 %v283, %v283
        %v540 = vmul.f32 %v284, %v284
        %v541 = vmul.f32 %v285, %v285
        %v542 = vmul.f32 %v286, %v286
        %v543 = vmul.f32 %v287, %v287
        %v544 = vmul.f32 %v288, %v288
        %v545 = vmul.f32 %v289, %v289
        %v546 = vmul.f32 %v290, %v290
        %v547 = vmul.f32 %v291, %v291
        %v548 = vmul.f32 %v292, %v292
        %v549 = vmul.f32 %v293, %v293
        %v550 = vmul.f32 %v294, %v294
        %v551 = vmul.f32 %v295, %v295
        %v552 = vmul.f32 %v296, %v296
        %v553 = vmul.f32 %v297, %v297
        %v554 = vmul.f32 %v298, %v298
        %v555 = vmul.f32 %v299, %v299
        %v556 = vmul.f32 %v300, %v300
        %v557 = vadd.f32 %v493, %v494
        %v558 = vadd.f32 %v557, %v495
        %v559 = vadd.f32 %v558, %v496
        %v560 = vadd.f32 %v559, %v497
        %v561 = vadd.f32 %v560, %v498
        %v562 = vadd.f32 %v561, %v499
        %v563 = vadd.f32 %v562, %v500
        %v564 = vadd.f32 %v563, %v501
        %v565 = vadd.f32 %v564, %v502
        %v566 = vadd.f32 %v565, %v503
        %v567 = vadd.f32 %v566, %v504
        %v568 = vadd.f32 %v567, %v505
        %v569 = vadd.f32 %v568, %v506
        %v570 = vadd.f32 %v569, %v507
        %v571 = vadd.f32 %v570, %v508
        %v572 = vadd.f32 %v571, %v509
        %v573 = vadd.f32 %v572, %v510
        %v574 = vadd.f32 %v573, %v511
        %v575 = vadd.f32 %v574, %v512
        %v576 = vadd.f32 %v575, %v513
        %v577 = vadd.f32 %v576, %v514
        %v578 = vadd.f32 %v577, %v515
        %v579 = vadd.f32 %v578, %v516
        %v580 = vadd.f32 %v579, %v517
        %v581 = vadd.f32 %v580, %v518
        %v582 = vadd.f32 %v581, %v519
        %v583 = vadd.f32 %v582, %v520
        %v584 = vadd.f32 %v583, %v521
        %v585 = vadd.f32 %v584, %v522
        %v586 = vadd.f32 %v585, %v523
        %v587 = vadd.f32 %v586, %v524
        %v588 = vadd.f32 %v587, %v525
        %v589 = vadd.f32 %v588, %v526
        %v590 = vadd.f32 %v589, %v527
        %v591 = vadd.f32 %v590, %v528
        %v592 = vadd.f32 %v591, %v529
        %v593 = vadd.f32 %v592, %v530
        %v594 = vadd.f32 %v593, %v531
        %v595 = vadd.f32 %v594, %v532
        %v596 = vadd.f32 %v595, %v533
        %v597 = vadd.f32 %v596, %v534
        %v598 = vadd.f32 %v597, %v535
        %v599 = vadd.f32 %v598, %v536
        %v600 = vadd.f32 %v599, %v537
        %v601 = vadd.f32 %v600, %v538
        %v602 = vadd.f32 %v601, %v539
        %v603 = vadd.f32 %v602, %v540
        %v604 = vadd.f32 %v603, %v541
        %v605 = vadd.f32 %v604, %v542
        %v606 = vadd.f32 %v605, %v543
        %v607 = vadd.f32 %v606, %v544
        %v608 = vadd.f32 %v607, %v545
        %v609 = vadd.f32 %v608, %v546
        %v610 = vadd.f32 %v609, %v547
        %v611 = vadd.f32 %v610, %v548
        %v612 = vadd.f32 %v611, %v549
        %v613 = vadd.f32 %v612, %v550
        %v614 = vadd.f32 %v613, %v551
        %v615 = vadd.f32 %v614, %v552
        %v616 = vadd.f32 %v615, %v553
        %v617 = vadd.f32 %v616, %v554
        %v618 = vadd.f32 %v617, %v555
        %v619 = vadd.f32 %v618, %v556
        %v620 = vadd.f32 %v619, 0.0
        %v621 = vmul.f32 %v301, %v301
        %v622 = vmul.f32 %v302, %v302
        %v623 = vmul.f32 %v303, %v303
        %v624 = vmul.f32 %v304, %v304
        %v625 = vmul.f32 %v305, %v305
        %v626 = vmul.f32 %v306, %v306
        %v627 = vmul.f32 %v307, %v307
        %v628 = vmul.f32 %v308, %v308
        %v629 = vmul.f32 %v309, %v309
        %v630 = vmul.f32 %v310, %v310
        %v631 = vmul.f32 %v311, %v311
        %v632 = vmul.f32 %v312, %v312
        %v633 = vmul.f32 %v313, %v313
        %v634 = vmul.f32 %v314, %v314
        %v635 = vmul.f32 %v315, %v315
        %v636 = vmul.f32 %v316, %v316
        %v637 = vmul.f32 %v317, %v317
        %v638 = vmul.f32 %v318, %v318
        %v639 = vmul.f32 %v319, %v319
        %v640 = vmul.f32 %v320, %v320
        %v641 = vmul.f32 %v321, %v321
        %v642 = vmul.f32 %v322, %v322
        %v643 = vmul.f32 %v323, %v323
        %v644 = vmul.f32 %v324, %v324
        %v645 = vmul.f32 %v325, %v325
        %v646 = vmul.f32 %v326, %v326
        %v647 = vmul.f32 %v327, %v327
        %v648 = vmul.f32 %v328, %v328
        %v649 = vmul.f32 %v329, %v329
        %v650 = vmul.f32 %v330, %v330
        %v651 = vmul.f32 %v331, %v331
        %v652 = vmul.f32 %v332, %v332
        %v653 = vmul.f32 %v333, %v333
        %v654 = vmul.f32 %v334, %v334
        %v655 = vmul.f32 %v335, %v335
        %v656 = vmul.f32 %v336, %v336
        %v657 = vmul.f32 %v337, %v337
        %v658 = vmul.f32 %v338, %v338
        %v659 = vmul.f32 %v339, %v339
        %v660 = vmul.f32 %v340, %v340
        %v661 = vmul.f32 %v341, %v341
        %v662 = vmul.f32 %v342, %v342
        %v663 = vmul.f32 %v343, %v343
        %v664 = vmul.f32 %v344, %v344
        %v665 = vmul.f32 %v345, %v345
        %v666 = vmul.f32 %v346, %v346
        %v667 = vmul.f32 %v347, %v347
        %v668 = vmul.f32 %v348, %v348
        %v669 = vmul.f32 %v349, %v349
        %v670 = vmul.f32 %v350, %v350
        %v671 = vmul.f32 %v351, %v351
        %v672 = vmul.f32 %v352, %v352
        %v673 = vmul.f32 %v353, %v353
        %v674 = vmul.f32 %v354, %v354
        %v675 = vmul.f32 %v355, %v355
        %v676 = vmul.f32 %v356, %v356
        %v677 = vmul.f32 %v357, %v357
        %v678 = vmul.f32 %v358, %v358
        %v679 = vmul.f32 %v359, %v359
        %v680 = vmul.f32 %v360, %v360
        %v681 = vmul.f32 %v361, %v361
        %v682 = vmul.f32 %v362, %v362
        %v683 = vmul.f32 %v363, %v363
        %v684 = vmul.f32 %v364, %v364
        %v685 = vadd.f32 %v621, %v622
        %v686 = vadd.f32 %v685, %v623
        %v687 = vadd.f32 %v686, %v624
        %v688 = vadd.f32 %v687, %v625
        %v689 = vadd.f32 %v688, %v626
        %v690 = vadd.f32 %v689, %v627
        %v691 = vadd.f32 %v690, %v628
        %v692 = vadd.f32 %v691, %v629
        %v693 = vadd.f32 %v692, %v630
        %v694 = vadd.f32 %v693, %v631
        %v695 = vadd.f32 %v694, %v632
        %v696 = vadd.f32 %v695, %v633
        %v697 = vadd.f32 %v696, %v634
        %v698 = vadd.f32 %v697, %v635
        %v699 = vadd.f32 %v698, %v636
        %v700 = vadd.f32 %v699, %v637
        %v701 = vadd.f32 %v700, %v638
        %v702 = vadd.f32 %v701, %v639
        %v703 = vadd.f32 %v702, %v640
        %v704 = vadd.f32 %v703, %v641
        %v705 = vadd.f32 %v704, %v642
        %v706 = vadd.f32 %v705, %v643
        %v707 = vadd.f32 %v706, %v644
        %v708 = vadd.f32 %v707, %v645
        %v709 = vadd.f32 %v708, %v646
        %v710 = vadd.f32 %v709, %v647
        %v711 = vadd.f32 %v710, %v648
        %v712 = vadd.f32 %v711, %v649
        %v713 = vadd.f32 %v712, %v650
        %v714 = vadd.f32 %v713, %v651
        %v715 = vadd.f32 %v714, %v652
        %v716 = vadd.f32 %v715, %v653
        %v717 = vadd.f32 %v716, %v654
        %v718 = vadd.f32 %v717, %v655
        %v719 = vadd.f32 %v718, %v656
        %v720 = vadd.f32 %v719, %v657
        %v721 = vadd.f32 %v720, %v658
        %v722 = vadd.f32 %v721, %v659
        %v723 = vadd.f32 %v722, %v660
        %v724 = vadd.f32 %v723, %v661
        %v725 = vadd.f32 %v724, %v662
        %v726 = vadd.f32 %v725, %v663
        %v727 = vadd.f32 %v726, %v664
        %v728 = vadd.f32 %v727, %v665
        %v729 = vadd.f32 %v728, %v666
        %v730 = vadd.f32 %v729, %v667
        %v731 = vadd.f32 %v730, %v668
        %v732 = vadd.f32 %v731, %v669
        %v733 = vadd.f32 %v732, %v670
        %v734 = vadd.f32 %v733, %v671
        %v735 = vadd.f32 %v734, %v672
        %v736 = vadd.f32 %v735, %v673
        %v737 = vadd.f32 %v736, %v674
        %v738 = vadd.f32 %v737, %v675
        %v739 = vadd.f32 %v738, %v676
        %v740 = vadd.f32 %v739, %v677
        %v741 = vadd.f32 %v740, %v678
        %v742 = vadd.f32 %v741, %v679
        %v743 = vadd.f32 %v742, %v680
        %v744 = vadd.f32 %v743, %v681
        %v745 = vadd.f32 %v744, %v682
        %v746 = vadd.f32 %v745, %v683
        %v747 = vadd.f32 %v746, %v684
        %v748 = vadd.f32 %v747, 0.0
        %v749 = vmul.f32 %v237, %v301
        %v750 = vmul.f32 %v238, %v302
        %v751 = vmul.f32 %v239, %v303
        %v752 = vmul.f32 %v240, %v304
        %v753 = vmul.f32 %v241, %v305
        %v754 = vmul.f32 %v242, %v306
        %v755 = vmul.f32 %v243, %v307
        %v756 = vmul.f32 %v244, %v308
        %v757 = vmul.f32 %v245, %v309
        %v758 = vmul.f32 %v246, %v310
        %v759 = vmul.f32 %v247, %v311
        %v760 = vmul.f32 %v248, %v312
        %v761 = vmul.f32 %v249, %v313
        %v762 = vmul.f32 %v250, %v314
        %v763 = vmul.f32 %v251, %v315
        %v764 = vmul.f32 %v252, %v316
        %v765 = vmul.f32 %v253, %v317
        %v766 = vmul.f32 %v254, %v318
        %v767 = vmul.f32 %v255, %v319
        %v768 = vmul.f32 %v256, %v320
        %v769 = vmul.f32 %v257, %v321
        %v770 = vmul.f32 %v258, %v322
        %v771 = vmul.f32 %v259, %v323
        %v772 = vmul.f32 %v260, %v324
        %v773 = vmul.f32 %v261, %v325
        %v774 = vmul.f32 %v262, %v326
        %v775 = vmul.f32 %v263, %v327
        %v776 = vmul.f32 %v264, %v328
        %v777 = vmul.f32 %v265, %v329
        %v778 = vmul.f32 %v266, %v330
        %v779 = vmul.f32 %v267, %v331
        %v780 = vmul.f32 %v268, %v332
        %v781 = vmul.f32 %v269, %v333
        %v782 = vmul.f32 %v270, %v334
        %v783 = vmul.f32 %v271, %v335
        %v784 = vmul.f32 %v272, %v336
        %v785 = vmul.f32 %v273, %v337
        %v786 = vmul.f32 %v274, %v338
        %v787 = vmul.f32 %v275, %v339
        %v788 = vmul.f32 %v276, %v340
        %v789 = vmul.f32 %v277, %v341
        %v790 = vmul.f32 %v278, %v342
        %v791 = vmul.f32 %v279, %v343
        %v792 = vmul.f32 %v280, %v344
        %v793 = vmul.f32 %v281, %v345
        %v794 = vmul.f32 %v282, %v346
        %v795 = vmul.f32 %v283, %v347
        %v796 = vmul.f32 %v284, %v348
        %v797 = vmul.f32 %v285, %v349
        %v798 = vmul.f32 %v286, %v350
        %v799 = vmul.f32 %v287, %v351
        %v800 = vmul.f32 %v288, %v352
        %v801 = vmul.f32 %v289, %v353
        %v802 = vmul.f32 %v290, %v354
        %v803 = vmul.f32 %v291, %v355
        %v804 = vmul.f32 %v292, %v356
        %v805 = vmul.f32 %v293, %v357
        %v806 = vmul.f32 %v294, %v358
        %v807 = vmul.f32 %v295, %v359
        %v808 = vmul.f32 %v296, %v360
        %v809 = vmul.f32 %v297, %v361
        %v810 = vmul.f32 %v298, %v362
        %v811 = vmul.f32 %v299, %v363
        %v812 = vmul.f32 %v300, %v364
        %v813 = vadd.f32 %v749, %v750
        %v814 = vadd.f32 %v813, %v751
        %v815 = vadd.f32 %v814, %v752
        %v816 = vadd.f32 %v815, %v753
        %v817 = vadd.f32 %v816, %v754
        %v818 = vadd.f32 %v817, %v755
        %v819 = vadd.f32 %v818, %v756
        %v820 = vadd.f32 %v819, %v757
        %v821 = vadd.f32 %v820, %v758
        %v822 = vadd.f32 %v821, %v759
        %v823 = vadd.f32 %v822, %v760
        %v824 = vadd.f32 %v823, %v761
        %v825 = vadd.f32 %v824, %v762
        %v826 = vadd.f32 %v825, %v763
        %v827 = vadd.f32 %v826, %v764
        %v828 = vadd.f32 %v827, %v765
        %v829 = vadd.f32 %v828, %v766
        %v830 = vadd.f32 %v829, %v767
        %v831 = vadd.f32 %v830, %v768
        %v832 = vadd.f32 %v831, %v769
        %v833 = vadd.f32 %v832, %v770
        %v834 = vadd.f32 %v833, %v771
        %v835 = vadd.f32 %v834, %v772
        %v836 = vadd.f32 %v835, %v773
        %v837 = vadd.f32 %v836, %v774
        %v838 = vadd.f32 %v837, %v775
        %v839 = vadd.f32 %v838, %v776
        %v840 = vadd.f32 %v839, %v777
        %v841 = vadd.f32 %v840, %v778
        %v842 = vadd.f32 %v841, %v779
        %v843 = vadd.f32 %v842, %v780
        %v844 = vadd.f32 %v843, %v781
        %v845 = vadd.f32 %v844, %v782
        %v846 = vadd.f32 %v845, %v783
        %v847 = vadd.f32 %v846, %v784
        %v848 = vadd.f32 %v847, %v785
        %v849 = vadd.f32 %v848, %v786
        %v850 = vadd.f32 %v849, %v787
        %v851 = vadd.f32 %v850, %v788
        %v852 = vadd.f32 %v851, %v789
        %v853 = vadd.f32 %v852, %v790
        %v854 = vadd.f32 %v853, %v791
        %v855 = vadd.f32 %v854, %v792
        %v856 = vadd.f32 %v855, %v793
        %v857 = vadd.f32 %v856, %v794
        %v858 = vadd.f32 %v857, %v795
        %v859 = vadd.f32 %v858, %v796
        %v860 = vadd.f32 %v859, %v797
        %v861 = vadd.f32 %v860, %v798
        %v862 = vadd.f32 %v861, %v799
        %v863 = vadd.f32 %v862, %v800
        %v864 = vadd.f32 %v863, %v801
        %v865 = vadd.f32 %v864, %v802
        %v866 = vadd.f32 %v865, %v803
        %v867 = vadd.f32 %v866, %v804
        %v868 = vadd.f32 %v867, %v805
        %v869 = vadd.f32 %v868, %v806
        %v870 = vadd.f32 %v869, %v807
        %v871 = vadd.f32 %v870, %v808
        %v872 = vadd.f32 %v871, %v809
        %v873 = vadd.f32 %v872, %v810
        %v874 = vadd.f32 %v873, %v811
        %v875 = vadd.f32 %v874, %v812
        %v876 = vadd.f32 %v875, 0.0
        %s877 = scalar_lea.vmem %s186, 512 [#allocation7]
        %v878 = vld [vmem:[%s877] sm:$0xff]
        %v879 = vld [vmem:[%s877 + $0x8] sm:$0xff]
        %v880 = vld [vmem:[%s877 + $0x10] sm:$0xff]
        %v881 = vld [vmem:[%s877 + $0x18] sm:$0xff]
        %v882 = vld [vmem:[%s877 + $0x20] sm:$0xff]
        %v883 = vld [vmem:[%s877 + $0x28] sm:$0xff]
        %v884 = vld [vmem:[%s877 + $0x30] sm:$0xff]
        %v885 = vld [vmem:[%s877 + $0x38] sm:$0xff]
        %v886 = vld [vmem:[%s877 + $0x40] sm:$0xff]
        %v887 = vld [vmem:[%s877 + $0x48] sm:$0xff]
        %v888 = vld [vmem:[%s877 + $0x50] sm:$0xff]
        %v889 = vld [vmem:[%s877 + $0x58] sm:$0xff]
        %v890 = vld [vmem:[%s877 + $0x60] sm:$0xff]
        %v891 = vld [vmem:[%s877 + $0x68] sm:$0xff]
        %v892 = vld [vmem:[%s877 + $0x70] sm:$0xff]
        %v893 = vld [vmem:[%s877 + $0x78] sm:$0xff]
        %v894 = vld [vmem:[%s877 + $0x80] sm:$0xff]
        %v895 = vld [vmem:[%s877 + $0x88] sm:$0xff]
        %v896 = vld [vmem:[%s877 + $0x90] sm:$0xff]
        %v897 = vld [vmem:[%s877 + $0x98] sm:$0xff]
        %v898 = vld [vmem:[%s877 + $0xa0] sm:$0xff]
        %v899 = vld [vmem:[%s877 + $0xa8] sm:$0xff]
        %v900 = vld [vmem:[%s877 + $0xb0] sm:$0xff]
        %v901 = vld [vmem:[%s877 + $0xb8] sm:$0xff]
        %v902 = vld [vmem:[%s877 + $0xc0] sm:$0xff]
        %v903 = vld [vmem:[%s877 + $0xc8] sm:$0xff]
        %v904 = vld [vmem:[%s877 + $0xd0] sm:$0xff]
        %v905 = vld [vmem:[%s877 + $0xd8] sm:$0xff]
        %v906 = vld [vmem:[%s877 + $0xe0] sm:$0xff]
        %v907 = vld [vmem:[%s877 + $0xe8] sm:$0xff]
        %v908 = vld [vmem:[%s877 + $0xf0] sm:$0xff]
        %v909 = vld [vmem:[%s877 + $0xf8] sm:$0xff]
        %v910 = vld [vmem:[%s877 + $0x100] sm:$0xff]
        %v911 = vld [vmem:[%s877 + $0x108] sm:$0xff]
        %v912 = vld [vmem:[%s877 + $0x110] sm:$0xff]
        %v913 = vld [vmem:[%s877 + $0x118] sm:$0xff]
        %v914 = vld [vmem:[%s877 + $0x120] sm:$0xff]
        %v915 = vld [vmem:[%s877 + $0x128] sm:$0xff]
        %v916 = vld [vmem:[%s877 + $0x130] sm:$0xff]
        %v917 = vld [vmem:[%s877 + $0x138] sm:$0xff]
        %v918 = vld [vmem:[%s877 + $0x140] sm:$0xff]
        %v919 = vld [vmem:[%s877 + $0x148] sm:$0xff]
        %v920 = vld [vmem:[%s877 + $0x150] sm:$0xff]
        %v921 = vld [vmem:[%s877 + $0x158] sm:$0xff]
        %v922 = vld [vmem:[%s877 + $0x160] sm:$0xff]
        %v923 = vld [vmem:[%s877 + $0x168] sm:$0xff]
        %v924 = vld [vmem:[%s877 + $0x170] sm:$0xff]
        %v925 = vld [vmem:[%s877 + $0x178] sm:$0xff]
        %v926 = vld [vmem:[%s877 + $0x180] sm:$0xff]
        %v927 = vld [vmem:[%s877 + $0x188] sm:$0xff]
        %v928 = vld [vmem:[%s877 + $0x190] sm:$0xff]
        %v929 = vld [vmem:[%s877 + $0x198] sm:$0xff]
        %v930 = vld [vmem:[%s877 + $0x1a0] sm:$0xff]
        %v931 = vld [vmem:[%s877 + $0x1a8] sm:$0xff]
        %v932 = vld [vmem:[%s877 + $0x1b0] sm:$0xff]
        %v933 = vld [vmem:[%s877 + $0x1b8] sm:$0xff]
        %v934 = vld [vmem:[%s877 + $0x1c0] sm:$0xff]
        %v935 = vld [vmem:[%s877 + $0x1c8] sm:$0xff]
        %v936 = vld [vmem:[%s877 + $0x1d0] sm:$0xff]
        %v937 = vld [vmem:[%s877 + $0x1d8] sm:$0xff]
        %v938 = vld [vmem:[%s877 + $0x1e0] sm:$0xff]
        %v939 = vld [vmem:[%s877 + $0x1e8] sm:$0xff]
        %v940 = vld [vmem:[%s877 + $0x1f0] sm:$0xff]
        %v941 = vld [vmem:[%s877 + $0x1f8] sm:$0xff]
        %s942 = scalar_lea.vmem %s196, 512 [#allocation9]
        %v943 = vld [vmem:[%s942] sm:$0xff]
        %v944 = vld [vmem:[%s942 + $0x8] sm:$0xff]
        %v945 = vld [vmem:[%s942 + $0x10] sm:$0xff]
        %v946 = vld [vmem:[%s942 + $0x18] sm:$0xff]
        %v947 = vld [vmem:[%s942 + $0x20] sm:$0xff]
        %v948 = vld [vmem:[%s942 + $0x28] sm:$0xff]
        %v949 = vld [vmem:[%s942 + $0x30] sm:$0xff]
        %v950 = vld [vmem:[%s942 + $0x38] sm:$0xff]
        %v951 = vld [vmem:[%s942 + $0x40] sm:$0xff]
        %v952 = vld [vmem:[%s942 + $0x48] sm:$0xff]
        %v953 = vld [vmem:[%s942 + $0x50] sm:$0xff]
        %v954 = vld [vmem:[%s942 + $0x58] sm:$0xff]
        %v955 = vld [vmem:[%s942 + $0x60] sm:$0xff]
        %v956 = vld [vmem:[%s942 + $0x68] sm:$0xff]
        %v957 = vld [vmem:[%s942 + $0x70] sm:$0xff]
        %v958 = vld [vmem:[%s942 + $0x78] sm:$0xff]
        %v959 = vld [vmem:[%s942 + $0x80] sm:$0xff]
        %v960 = vld [vmem:[%s942 + $0x88] sm:$0xff]
        %v961 = vld [vmem:[%s942 + $0x90] sm:$0xff]
        %v962 = vld [vmem:[%s942 + $0x98] sm:$0xff]
        %v963 = vld [vmem:[%s942 + $0xa0] sm:$0xff]
        %v964 = vld [vmem:[%s942 + $0xa8] sm:$0xff]
        %v965 = vld [vmem:[%s942 + $0xb0] sm:$0xff]
        %v966 = vld [vmem:[%s942 + $0xb8] sm:$0xff]
        %v967 = vld [vmem:[%s942 + $0xc0] sm:$0xff]
        %v968 = vld [vmem:[%s942 + $0xc8] sm:$0xff]
        %v969 = vld [vmem:[%s942 + $0xd0] sm:$0xff]
        %v970 = vld [vmem:[%s942 + $0xd8] sm:$0xff]
        %v971 = vld [vmem:[%s942 + $0xe0] sm:$0xff]
        %v972 = vld [vmem:[%s942 + $0xe8] sm:$0xff]
        %v973 = vld [vmem:[%s942 + $0xf0] sm:$0xff]
        %v974 = vld [vmem:[%s942 + $0xf8] sm:$0xff]
        %v975 = vld [vmem:[%s942 + $0x100] sm:$0xff]
        %v976 = vld [vmem:[%s942 + $0x108] sm:$0xff]
        %v977 = vld [vmem:[%s942 + $0x110] sm:$0xff]
        %v978 = vld [vmem:[%s942 + $0x118] sm:$0xff]
        %v979 = vld [vmem:[%s942 + $0x120] sm:$0xff]
        %v980 = vld [vmem:[%s942 + $0x128] sm:$0xff]
        %v981 = vld [vmem:[%s942 + $0x130] sm:$0xff]
        %v982 = vld [vmem:[%s942 + $0x138] sm:$0xff]
        %v983 = vld [vmem:[%s942 + $0x140] sm:$0xff]
        %v984 = vld [vmem:[%s942 + $0x148] sm:$0xff]
        %v985 = vld [vmem:[%s942 + $0x150] sm:$0xff]
        %v986 = vld [vmem:[%s942 + $0x158] sm:$0xff]
        %v987 = vld [vmem:[%s942 + $0x160] sm:$0xff]
        %v988 = vld [vmem:[%s942 + $0x168] sm:$0xff]
        %v989 = vld [vmem:[%s942 + $0x170] sm:$0xff]
        %v990 = vld [vmem:[%s942 + $0x178] sm:$0xff]
        %v991 = vld [vmem:[%s942 + $0x180] sm:$0xff]
        %v992 = vld [vmem:[%s942 + $0x188] sm:$0xff]
        %v993 = vld [vmem:[%s942 + $0x190] sm:$0xff]
        %v994 = vld [vmem:[%s942 + $0x198] sm:$0xff]
        %v995 = vld [vmem:[%s942 + $0x1a0] sm:$0xff]
        %v996 = vld [vmem:[%s942 + $0x1a8] sm:$0xff]
        %v997 = vld [vmem:[%s942 + $0x1b0] sm:$0xff]
        %v998 = vld [vmem:[%s942 + $0x1b8] sm:$0xff]
        %v999 = vld [vmem:[%s942 + $0x1c0] sm:$0xff]
        %v1000 = vld [vmem:[%s942 + $0x1c8] sm:$0xff]
        %v1001 = vld [vmem:[%s942 + $0x1d0] sm:$0xff]
        %v1002 = vld [vmem:[%s942 + $0x1d8] sm:$0xff]
        %v1003 = vld [vmem:[%s942 + $0x1e0] sm:$0xff]
        %v1004 = vld [vmem:[%s942 + $0x1e8] sm:$0xff]
        %v1005 = vld [vmem:[%s942 + $0x1f0] sm:$0xff]
        %v1006 = vld [vmem:[%s942 + $0x1f8] sm:$0xff]
        %v1007 = vadd.f32 %v878, %v879
        %v1008 = vadd.f32 %v1007, %v880
        %v1009 = vadd.f32 %v1008, %v881
        %v1010 = vadd.f32 %v1009, %v882
        %v1011 = vadd.f32 %v1010, %v883
        %v1012 = vadd.f32 %v1011, %v884
        %v1013 = vadd.f32 %v1012, %v885
        %v1014 = vadd.f32 %v1013, %v886
        %v1015 = vadd.f32 %v1014, %v887
        %v1016 = vadd.f32 %v1015, %v888
        %v1017 = vadd.f32 %v1016, %v889
        %v1018 = vadd.f32 %v1017, %v890
        %v1019 = vadd.f32 %v1018, %v891
        %v1020 = vadd.f32 %v1019, %v892
        %v1021 = vadd.f32 %v1020, %v893
        %v1022 = vadd.f32 %v1021, %v894
        %v1023 = vadd.f32 %v1022, %v895
        %v1024 = vadd.f32 %v1023, %v896
        %v1025 = vadd.f32 %v1024, %v897
        %v1026 = vadd.f32 %v1025, %v898
        %v1027 = vadd.f32 %v1026, %v899
        %v1028 = vadd.f32 %v1027, %v900
        %v1029 = vadd.f32 %v1028, %v901
        %v1030 = vadd.f32 %v1029, %v902
        %v1031 = vadd.f32 %v1030, %v903
        %v1032 = vadd.f32 %v1031, %v904
        %v1033 = vadd.f32 %v1032, %v905
        %v1034 = vadd.f32 %v1033, %v906
        %v1035 = vadd.f32 %v1034, %v907
        %v1036 = vadd.f32 %v1035, %v908
        %v1037 = vadd.f32 %v1036, %v909
        %v1038 = vadd.f32 %v1037, %v910
        %v1039 = vadd.f32 %v1038, %v911
        %v1040 = vadd.f32 %v1039, %v912
        %v1041 = vadd.f32 %v1040, %v913
        %v1042 = vadd.f32 %v1041, %v914
        %v1043 = vadd.f32 %v1042, %v915
        %v1044 = vadd.f32 %v1043, %v916
        %v1045 = vadd.f32 %v1044, %v917
        %v1046 = vadd.f32 %v1045, %v918
        %v1047 = vadd.f32 %v1046, %v919
        %v1048 = vadd.f32 %v1047, %v920
        %v1049 = vadd.f32 %v1048, %v921
        %v1050 = vadd.f32 %v1049, %v922
        %v1051 = vadd.f32 %v1050, %v923
        %v1052 = vadd.f32 %v1051, %v924
        %v1053 = vadd.f32 %v1052, %v925
        %v1054 = vadd.f32 %v1053, %v926
        %v1055 = vadd.f32 %v1054, %v927
        %v1056 = vadd.f32 %v1055, %v928
        %v1057 = vadd.f32 %v1056, %v929
        %v1058 = vadd.f32 %v1057, %v930
        %v1059 = vadd.f32 %v1058, %v931
        %v1060 = vadd.f32 %v1059, %v932
        %v1061 = vadd.f32 %v1060, %v933
        %v1062 = vadd.f32 %v1061, %v934
        %v1063 = vadd.f32 %v1062, %v935
        %v1064 = vadd.f32 %v1063, %v936
        %v1065 = vadd.f32 %v1064, %v937
        %v1066 = vadd.f32 %v1065, %v938
        %v1067 = vadd.f32 %v1066, %v939
        %v1068 = vadd.f32 %v1067, %v940
        %v1069 = vadd.f32 %v1068, %v941
        %v1070 = vadd.f32 %v428, %v1069
        %v1071 = vadd.f32 %v943, %v944
        %v1072 = vadd.f32 %v1071, %v945
        %v1073 = vadd.f32 %v1072, %v946
        %v1074 = vadd.f32 %v1073, %v947
        %v1075 = vadd.f32 %v1074, %v948
        %v1076 = vadd.f32 %v1075, %v949
        %v1077 = vadd.f32 %v1076, %v950
        %v1078 = vadd.f32 %v1077, %v951
        %v1079 = vadd.f32 %v1078, %v952
        %v1080 = vadd.f32 %v1079, %v953
        %v1081 = vadd.f32 %v1080, %v954
        %v1082 = vadd.f32 %v1081, %v955
        %v1083 = vadd.f32 %v1082, %v956
        %v1084 = vadd.f32 %v1083, %v957
        %v1085 = vadd.f32 %v1084, %v958
        %v1086 = vadd.f32 %v1085, %v959
        %v1087 = vadd.f32 %v1086, %v960
        %v1088 = vadd.f32 %v1087, %v961
        %v1089 = vadd.f32 %v1088, %v962
        %v1090 = vadd.f32 %v1089, %v963
        %v1091 = vadd.f32 %v1090, %v964
        %v1092 = vadd.f32 %v1091, %v965
        %v1093 = vadd.f32 %v1092, %v966
        %v1094 = vadd.f32 %v1093, %v967
        %v1095 = vadd.f32 %v1094, %v968
        %v1096 = vadd.f32 %v1095, %v969
        %v1097 = vadd.f32 %v1096, %v970
        %v1098 = vadd.f32 %v1097, %v971
        %v1099 = vadd.f32 %v1098, %v972
        %v1100 = vadd.f32 %v1099, %v973
        %v1101 = vadd.f32 %v1100, %v974
        %v1102 = vadd.f32 %v1101, %v975
        %v1103 = vadd.f32 %v1102, %v976
        %v1104 = vadd.f32 %v1103, %v977
        %v1105 = vadd.f32 %v1104, %v978
        %v1106 = vadd.f32 %v1105, %v979
        %v1107 = vadd.f32 %v1106, %v980
        %v1108 = vadd.f32 %v1107, %v981
        %v1109 = vadd.f32 %v1108, %v982
        %v1110 = vadd.f32 %v1109, %v983
        %v1111 = vadd.f32 %v1110, %v984
        %v1112 = vadd.f32 %v1111, %v985
        %v1113 = vadd.f32 %v1112, %v986
        %v1114 = vadd.f32 %v1113, %v987
        %v1115 = vadd.f32 %v1114, %v988
        %v1116 = vadd.f32 %v1115, %v989
        %v1117 = vadd.f32 %v1116, %v990
        %v1118 = vadd.f32 %v1117, %v991
        %v1119 = vadd.f32 %v1118, %v992
        %v1120 = vadd.f32 %v1119, %v993
        %v1121 = vadd.f32 %v1120, %v994
        %v1122 = vadd.f32 %v1121, %v995
        %v1123 = vadd.f32 %v1122, %v996
        %v1124 = vadd.f32 %v1123, %v997
        %v1125 = vadd.f32 %v1124, %v998
        %v1126 = vadd.f32 %v1125, %v999
        %v1127 = vadd.f32 %v1126, %v1000
        %v1128 = vadd.f32 %v1127, %v1001
        %v1129 = vadd.f32 %v1128, %v1002
        %v1130 = vadd.f32 %v1129, %v1003
        %v1131 = vadd.f32 %v1130, %v1004
        %v1132 = vadd.f32 %v1131, %v1005
        %v1133 = vadd.f32 %v1132, %v1006
        %v1134 = vadd.f32 %v492, %v1133
        %v1135 = vmul.f32 %v878, %v878
        %v1136 = vmul.f32 %v879, %v879
        %v1137 = vmul.f32 %v880, %v880
        %v1138 = vmul.f32 %v881, %v881
        %v1139 = vmul.f32 %v882, %v882
        %v1140 = vmul.f32 %v883, %v883
        %v1141 = vmul.f32 %v884, %v884
        %v1142 = vmul.f32 %v885, %v885
        %v1143 = vmul.f32 %v886, %v886
        %v1144 = vmul.f32 %v887, %v887
        %v1145 = vmul.f32 %v888, %v888
        %v1146 = vmul.f32 %v889, %v889
        %v1147 = vmul.f32 %v890, %v890
        %v1148 = vmul.f32 %v891, %v891
        %v1149 = vmul.f32 %v892, %v892
        %v1150 = vmul.f32 %v893, %v893
        %v1151 = vmul.f32 %v894, %v894
        %v1152 = vmul.f32 %v895, %v895
        %v1153 = vmul.f32 %v896, %v896
        %v1154 = vmul.f32 %v897, %v897
        %v1155 = vmul.f32 %v898, %v898
        %v1156 = vmul.f32 %v899, %v899
        %v1157 = vmul.f32 %v900, %v900
        %v1158 = vmul.f32 %v901, %v901
        %v1159 = vmul.f32 %v902, %v902
        %v1160 = vmul.f32 %v903, %v903
        %v1161 = vmul.f32 %v904, %v904
        %v1162 = vmul.f32 %v905, %v905
        %v1163 = vmul.f32 %v906, %v906
        %v1164 = vmul.f32 %v907, %v907
        %v1165 = vmul.f32 %v908, %v908
        %v1166 = vmul.f32 %v909, %v909
        %v1167 = vmul.f32 %v910, %v910
        %v1168 = vmul.f32 %v911, %v911
        %v1169 = vmul.f32 %v912, %v912
        %v1170 = vmul.f32 %v913, %v913
        %v1171 = vmul.f32 %v914, %v914
        %v1172 = vmul.f32 %v915, %v915
        %v1173 = vmul.f32 %v916, %v916
        %v1174 = vmul.f32 %v917, %v917
        %v1175 = vmul.f32 %v918, %v918
        %v1176 = vmul.f32 %v919, %v919
        %v1177 = vmul.f32 %v920, %v920
        %v1178 = vmul.f32 %v921, %v921
        %v1179 = vmul.f32 %v922, %v922
        %v1180 = vmul.f32 %v923, %v923
        %v1181 = vmul.f32 %v924, %v924
        %v1182 = vmul.f32 %v925, %v925
        %v1183 = vmul.f32 %v926, %v926
        %v1184 = vmul.f32 %v927, %v927
        %v1185 = vmul.f32 %v928, %v928
        %v1186 = vmul.f32 %v929, %v929
        %v1187 = vmul.f32 %v930, %v930
        %v1188 = vmul.f32 %v931, %v931
        %v1189 = vmul.f32 %v932, %v932
        %v1190 = vmul.f32 %v933, %v933
        %v1191 = vmul.f32 %v934, %v934
        %v1192 = vmul.f32 %v935, %v935
        %v1193 = vmul.f32 %v936, %v936
        %v1194 = vmul.f32 %v937, %v937
        %v1195 = vmul.f32 %v938, %v938
        %v1196 = vmul.f32 %v939, %v939
        %v1197 = vmul.f32 %v940, %v940
        %v1198 = vmul.f32 %v941, %v941
        %v1199 = vadd.f32 %v1135, %v1136
        %v1200 = vadd.f32 %v1199, %v1137
        %v1201 = vadd.f32 %v1200, %v1138
        %v1202 = vadd.f32 %v1201, %v1139
        %v1203 = vadd.f32 %v1202, %v1140
        %v1204 = vadd.f32 %v1203, %v1141
        %v1205 = vadd.f32 %v1204, %v1142
        %v1206 = vadd.f32 %v1205, %v1143
        %v1207 = vadd.f32 %v1206, %v1144
        %v1208 = vadd.f32 %v1207, %v1145
        %v1209 = vadd.f32 %v1208, %v1146
        %v1210 = vadd.f32 %v1209, %v1147
        %v1211 = vadd.f32 %v1210, %v1148
        %v1212 = vadd.f32 %v1211, %v1149
        %v1213 = vadd.f32 %v1212, %v1150
        %v1214 = vadd.f32 %v1213, %v1151
        %v1215 = vadd.f32 %v1214, %v1152
        %v1216 = vadd.f32 %v1215, %v1153
        %v1217 = vadd.f32 %v1216, %v1154
        %v1218 = vadd.f32 %v1217, %v1155
        %v1219 = vadd.f32 %v1218, %v1156
        %v1220 = vadd.f32 %v1219, %v1157
        %v1221 = vadd.f32 %v1220, %v1158
        %v1222 = vadd.f32 %v1221, %v1159
        %v1223 = vadd.f32 %v1222, %v1160
        %v1224 = vadd.f32 %v1223, %v1161
        %v1225 = vadd.f32 %v1224, %v1162
        %v1226 = vadd.f32 %v1225, %v1163
        %v1227 = vadd.f32 %v1226, %v1164
        %v1228 = vadd.f32 %v1227, %v1165
        %v1229 = vadd.f32 %v1228, %v1166
        %v1230 = vadd.f32 %v1229, %v1167
        %v1231 = vadd.f32 %v1230, %v1168
        %v1232 = vadd.f32 %v1231, %v1169
        %v1233 = vadd.f32 %v1232, %v1170
        %v1234 = vadd.f32 %v1233, %v1171
        %v1235 = vadd.f32 %v1234, %v1172
        %v1236 = vadd.f32 %v1235, %v1173
        %v1237 = vadd.f32 %v1236, %v1174
        %v1238 = vadd.f32 %v1237, %v1175
        %v1239 = vadd.f32 %v1238, %v1176
        %v1240 = vadd.f32 %v1239, %v1177
        %v1241 = vadd.f32 %v1240, %v1178
        %v1242 = vadd.f32 %v1241, %v1179
        %v1243 = vadd.f32 %v1242, %v1180
        %v1244 = vadd.f32 %v1243, %v1181
        %v1245 = vadd.f32 %v1244, %v1182
        %v1246 = vadd.f32 %v1245, %v1183
        %v1247 = vadd.f32 %v1246, %v1184
        %v1248 = vadd.f32 %v1247, %v1185
        %v1249 = vadd.f32 %v1248, %v1186
        %v1250 = vadd.f32 %v1249, %v1187
        %v1251 = vadd.f32 %v1250, %v1188
        %v1252 = vadd.f32 %v1251, %v1189
        %v1253 = vadd.f32 %v1252, %v1190
        %v1254 = vadd.f32 %v1253, %v1191
        %v1255 = vadd.f32 %v1254, %v1192
        %v1256 = vadd.f32 %v1255, %v1193
        %v1257 = vadd.f32 %v1256, %v1194
        %v1258 = vadd.f32 %v1257, %v1195
        %v1259 = vadd.f32 %v1258, %v1196
        %v1260 = vadd.f32 %v1259, %v1197
        %v1261 = vadd.f32 %v1260, %v1198
        %v1262 = vadd.f32 %v620, %v1261
        %v1263 = vmul.f32 %v943, %v943
        %v1264 = vmul.f32 %v944, %v944
        %v1265 = vmul.f32 %v945, %v945
        %v1266 = vmul.f32 %v946, %v946
        %v1267 = vmul.f32 %v947, %v947
        %v1268 = vmul.f32 %v948, %v948
        %v1269 = vmul.f32 %v949, %v949
        %v1270 = vmul.f32 %v950, %v950
        %v1271 = vmul.f32 %v951, %v951
        %v1272 = vmul.f32 %v952, %v952
        %v1273 = vmul.f32 %v953, %v953
        %v1274 = vmul.f32 %v954, %v954
        %v1275 = vmul.f32 %v955, %v955
        %v1276 = vmul.f32 %v956, %v956
        %v1277 = vmul.f32 %v957, %v957
        %v1278 = vmul.f32 %v958, %v958
        %v1279 = vmul.f32 %v959, %v959
        %v1280 = vmul.f32 %v960, %v960
        %v1281 = vmul.f32 %v961, %v961
        %v1282 = vmul.f32 %v962, %v962
        %v1283 = vmul.f32 %v963, %v963
        %v1284 = vmul.f32 %v964, %v964
        %v1285 = vmul.f32 %v965, %v965
        %v1286 = vmul.f32 %v966, %v966
        %v1287 = vmul.f32 %v967, %v967
        %v1288 = vmul.f32 %v968, %v968
        %v1289 = vmul.f32 %v969, %v969
        %v1290 = vmul.f32 %v970, %v970
        %v1291 = vmul.f32 %v971, %v971
        %v1292 = vmul.f32 %v972, %v972
        %v1293 = vmul.f32 %v973, %v973
        %v1294 = vmul.f32 %v974, %v974
        %v1295 = vmul.f32 %v975, %v975
        %v1296 = vmul.f32 %v976, %v976
        %v1297 = vmul.f32 %v977, %v977
        %v1298 = vmul.f32 %v978, %v978
        %v1299 = vmul.f32 %v979, %v979
        %v1300 = vmul.f32 %v980, %v980
        %v1301 = vmul.f32 %v981, %v981
        %v1302 = vmul.f32 %v982, %v982
        %v1303 = vmul.f32 %v983, %v983
        %v1304 = vmul.f32 %v984, %v984
        %v1305 = vmul.f32 %v985, %v985
        %v1306 = vmul.f32 %v986, %v986
        %v1307 = vmul.f32 %v987, %v987
        %v1308 = vmul.f32 %v988, %v988
        %v1309 = vmul.f32 %v989, %v989
        %v1310 = vmul.f32 %v990, %v990
        %v1311 = vmul.f32 %v991, %v991
        %v1312 = vmul.f32 %v992, %v992
        %v1313 = vmul.f32 %v993, %v993
        %v1314 = vmul.f32 %v994, %v994
        %v1315 = vmul.f32 %v995, %v995
        %v1316 = vmul.f32 %v996, %v996
        %v1317 = vmul.f32 %v997, %v997
        %v1318 = vmul.f32 %v998, %v998
        %v1319 = vmul.f32 %v999, %v999
        %v1320 = vmul.f32 %v1000, %v1000
        %v1321 = vmul.f32 %v1001, %v1001
        %v1322 = vmul.f32 %v1002, %v1002
        %v1323 = vmul.f32 %v1003, %v1003
        %v1324 = vmul.f32 %v1004, %v1004
        %v1325 = vmul.f32 %v1005, %v1005
        %v1326 = vmul.f32 %v1006, %v1006
        %v1327 = vadd.f32 %v1263, %v1264
        %v1328 = vadd.f32 %v1327, %v1265
        %v1329 = vadd.f32 %v1328, %v1266
        %v1330 = vadd.f32 %v1329, %v1267
        %v1331 = vadd.f32 %v1330, %v1268
        %v1332 = vadd.f32 %v1331, %v1269
        %v1333 = vadd.f32 %v1332, %v1270
        %v1334 = vadd.f32 %v1333, %v1271
        %v1335 = vadd.f32 %v1334, %v1272
        %v1336 = vadd.f32 %v1335, %v1273
        %v1337 = vadd.f32 %v1336, %v1274
        %v1338 = vadd.f32 %v1337, %v1275
        %v1339 = vadd.f32 %v1338, %v1276
        %v1340 = vadd.f32 %v1339, %v1277
        %v1341 = vadd.f32 %v1340, %v1278
        %v1342 = vadd.f32 %v1341, %v1279
        %v1343 = vadd.f32 %v1342, %v1280
        %v1344 = vadd.f32 %v1343, %v1281
        %v1345 = vadd.f32 %v1344, %v1282
        %v1346 = vadd.f32 %v1345, %v1283
        %v1347 = vadd.f32 %v1346, %v1284
        %v1348 = vadd.f32 %v1347, %v1285
        %v1349 = vadd.f32 %v1348, %v1286
        %v1350 = vadd.f32 %v1349, %v1287
        %v1351 = vadd.f32 %v1350, %v1288
        %v1352 = vadd.f32 %v1351, %v1289
        %v1353 = vadd.f32 %v1352, %v1290
        %v1354 = vadd.f32 %v1353, %v1291
        %v1355 = vadd.f32 %v1354, %v1292
        %v1356 = vadd.f32 %v1355, %v1293
        %v1357 = vadd.f32 %v1356, %v1294
        %v1358 = vadd.f32 %v1357, %v1295
        %v1359 = vadd.f32 %v1358, %v1296
        %v1360 = vadd.f32 %v1359, %v1297
        %v1361 = vadd.f32 %v1360, %v1298
        %v1362 = vadd.f32 %v1361, %v1299
        %v1363 = vadd.f32 %v1362, %v1300
        %v1364 = vadd.f32 %v1363, %v1301
        %v1365 = vadd.f32 %v1364, %v1302
        %v1366 = vadd.f32 %v1365, %v1303
        %v1367 = vadd.f32 %v1366, %v1304
        %v1368 = vadd.f32 %v1367, %v1305
        %v1369 = vadd.f32 %v1368, %v1306
        %v1370 = vadd.f32 %v1369, %v1307
        %v1371 = vadd.f32 %v1370, %v1308
        %v1372 = vadd.f32 %v1371, %v1309
        %v1373 = vadd.f32 %v1372, %v1310
        %v1374 = vadd.f32 %v1373, %v1311
        %v1375 = vadd.f32 %v1374, %v1312
        %v1376 = vadd.f32 %v1375, %v1313
        %v1377 = vadd.f32 %v1376, %v1314
        %v1378 = vadd.f32 %v1377, %v1315
        %v1379 = vadd.f32 %v1378, %v1316
        %v1380 = vadd.f32 %v1379, %v1317
        %v1381 = vadd.f32 %v1380, %v1318
        %v1382 = vadd.f32 %v1381, %v1319
        %v1383 = vadd.f32 %v1382, %v1320
        %v1384 = vadd.f32 %v1383, %v1321
        %v1385 = vadd.f32 %v1384, %v1322
        %v1386 = vadd.f32 %v1385, %v1323
        %v1387 = vadd.f32 %v1386, %v1324
        %v1388 = vadd.f32 %v1387, %v1325
        %v1389 = vadd.f32 %v1388, %v1326
        %v1390 = vadd.f32 %v748, %v1389
        %v1391 = vmul.f32 %v878, %v943
        %v1392 = vmul.f32 %v879, %v944
        %v1393 = vmul.f32 %v880, %v945
        %v1394 = vmul.f32 %v881, %v946
        %v1395 = vmul.f32 %v882, %v947
        %v1396 = vmul.f32 %v883, %v948
        %v1397 = vmul.f32 %v884, %v949
        %v1398 = vmul.f32 %v885, %v950
        %v1399 = vmul.f32 %v886, %v951
        %v1400 = vmul.f32 %v887, %v952
        %v1401 = vmul.f32 %v888, %v953
        %v1402 = vmul.f32 %v889, %v954
        %v1403 = vmul.f32 %v890, %v955
        %v1404 = vmul.f32 %v891, %v956
        %v1405 = vmul.f32 %v892, %v957
        %v1406 = vmul.f32 %v893, %v958
        %v1407 = vmul.f32 %v894, %v959
        %v1408 = vmul.f32 %v895, %v960
        %v1409 = vmul.f32 %v896, %v961
        %v1410 = vmul.f32 %v897, %v962
        %v1411 = vmul.f32 %v898, %v963
        %v1412 = vmul.f32 %v899, %v964
        %v1413 = vmul.f32 %v900, %v965
        %v1414 = vmul.f32 %v901, %v966
        %v1415 = vmul.f32 %v902, %v967
        %v1416 = vmul.f32 %v903, %v968
        %v1417 = vmul.f32 %v904, %v969
        %v1418 = vmul.f32 %v905, %v970
        %v1419 = vmul.f32 %v906, %v971
        %v1420 = vmul.f32 %v907, %v972
        %v1421 = vmul.f32 %v908, %v973
        %v1422 = vmul.f32 %v909, %v974
        %v1423 = vmul.f32 %v910, %v975
        %v1424 = vmul.f32 %v911, %v976
        %v1425 = vmul.f32 %v912, %v977
        %v1426 = vmul.f32 %v913, %v978
        %v1427 = vmul.f32 %v914, %v979
        %v1428 = vmul.f32 %v915, %v980
        %v1429 = vmul.f32 %v916, %v981
        %v1430 = vmul.f32 %v917, %v982
        %v1431 = vmul.f32 %v918, %v983
        %v1432 = vmul.f32 %v919, %v984
        %v1433 = vmul.f32 %v920, %v985
        %v1434 = vmul.f32 %v921, %v986
        %v1435 = vmul.f32 %v922, %v987
        %v1436 = vmul.f32 %v923, %v988
        %v1437 = vmul.f32 %v924, %v989
        %v1438 = vmul.f32 %v925, %v990
        %v1439 = vmul.f32 %v926, %v991
        %v1440 = vmul.f32 %v927, %v992
        %v1441 = vmul.f32 %v928, %v993
        %v1442 = vmul.f32 %v929, %v994
        %v1443 = vmul.f32 %v930, %v995
        %v1444 = vmul.f32 %v931, %v996
        %v1445 = vmul.f32 %v932, %v997
        %v1446 = vmul.f32 %v933, %v998
        %v1447 = vmul.f32 %v934, %v999
        %v1448 = vmul.f32 %v935, %v1000
        %v1449 = vmul.f32 %v936, %v1001
        %v1450 = vmul.f32 %v937, %v1002
        %v1451 = vmul.f32 %v938, %v1003
        %v1452 = vmul.f32 %v939, %v1004
        %v1453 = vmul.f32 %v940, %v1005
        %v1454 = vmul.f32 %v941, %v1006
        %v1455 = vadd.f32 %v1391, %v1392
        %v1456 = vadd.f32 %v1455, %v1393
        %v1457 = vadd.f32 %v1456, %v1394
        %v1458 = vadd.f32 %v1457, %v1395
        %v1459 = vadd.f32 %v1458, %v1396
        %v1460 = vadd.f32 %v1459, %v1397
        %v1461 = vadd.f32 %v1460, %v1398
        %v1462 = vadd.f32 %v1461, %v1399
        %v1463 = vadd.f32 %v1462, %v1400
        %v1464 = vadd.f32 %v1463, %v1401
        %v1465 = vadd.f32 %v1464, %v1402
        %v1466 = vadd.f32 %v1465, %v1403
        %v1467 = vadd.f32 %v1466, %v1404
        %v1468 = vadd.f32 %v1467, %v1405
        %v1469 = vadd.f32 %v1468, %v1406
        %v1470 = vadd.f32 %v1469, %v1407
        %v1471 = vadd.f32 %v1470, %v1408
        %v1472 = vadd.f32 %v1471, %v1409
        %v1473 = vadd.f32 %v1472, %v1410
        %v1474 = vadd.f32 %v1473, %v1411
        %v1475 = vadd.f32 %v1474, %v1412
        %v1476 = vadd.f32 %v1475, %v1413
        %v1477 = vadd.f32 %v1476, %v1414
        %v1478 = vadd.f32 %v1477, %v1415
        %v1479 = vadd.f32 %v1478, %v1416
        %v1480 = vadd.f32 %v1479, %v1417
        %v1481 = vadd.f32 %v1480, %v1418
        %v1482 = vadd.f32 %v1481, %v1419
        %v1483 = vadd.f32 %v1482, %v1420
        %v1484 = vadd.f32 %v1483, %v1421
        %v1485 = vadd.f32 %v1484, %v1422
        %v1486 = vadd.f32 %v1485, %v1423
        %v1487 = vadd.f32 %v1486, %v1424
        %v1488 = vadd.f32 %v1487, %v1425
        %v1489 = vadd.f32 %v1488, %v1426
        %v1490 = vadd.f32 %v1489, %v1427
        %v1491 = vadd.f32 %v1490, %v1428
        %v1492 = vadd.f32 %v1491, %v1429
        %v1493 = vadd.f32 %v1492, %v1430
        %v1494 = vadd.f32 %v1493, %v1431
        %v1495 = vadd.f32 %v1494, %v1432
        %v1496 = vadd.f32 %v1495, %v1433
        %v1497 = vadd.f32 %v1496, %v1434
        %v1498 = vadd.f32 %v1497, %v1435
        %v1499 = vadd.f32 %v1498, %v1436
        %v1500 = vadd.f32 %v1499, %v1437
        %v1501 = vadd.f32 %v1500, %v1438
        %v1502 = vadd.f32 %v1501, %v1439
        %v1503 = vadd.f32 %v1502, %v1440
        %v1504 = vadd.f32 %v1503, %v1441
        %v1505 = vadd.f32 %v1504, %v1442
        %v1506 = vadd.f32 %v1505, %v1443
        %v1507 = vadd.f32 %v1506, %v1444
        %v1508 = vadd.f32 %v1507, %v1445
        %v1509 = vadd.f32 %v1508, %v1446
        %v1510 = vadd.f32 %v1509, %v1447
        %v1511 = vadd.f32 %v1510, %v1448
        %v1512 = vadd.f32 %v1511, %v1449
        %v1513 = vadd.f32 %v1512, %v1450
        %v1514 = vadd.f32 %v1513, %v1451
        %v1515 = vadd.f32 %v1514, %v1452
        %v1516 = vadd.f32 %v1515, %v1453
        %v1517 = vadd.f32 %v1516, %v1454
        %v1518 = vadd.f32 %v876, %v1517
        %s1519 = scalar_lea.vmem %s186, 1024 [#allocation7]
        %v1520 = vld [vmem:[%s1519] sm:$0xff]
        %v1521 = vld [vmem:[%s1519 + $0x8] sm:$0xff]
        %v1522 = vld [vmem:[%s1519 + $0x10] sm:$0xff]
        %v1523 = vld [vmem:[%s1519 + $0x18] sm:$0xff]
        %v1524 = vld [vmem:[%s1519 + $0x20] sm:$0xff]
        %v1525 = vld [vmem:[%s1519 + $0x28] sm:$0xff]
        %v1526 = vld [vmem:[%s1519 + $0x30] sm:$0xff]
        %v1527 = vld [vmem:[%s1519 + $0x38] sm:$0xff]
        %v1528 = vld [vmem:[%s1519 + $0x40] sm:$0xff]
        %v1529 = vld [vmem:[%s1519 + $0x48] sm:$0xff]
        %v1530 = vld [vmem:[%s1519 + $0x50] sm:$0xff]
        %v1531 = vld [vmem:[%s1519 + $0x58] sm:$0xff]
        %v1532 = vld [vmem:[%s1519 + $0x60] sm:$0xff]
        %v1533 = vld [vmem:[%s1519 + $0x68] sm:$0xff]
        %v1534 = vld [vmem:[%s1519 + $0x70] sm:$0xff]
        %v1535 = vld [vmem:[%s1519 + $0x78] sm:$0xff]
        %v1536 = vld [vmem:[%s1519 + $0x80] sm:$0xff]
        %v1537 = vld [vmem:[%s1519 + $0x88] sm:$0xff]
        %v1538 = vld [vmem:[%s1519 + $0x90] sm:$0xff]
        %v1539 = vld [vmem:[%s1519 + $0x98] sm:$0xff]
        %v1540 = vld [vmem:[%s1519 + $0xa0] sm:$0xff]
        %v1541 = vld [vmem:[%s1519 + $0xa8] sm:$0xff]
        %v1542 = vld [vmem:[%s1519 + $0xb0] sm:$0xff]
        %v1543 = vld [vmem:[%s1519 + $0xb8] sm:$0xff]
        %v1544 = vld [vmem:[%s1519 + $0xc0] sm:$0xff]
        %v1545 = vld [vmem:[%s1519 + $0xc8] sm:$0xff]
        %v1546 = vld [vmem:[%s1519 + $0xd0] sm:$0xff]
        %v1547 = vld [vmem:[%s1519 + $0xd8] sm:$0xff]
        %v1548 = vld [vmem:[%s1519 + $0xe0] sm:$0xff]
        %v1549 = vld [vmem:[%s1519 + $0xe8] sm:$0xff]
        %v1550 = vld [vmem:[%s1519 + $0xf0] sm:$0xff]
        %v1551 = vld [vmem:[%s1519 + $0xf8] sm:$0xff]
        %v1552 = vld [vmem:[%s1519 + $0x100] sm:$0xff]
        %v1553 = vld [vmem:[%s1519 + $0x108] sm:$0xff]
        %v1554 = vld [vmem:[%s1519 + $0x110] sm:$0xff]
        %v1555 = vld [vmem:[%s1519 + $0x118] sm:$0xff]
        %v1556 = vld [vmem:[%s1519 + $0x120] sm:$0xff]
        %v1557 = vld [vmem:[%s1519 + $0x128] sm:$0xff]
        %v1558 = vld [vmem:[%s1519 + $0x130] sm:$0xff]
        %v1559 = vld [vmem:[%s1519 + $0x138] sm:$0xff]
        %v1560 = vld [vmem:[%s1519 + $0x140] sm:$0xff]
        %v1561 = vld [vmem:[%s1519 + $0x148] sm:$0xff]
        %v1562 = vld [vmem:[%s1519 + $0x150] sm:$0xff]
        %v1563 = vld [vmem:[%s1519 + $0x158] sm:$0xff]
        %v1564 = vld [vmem:[%s1519 + $0x160] sm:$0xff]
        %v1565 = vld [vmem:[%s1519 + $0x168] sm:$0xff]
        %v1566 = vld [vmem:[%s1519 + $0x170] sm:$0xff]
        %v1567 = vld [vmem:[%s1519 + $0x178] sm:$0xff]
        %v1568 = vld [vmem:[%s1519 + $0x180] sm:$0xff]
        %v1569 = vld [vmem:[%s1519 + $0x188] sm:$0xff]
        %v1570 = vld [vmem:[%s1519 + $0x190] sm:$0xff]
        %v1571 = vld [vmem:[%s1519 + $0x198] sm:$0xff]
        %v1572 = vld [vmem:[%s1519 + $0x1a0] sm:$0xff]
        %v1573 = vld [vmem:[%s1519 + $0x1a8] sm:$0xff]
        %v1574 = vld [vmem:[%s1519 + $0x1b0] sm:$0xff]
        %v1575 = vld [vmem:[%s1519 + $0x1b8] sm:$0xff]
        %v1576 = vld [vmem:[%s1519 + $0x1c0] sm:$0xff]
        %v1577 = vld [vmem:[%s1519 + $0x1c8] sm:$0xff]
        %v1578 = vld [vmem:[%s1519 + $0x1d0] sm:$0xff]
        %v1579 = vld [vmem:[%s1519 + $0x1d8] sm:$0xff]
        %v1580 = vld [vmem:[%s1519 + $0x1e0] sm:$0xff]
        %v1581 = vld [vmem:[%s1519 + $0x1e8] sm:$0xff]
        %v1582 = vld [vmem:[%s1519 + $0x1f0] sm:$0xff]
        %v1583 = vld [vmem:[%s1519 + $0x1f8] sm:$0xff]
        %s1584 = scalar_lea.vmem %s196, 1024 [#allocation9]
        %v1585 = vld [vmem:[%s1584] sm:$0xff]
        %v1586 = vld [vmem:[%s1584 + $0x8] sm:$0xff]
        %v1587 = vld [vmem:[%s1584 + $0x10] sm:$0xff]
        %v1588 = vld [vmem:[%s1584 + $0x18] sm:$0xff]
        %v1589 = vld [vmem:[%s1584 + $0x20] sm:$0xff]
        %v1590 = vld [vmem:[%s1584 + $0x28] sm:$0xff]
        %v1591 = vld [vmem:[%s1584 + $0x30] sm:$0xff]
        %v1592 = vld [vmem:[%s1584 + $0x38] sm:$0xff]
        %v1593 = vld [vmem:[%s1584 + $0x40] sm:$0xff]
        %v1594 = vld [vmem:[%s1584 + $0x48] sm:$0xff]
        %v1595 = vld [vmem:[%s1584 + $0x50] sm:$0xff]
        %v1596 = vld [vmem:[%s1584 + $0x58] sm:$0xff]
        %v1597 = vld [vmem:[%s1584 + $0x60] sm:$0xff]
        %v1598 = vld [vmem:[%s1584 + $0x68] sm:$0xff]
        %v1599 = vld [vmem:[%s1584 + $0x70] sm:$0xff]
        %v1600 = vld [vmem:[%s1584 + $0x78] sm:$0xff]
        %v1601 = vld [vmem:[%s1584 + $0x80] sm:$0xff]
        %v1602 = vld [vmem:[%s1584 + $0x88] sm:$0xff]
        %v1603 = vld [vmem:[%s1584 + $0x90] sm:$0xff]
        %v1604 = vld [vmem:[%s1584 + $0x98] sm:$0xff]
        %v1605 = vld [vmem:[%s1584 + $0xa0] sm:$0xff]
        %v1606 = vld [vmem:[%s1584 + $0xa8] sm:$0xff]
        %v1607 = vld [vmem:[%s1584 + $0xb0] sm:$0xff]
        %v1608 = vld [vmem:[%s1584 + $0xb8] sm:$0xff]
        %v1609 = vld [vmem:[%s1584 + $0xc0] sm:$0xff]
        %v1610 = vld [vmem:[%s1584 + $0xc8] sm:$0xff]
        %v1611 = vld [vmem:[%s1584 + $0xd0] sm:$0xff]
        %v1612 = vld [vmem:[%s1584 + $0xd8] sm:$0xff]
        %v1613 = vld [vmem:[%s1584 + $0xe0] sm:$0xff]
        %v1614 = vld [vmem:[%s1584 + $0xe8] sm:$0xff]
        %v1615 = vld [vmem:[%s1584 + $0xf0] sm:$0xff]
        %v1616 = vld [vmem:[%s1584 + $0xf8] sm:$0xff]
        %v1617 = vld [vmem:[%s1584 + $0x100] sm:$0xff]
        %v1618 = vld [vmem:[%s1584 + $0x108] sm:$0xff]
        %v1619 = vld [vmem:[%s1584 + $0x110] sm:$0xff]
        %v1620 = vld [vmem:[%s1584 + $0x118] sm:$0xff]
        %v1621 = vld [vmem:[%s1584 + $0x120] sm:$0xff]
        %v1622 = vld [vmem:[%s1584 + $0x128] sm:$0xff]
        %v1623 = vld [vmem:[%s1584 + $0x130] sm:$0xff]
        %v1624 = vld [vmem:[%s1584 + $0x138] sm:$0xff]
        %v1625 = vld [vmem:[%s1584 + $0x140] sm:$0xff]
        %v1626 = vld [vmem:[%s1584 + $0x148] sm:$0xff]
        %v1627 = vld [vmem:[%s1584 + $0x150] sm:$0xff]
        %v1628 = vld [vmem:[%s1584 + $0x158] sm:$0xff]
        %v1629 = vld [vmem:[%s1584 + $0x160] sm:$0xff]
        %v1630 = vld [vmem:[%s1584 + $0x168] sm:$0xff]
        %v1631 = vld [vmem:[%s1584 + $0x170] sm:$0xff]
        %v1632 = vld [vmem:[%s1584 + $0x178] sm:$0xff]
        %v1633 = vld [vmem:[%s1584 + $0x180] sm:$0xff]
        %v1634 = vld [vmem:[%s1584 + $0x188] sm:$0xff]
        %v1635 = vld [vmem:[%s1584 + $0x190] sm:$0xff]
        %v1636 = vld [vmem:[%s1584 + $0x198] sm:$0xff]
        %v1637 = vld [vmem:[%s1584 + $0x1a0] sm:$0xff]
        %v1638 = vld [vmem:[%s1584 + $0x1a8] sm:$0xff]
        %v1639 = vld [vmem:[%s1584 + $0x1b0] sm:$0xff]
        %v1640 = vld [vmem:[%s1584 + $0x1b8] sm:$0xff]
        %v1641 = vld [vmem:[%s1584 + $0x1c0] sm:$0xff]
        %v1642 = vld [vmem:[%s1584 + $0x1c8] sm:$0xff]
        %v1643 = vld [vmem:[%s1584 + $0x1d0] sm:$0xff]
        %v1644 = vld [vmem:[%s1584 + $0x1d8] sm:$0xff]
        %v1645 = vld [vmem:[%s1584 + $0x1e0] sm:$0xff]
        %v1646 = vld [vmem:[%s1584 + $0x1e8] sm:$0xff]
        %v1647 = vld [vmem:[%s1584 + $0x1f0] sm:$0xff]
        %v1648 = vld [vmem:[%s1584 + $0x1f8] sm:$0xff]
        %v1649 = vadd.f32 %v1520, %v1521
        %v1650 = vadd.f32 %v1649, %v1522
        %v1651 = vadd.f32 %v1650, %v1523
        %v1652 = vadd.f32 %v1651, %v1524
        %v1653 = vadd.f32 %v1652, %v1525
        %v1654 = vadd.f32 %v1653, %v1526
        %v1655 = vadd.f32 %v1654, %v1527
        %v1656 = vadd.f32 %v1655, %v1528
        %v1657 = vadd.f32 %v1656, %v1529
        %v1658 = vadd.f32 %v1657, %v1530
        %v1659 = vadd.f32 %v1658, %v1531
        %v1660 = vadd.f32 %v1659, %v1532
        %v1661 = vadd.f32 %v1660, %v1533
        %v1662 = vadd.f32 %v1661, %v1534
        %v1663 = vadd.f32 %v1662, %v1535
        %v1664 = vadd.f32 %v1663, %v1536
        %v1665 = vadd.f32 %v1664, %v1537
        %v1666 = vadd.f32 %v1665, %v1538
        %v1667 = vadd.f32 %v1666, %v1539
        %v1668 = vadd.f32 %v1667, %v1540
        %v1669 = vadd.f32 %v1668, %v1541
        %v1670 = vadd.f32 %v1669, %v1542
        %v1671 = vadd.f32 %v1670, %v1543
        %v1672 = vadd.f32 %v1671, %v1544
        %v1673 = vadd.f32 %v1672, %v1545
        %v1674 = vadd.f32 %v1673, %v1546
        %v1675 = vadd.f32 %v1674, %v1547
        %v1676 = vadd.f32 %v1675, %v1548
        %v1677 = vadd.f32 %v1676, %v1549
        %v1678 = vadd.f32 %v1677, %v1550
        %v1679 = vadd.f32 %v1678, %v1551
        %v1680 = vadd.f32 %v1679, %v1552
        %v1681 = vadd.f32 %v1680, %v1553
        %v1682 = vadd.f32 %v1681, %v1554
        %v1683 = vadd.f32 %v1682, %v1555
        %v1684 = vadd.f32 %v1683, %v1556
        %v1685 = vadd.f32 %v1684, %v1557
        %v1686 = vadd.f32 %v1685, %v1558
        %v1687 = vadd.f32 %v1686, %v1559
        %v1688 = vadd.f32 %v1687, %v1560
        %v1689 = vadd.f32 %v1688, %v1561
        %v1690 = vadd.f32 %v1689, %v1562
        %v1691 = vadd.f32 %v1690, %v1563
        %v1692 = vadd.f32 %v1691, %v1564
        %v1693 = vadd.f32 %v1692, %v1565
        %v1694 = vadd.f32 %v1693, %v1566
        %v1695 = vadd.f32 %v1694, %v1567
        %v1696 = vadd.f32 %v1695, %v1568
        %v1697 = vadd.f32 %v1696, %v1569
        %v1698 = vadd.f32 %v1697, %v1570
        %v1699 = vadd.f32 %v1698, %v1571
        %v1700 = vadd.f32 %v1699, %v1572
        %v1701 = vadd.f32 %v1700, %v1573
        %v1702 = vadd.f32 %v1701, %v1574
        %v1703 = vadd.f32 %v1702, %v1575
        %v1704 = vadd.f32 %v1703, %v1576
        %v1705 = vadd.f32 %v1704, %v1577
        %v1706 = vadd.f32 %v1705, %v1578
        %v1707 = vadd.f32 %v1706, %v1579
        %v1708 = vadd.f32 %v1707, %v1580
        %v1709 = vadd.f32 %v1708, %v1581
        %v1710 = vadd.f32 %v1709, %v1582
        %v1711 = vadd.f32 %v1710, %v1583
        %v1712 = vadd.f32 %v1070, %v1711
        %v1713 = vadd.f32 %v1585, %v1586
        %v1714 = vadd.f32 %v1713, %v1587
        %v1715 = vadd.f32 %v1714, %v1588
        %v1716 = vadd.f32 %v1715, %v1589
        %v1717 = vadd.f32 %v1716, %v1590
        %v1718 = vadd.f32 %v1717, %v1591
        %v1719 = vadd.f32 %v1718, %v1592
        %v1720 = vadd.f32 %v1719, %v1593
        %v1721 = vadd.f32 %v1720, %v1594
        %v1722 = vadd.f32 %v1721, %v1595
        %v1723 = vadd.f32 %v1722, %v1596
        %v1724 = vadd.f32 %v1723, %v1597
        %v1725 = vadd.f32 %v1724, %v1598
        %v1726 = vadd.f32 %v1725, %v1599
        %v1727 = vadd.f32 %v1726, %v1600
        %v1728 = vadd.f32 %v1727, %v1601
        %v1729 = vadd.f32 %v1728, %v1602
        %v1730 = vadd.f32 %v1729, %v1603
        %v1731 = vadd.f32 %v1730, %v1604
        %v1732 = vadd.f32 %v1731, %v1605
        %v1733 = vadd.f32 %v1732, %v1606
        %v1734 = vadd.f32 %v1733, %v1607
        %v1735 = vadd.f32 %v1734, %v1608
        %v1736 = vadd.f32 %v1735, %v1609
        %v1737 = vadd.f32 %v1736, %v1610
        %v1738 = vadd.f32 %v1737, %v1611
        %v1739 = vadd.f32 %v1738, %v1612
        %v1740 = vadd.f32 %v1739, %v1613
        %v1741 = vadd.f32 %v1740, %v1614
        %v1742 = vadd.f32 %v1741, %v1615
        %v1743 = vadd.f32 %v1742, %v1616
        %v1744 = vadd.f32 %v1743, %v1617
        %v1745 = vadd.f32 %v1744, %v1618
        %v1746 = vadd.f32 %v1745, %v1619
        %v1747 = vadd.f32 %v1746, %v1620
        %v1748 = vadd.f32 %v1747, %v1621
        %v1749 = vadd.f32 %v1748, %v1622
        %v1750 = vadd.f32 %v1749, %v1623
        %v1751 = vadd.f32 %v1750, %v1624
        %v1752 = vadd.f32 %v1751, %v1625
        %v1753 = vadd.f32 %v1752, %v1626
        %v1754 = vadd.f32 %v1753, %v1627
        %v1755 = vadd.f32 %v1754, %v1628
        %v1756 = vadd.f32 %v1755, %v1629
        %v1757 = vadd.f32 %v1756, %v1630
        %v1758 = vadd.f32 %v1757, %v1631
        %v1759 = vadd.f32 %v1758, %v1632
        %v1760 = vadd.f32 %v1759, %v1633
        %v1761 = vadd.f32 %v1760, %v1634
        %v1762 = vadd.f32 %v1761, %v1635
        %v1763 = vadd.f32 %v1762, %v1636
        %v1764 = vadd.f32 %v1763, %v1637
        %v1765 = vadd.f32 %v1764, %v1638
        %v1766 = vadd.f32 %v1765, %v1639
        %v1767 = vadd.f32 %v1766, %v1640
        %v1768 = vadd.f32 %v1767, %v1641
        %v1769 = vadd.f32 %v1768, %v1642
        %v1770 = vadd.f32 %v1769, %v1643
        %v1771 = vadd.f32 %v1770, %v1644
        %v1772 = vadd.f32 %v1771, %v1645
        %v1773 = vadd.f32 %v1772, %v1646
        %v1774 = vadd.f32 %v1773, %v1647
        %v1775 = vadd.f32 %v1774, %v1648
        %v1776 = vadd.f32 %v1134, %v1775
        %v1777 = vmul.f32 %v1520, %v1520
        %v1778 = vmul.f32 %v1521, %v1521
        %v1779 = vmul.f32 %v1522, %v1522
        %v1780 = vmul.f32 %v1523, %v1523
        %v1781 = vmul.f32 %v1524, %v1524
        %v1782 = vmul.f32 %v1525, %v1525
        %v1783 = vmul.f32 %v1526, %v1526
        %v1784 = vmul.f32 %v1527, %v1527
        %v1785 = vmul.f32 %v1528, %v1528
        %v1786 = vmul.f32 %v1529, %v1529
        %v1787 = vmul.f32 %v1530, %v1530
        %v1788 = vmul.f32 %v1531, %v1531
        %v1789 = vmul.f32 %v1532, %v1532
        %v1790 = vmul.f32 %v1533, %v1533
        %v1791 = vmul.f32 %v1534, %v1534
        %v1792 = vmul.f32 %v1535, %v1535
        %v1793 = vmul.f32 %v1536, %v1536
        %v1794 = vmul.f32 %v1537, %v1537
        %v1795 = vmul.f32 %v1538, %v1538
        %v1796 = vmul.f32 %v1539, %v1539
        %v1797 = vmul.f32 %v1540, %v1540
        %v1798 = vmul.f32 %v1541, %v1541
        %v1799 = vmul.f32 %v1542, %v1542
        %v1800 = vmul.f32 %v1543, %v1543
        %v1801 = vmul.f32 %v1544, %v1544
        %v1802 = vmul.f32 %v1545, %v1545
        %v1803 = vmul.f32 %v1546, %v1546
        %v1804 = vmul.f32 %v1547, %v1547
        %v1805 = vmul.f32 %v1548, %v1548
        %v1806 = vmul.f32 %v1549, %v1549
        %v1807 = vmul.f32 %v1550, %v1550
        %v1808 = vmul.f32 %v1551, %v1551
        %v1809 = vmul.f32 %v1552, %v1552
        %v1810 = vmul.f32 %v1553, %v1553
        %v1811 = vmul.f32 %v1554, %v1554
        %v1812 = vmul.f32 %v1555, %v1555
        %v1813 = vmul.f32 %v1556, %v1556
        %v1814 = vmul.f32 %v1557, %v1557
        %v1815 = vmul.f32 %v1558, %v1558
        %v1816 = vmul.f32 %v1559, %v1559
        %v1817 = vmul.f32 %v1560, %v1560
        %v1818 = vmul.f32 %v1561, %v1561
        %v1819 = vmul.f32 %v1562, %v1562
        %v1820 = vmul.f32 %v1563, %v1563
        %v1821 = vmul.f32 %v1564, %v1564
        %v1822 = vmul.f32 %v1565, %v1565
        %v1823 = vmul.f32 %v1566, %v1566
        %v1824 = vmul.f32 %v1567, %v1567
        %v1825 = vmul.f32 %v1568, %v1568
        %v1826 = vmul.f32 %v1569, %v1569
        %v1827 = vmul.f32 %v1570, %v1570
        %v1828 = vmul.f32 %v1571, %v1571
        %v1829 = vmul.f32 %v1572, %v1572
        %v1830 = vmul.f32 %v1573, %v1573
        %v1831 = vmul.f32 %v1574, %v1574
        %v1832 = vmul.f32 %v1575, %v1575
        %v1833 = vmul.f32 %v1576, %v1576
        %v1834 = vmul.f32 %v1577, %v1577
        %v1835 = vmul.f32 %v1578, %v1578
        %v1836 = vmul.f32 %v1579, %v1579
        %v1837 = vmul.f32 %v1580, %v1580
        %v1838 = vmul.f32 %v1581, %v1581
        %v1839 = vmul.f32 %v1582, %v1582
        %v1840 = vmul.f32 %v1583, %v1583
        %v1841 = vadd.f32 %v1777, %v1778
        %v1842 = vadd.f32 %v1841, %v1779
        %v1843 = vadd.f32 %v1842, %v1780
        %v1844 = vadd.f32 %v1843, %v1781
        %v1845 = vadd.f32 %v1844, %v1782
        %v1846 = vadd.f32 %v1845, %v1783
        %v1847 = vadd.f32 %v1846, %v1784
        %v1848 = vadd.f32 %v1847, %v1785
        %v1849 = vadd.f32 %v1848, %v1786
        %v1850 = vadd.f32 %v1849, %v1787
        %v1851 = vadd.f32 %v1850, %v1788
        %v1852 = vadd.f32 %v1851, %v1789
        %v1853 = vadd.f32 %v1852, %v1790
        %v1854 = vadd.f32 %v1853, %v1791
        %v1855 = vadd.f32 %v1854, %v1792
        %v1856 = vadd.f32 %v1855, %v1793
        %v1857 = vadd.f32 %v1856, %v1794
        %v1858 = vadd.f32 %v1857, %v1795
        %v1859 = vadd.f32 %v1858, %v1796
        %v1860 = vadd.f32 %v1859, %v1797
        %v1861 = vadd.f32 %v1860, %v1798
        %v1862 = vadd.f32 %v1861, %v1799
        %v1863 = vadd.f32 %v1862, %v1800
        %v1864 = vadd.f32 %v1863, %v1801
        %v1865 = vadd.f32 %v1864, %v1802
        %v1866 = vadd.f32 %v1865, %v1803
        %v1867 = vadd.f32 %v1866, %v1804
        %v1868 = vadd.f32 %v1867, %v1805
        %v1869 = vadd.f32 %v1868, %v1806
        %v1870 = vadd.f32 %v1869, %v1807
        %v1871 = vadd.f32 %v1870, %v1808
        %v1872 = vadd.f32 %v1871, %v1809
        %v1873 = vadd.f32 %v1872, %v1810
        %v1874 = vadd.f32 %v1873, %v1811
        %v1875 = vadd.f32 %v1874, %v1812
        %v1876 = vadd.f32 %v1875, %v1813
        %v1877 = vadd.f32 %v1876, %v1814
        %v1878 = vadd.f32 %v1877, %v1815
        %v1879 = vadd.f32 %v1878, %v1816
        %v1880 = vadd.f32 %v1879, %v1817
        %v1881 = vadd.f32 %v1880, %v1818
        %v1882 = vadd.f32 %v1881, %v1819
        %v1883 = vadd.f32 %v1882, %v1820
        %v1884 = vadd.f32 %v1883, %v1821
        %v1885 = vadd.f32 %v1884, %v1822
        %v1886 = vadd.f32 %v1885, %v1823
        %v1887 = vadd.f32 %v1886, %v1824
        %v1888 = vadd.f32 %v1887, %v1825
        %v1889 = vadd.f32 %v1888, %v1826
        %v1890 = vadd.f32 %v1889, %v1827
        %v1891 = vadd.f32 %v1890, %v1828
        %v1892 = vadd.f32 %v1891, %v1829
        %v1893 = vadd.f32 %v1892, %v1830
        %v1894 = vadd.f32 %v1893, %v1831
        %v1895 = vadd.f32 %v1894, %v1832
        %v1896 = vadd.f32 %v1895, %v1833
        %v1897 = vadd.f32 %v1896, %v1834
        %v1898 = vadd.f32 %v1897, %v1835
        %v1899 = vadd.f32 %v1898, %v1836
        %v1900 = vadd.f32 %v1899, %v1837
        %v1901 = vadd.f32 %v1900, %v1838
        %v1902 = vadd.f32 %v1901, %v1839
        %v1903 = vadd.f32 %v1902, %v1840
        %v1904 = vadd.f32 %v1262, %v1903
        %v1905 = vmul.f32 %v1585, %v1585
        %v1906 = vmul.f32 %v1586, %v1586
        %v1907 = vmul.f32 %v1587, %v1587
        %v1908 = vmul.f32 %v1588, %v1588
        %v1909 = vmul.f32 %v1589, %v1589
        %v1910 = vmul.f32 %v1590, %v1590
        %v1911 = vmul.f32 %v1591, %v1591
        %v1912 = vmul.f32 %v1592, %v1592
        %v1913 = vmul.f32 %v1593, %v1593
        %v1914 = vmul.f32 %v1594, %v1594
        %v1915 = vmul.f32 %v1595, %v1595
        %v1916 = vmul.f32 %v1596, %v1596
        %v1917 = vmul.f32 %v1597, %v1597
        %v1918 = vmul.f32 %v1598, %v1598
        %v1919 = vmul.f32 %v1599, %v1599
        %v1920 = vmul.f32 %v1600, %v1600
        %v1921 = vmul.f32 %v1601, %v1601
        %v1922 = vmul.f32 %v1602, %v1602
        %v1923 = vmul.f32 %v1603, %v1603
        %v1924 = vmul.f32 %v1604, %v1604
        %v1925 = vmul.f32 %v1605, %v1605
        %v1926 = vmul.f32 %v1606, %v1606
        %v1927 = vmul.f32 %v1607, %v1607
        %v1928 = vmul.f32 %v1608, %v1608
        %v1929 = vmul.f32 %v1609, %v1609
        %v1930 = vmul.f32 %v1610, %v1610
        %v1931 = vmul.f32 %v1611, %v1611
        %v1932 = vmul.f32 %v1612, %v1612
        %v1933 = vmul.f32 %v1613, %v1613
        %v1934 = vmul.f32 %v1614, %v1614
        %v1935 = vmul.f32 %v1615, %v1615
        %v1936 = vmul.f32 %v1616, %v1616
        %v1937 = vmul.f32 %v1617, %v1617
        %v1938 = vmul.f32 %v1618, %v1618
        %v1939 = vmul.f32 %v1619, %v1619
        %v1940 = vmul.f32 %v1620, %v1620
        %v1941 = vmul.f32 %v1621, %v1621
        %v1942 = vmul.f32 %v1622, %v1622
        %v1943 = vmul.f32 %v1623, %v1623
        %v1944 = vmul.f32 %v1624, %v1624
        %v1945 = vmul.f32 %v1625, %v1625
        %v1946 = vmul.f32 %v1626, %v1626
        %v1947 = vmul.f32 %v1627, %v1627
        %v1948 = vmul.f32 %v1628, %v1628
        %v1949 = vmul.f32 %v1629, %v1629
        %v1950 = vmul.f32 %v1630, %v1630
        %v1951 = vmul.f32 %v1631, %v1631
        %v1952 = vmul.f32 %v1632, %v1632
        %v1953 = vmul.f32 %v1633, %v1633
        %v1954 = vmul.f32 %v1634, %v1634
        %v1955 = vmul.f32 %v1635, %v1635
        %v1956 = vmul.f32 %v1636, %v1636
        %v1957 = vmul.f32 %v1637, %v1637
        %v1958 = vmul.f32 %v1638, %v1638
        %v1959 = vmul.f32 %v1639, %v1639
        %v1960 = vmul.f32 %v1640, %v1640
        %v1961 = vmul.f32 %v1641, %v1641
        %v1962 = vmul.f32 %v1642, %v1642
        %v1963 = vmul.f32 %v1643, %v1643
        %v1964 = vmul.f32 %v1644, %v1644
        %v1965 = vmul.f32 %v1645, %v1645
        %v1966 = vmul.f32 %v1646, %v1646
        %v1967 = vmul.f32 %v1647, %v1647
        %v1968 = vmul.f32 %v1648, %v1648
        %v1969 = vadd.f32 %v1905, %v1906
        %v1970 = vadd.f32 %v1969, %v1907
        %v1971 = vadd.f32 %v1970, %v1908
        %v1972 = vadd.f32 %v1971, %v1909
        %v1973 = vadd.f32 %v1972, %v1910
        %v1974 = vadd.f32 %v1973, %v1911
        %v1975 = vadd.f32 %v1974, %v1912
        %v1976 = vadd.f32 %v1975, %v1913
        %v1977 = vadd.f32 %v1976, %v1914
        %v1978 = vadd.f32 %v1977, %v1915
        %v1979 = vadd.f32 %v1978, %v1916
        %v1980 = vadd.f32 %v1979, %v1917
        %v1981 = vadd.f32 %v1980, %v1918
        %v1982 = vadd.f32 %v1981, %v1919
        %v1983 = vadd.f32 %v1982, %v1920
        %v1984 = vadd.f32 %v1983, %v1921
        %v1985 = vadd.f32 %v1984, %v1922
        %v1986 = vadd.f32 %v1985, %v1923
        %v1987 = vadd.f32 %v1986, %v1924
        %v1988 = vadd.f32 %v1987, %v1925
        %v1989 = vadd.f32 %v1988, %v1926
        %v1990 = vadd.f32 %v1989, %v1927
        %v1991 = vadd.f32 %v1990, %v1928
        %v1992 = vadd.f32 %v1991, %v1929
        %v1993 = vadd.f32 %v1992, %v1930
        %v1994 = vadd.f32 %v1993, %v1931
        %v1995 = vadd.f32 %v1994, %v1932
        %v1996 = vadd.f32 %v1995, %v1933
        %v1997 = vadd.f32 %v1996, %v1934
        %v1998 = vadd.f32 %v1997, %v1935
        %v1999 = vadd.f32 %v1998, %v1936
        %v2000 = vadd.f32 %v1999, %v1937
        %v2001 = vadd.f32 %v2000, %v1938
        %v2002 = vadd.f32 %v2001, %v1939
        %v2003 = vadd.f32 %v2002, %v1940
        %v2004 = vadd.f32 %v2003, %v1941
        %v2005 = vadd.f32 %v2004, %v1942
        %v2006 = vadd.f32 %v2005, %v1943
        %v2007 = vadd.f32 %v2006, %v1944
        %v2008 = vadd.f32 %v2007, %v1945
        %v2009 = vadd.f32 %v2008, %v1946
        %v2010 = vadd.f32 %v2009, %v1947
        %v2011 = vadd.f32 %v2010, %v1948
        %v2012 = vadd.f32 %v2011, %v1949
        %v2013 = vadd.f32 %v2012, %v1950
        %v2014 = vadd.f32 %v2013, %v1951
        %v2015 = vadd.f32 %v2014, %v1952
        %v2016 = vadd.f32 %v2015, %v1953
        %v2017 = vadd.f32 %v2016, %v1954
        %v2018 = vadd.f32 %v2017, %v1955
        %v2019 = vadd.f32 %v2018, %v1956
        %v2020 = vadd.f32 %v2019, %v1957
        %v2021 = vadd.f32 %v2020, %v1958
        %v2022 = vadd.f32 %v2021, %v1959
        %v2023 = vadd.f32 %v2022, %v1960
        %v2024 = vadd.f32 %v2023, %v1961
        %v2025 = vadd.f32 %v2024, %v1962
        %v2026 = vadd.f32 %v2025, %v1963
        %v2027 = vadd.f32 %v2026, %v1964
        %v2028 = vadd.f32 %v2027, %v1965
        %v2029 = vadd.f32 %v2028, %v1966
        %v2030 = vadd.f32 %v2029, %v1967
        %v2031 = vadd.f32 %v2030, %v1968
        %v2032 = vadd.f32 %v1390, %v2031
        %v2033 = vmul.f32 %v1520, %v1585
        %v2034 = vmul.f32 %v1521, %v1586
        %v2035 = vmul.f32 %v1522, %v1587
        %v2036 = vmul.f32 %v1523, %v1588
        %v2037 = vmul.f32 %v1524, %v1589
        %v2038 = vmul.f32 %v1525, %v1590
        %v2039 = vmul.f32 %v1526, %v1591
        %v2040 = vmul.f32 %v1527, %v1592
        %v2041 = vmul.f32 %v1528, %v1593
        %v2042 = vmul.f32 %v1529, %v1594
        %v2043 = vmul.f32 %v1530, %v1595
        %v2044 = vmul.f32 %v1531, %v1596
        %v2045 = vmul.f32 %v1532, %v1597
        %v2046 = vmul.f32 %v1533, %v1598
        %v2047 = vmul.f32 %v1534, %v1599
        %v2048 = vmul.f32 %v1535, %v1600
        %v2049 = vmul.f32 %v1536, %v1601
        %v2050 = vmul.f32 %v1537, %v1602
        %v2051 = vmul.f32 %v1538, %v1603
        %v2052 = vmul.f32 %v1539, %v1604
        %v2053 = vmul.f32 %v1540, %v1605
        %v2054 = vmul.f32 %v1541, %v1606
        %v2055 = vmul.f32 %v1542, %v1607
        %v2056 = vmul.f32 %v1543, %v1608
        %v2057 = vmul.f32 %v1544, %v1609
        %v2058 = vmul.f32 %v1545, %v1610
        %v2059 = vmul.f32 %v1546, %v1611
        %v2060 = vmul.f32 %v1547, %v1612
        %v2061 = vmul.f32 %v1548, %v1613
        %v2062 = vmul.f32 %v1549, %v1614
        %v2063 = vmul.f32 %v1550, %v1615
        %v2064 = vmul.f32 %v1551, %v1616
        %v2065 = vmul.f32 %v1552, %v1617
        %v2066 = vmul.f32 %v1553, %v1618
        %v2067 = vmul.f32 %v1554, %v1619
        %v2068 = vmul.f32 %v1555, %v1620
        %v2069 = vmul.f32 %v1556, %v1621
        %v2070 = vmul.f32 %v1557, %v1622
        %v2071 = vmul.f32 %v1558, %v1623
        %v2072 = vmul.f32 %v1559, %v1624
        %v2073 = vmul.f32 %v1560, %v1625
        %v2074 = vmul.f32 %v1561, %v1626
        %v2075 = vmul.f32 %v1562, %v1627
        %v2076 = vmul.f32 %v1563, %v1628
        %v2077 = vmul.f32 %v1564, %v1629
        %v2078 = vmul.f32 %v1565, %v1630
        %v2079 = vmul.f32 %v1566, %v1631
        %v2080 = vmul.f32 %v1567, %v1632
        %v2081 = vmul.f32 %v1568, %v1633
        %v2082 = vmul.f32 %v1569, %v1634
        %v2083 = vmul.f32 %v1570, %v1635
        %v2084 = vmul.f32 %v1571, %v1636
        %v2085 = vmul.f32 %v1572, %v1637
        %v2086 = vmul.f32 %v1573, %v1638
        %v2087 = vmul.f32 %v1574, %v1639
        %v2088 = vmul.f32 %v1575, %v1640
        %v2089 = vmul.f32 %v1576, %v1641
        %v2090 = vmul.f32 %v1577, %v1642
        %v2091 = vmul.f32 %v1578, %v1643
        %v2092 = vmul.f32 %v1579, %v1644
        %v2093 = vmul.f32 %v1580, %v1645
        %v2094 = vmul.f32 %v1581, %v1646
        %v2095 = vmul.f32 %v1582, %v1647
        %v2096 = vmul.f32 %v1583, %v1648
        %v2097 = vadd.f32 %v2033, %v2034
        %v2098 = vadd.f32 %v2097, %v2035
        %v2099 = vadd.f32 %v2098, %v2036
        %v2100 = vadd.f32 %v2099, %v2037
        %v2101 = vadd.f32 %v2100, %v2038
        %v2102 = vadd.f32 %v2101, %v2039
        %v2103 = vadd.f32 %v2102, %v2040
        %v2104 = vadd.f32 %v2103, %v2041
        %v2105 = vadd.f32 %v2104, %v2042
        %v2106 = vadd.f32 %v2105, %v2043
        %v2107 = vadd.f32 %v2106, %v2044
        %v2108 = vadd.f32 %v2107, %v2045
        %v2109 = vadd.f32 %v2108, %v2046
        %v2110 = vadd.f32 %v2109, %v2047
        %v2111 = vadd.f32 %v2110, %v2048
        %v2112 = vadd.f32 %v2111, %v2049
        %v2113 = vadd.f32 %v2112, %v2050
        %v2114 = vadd.f32 %v2113, %v2051
        %v2115 = vadd.f32 %v2114, %v2052
        %v2116 = vadd.f32 %v2115, %v2053
        %v2117 = vadd.f32 %v2116, %v2054
        %v2118 = vadd.f32 %v2117, %v2055
        %v2119 = vadd.f32 %v2118, %v2056
        %v2120 = vadd.f32 %v2119, %v2057
        %v2121 = vadd.f32 %v2120, %v2058
        %v2122 = vadd.f32 %v2121, %v2059
        %v2123 = vadd.f32 %v2122, %v2060
        %v2124 = vadd.f32 %v2123, %v2061
        %v2125 = vadd.f32 %v2124, %v2062
        %v2126 = vadd.f32 %v2125, %v2063
        %v2127 = vadd.f32 %v2126, %v2064
        %v2128 = vadd.f32 %v2127, %v2065
        %v2129 = vadd.f32 %v2128, %v2066
        %v2130 = vadd.f32 %v2129, %v2067
        %v2131 = vadd.f32 %v2130, %v2068
        %v2132 = vadd.f32 %v2131, %v2069
        %v2133 = vadd.f32 %v2132, %v2070
        %v2134 = vadd.f32 %v2133, %v2071
        %v2135 = vadd.f32 %v2134, %v2072
        %v2136 = vadd.f32 %v2135, %v2073
        %v2137 = vadd.f32 %v2136, %v2074
        %v2138 = vadd.f32 %v2137, %v2075
        %v2139 = vadd.f32 %v2138, %v2076
        %v2140 = vadd.f32 %v2139, %v2077
        %v2141 = vadd.f32 %v2140, %v2078
        %v2142 = vadd.f32 %v2141, %v2079
        %v2143 = vadd.f32 %v2142, %v2080
        %v2144 = vadd.f32 %v2143, %v2081
        %v2145 = vadd.f32 %v2144, %v2082
        %v2146 = vadd.f32 %v2145, %v2083
        %v2147 = vadd.f32 %v2146, %v2084
        %v2148 = vadd.f32 %v2147, %v2085
        %v2149 = vadd.f32 %v2148, %v2086
        %v2150 = vadd.f32 %v2149, %v2087
        %v2151 = vadd.f32 %v2150, %v2088
        %v2152 = vadd.f32 %v2151, %v2089
        %v2153 = vadd.f32 %v2152, %v2090
        %v2154 = vadd.f32 %v2153, %v2091
        %v2155 = vadd.f32 %v2154, %v2092
        %v2156 = vadd.f32 %v2155, %v2093
        %v2157 = vadd.f32 %v2156, %v2094
        %v2158 = vadd.f32 %v2157, %v2095
        %v2159 = vadd.f32 %v2158, %v2096
        %v2160 = vadd.f32 %v1518, %v2159
        %s2161 = scalar_lea.vmem %s186, 1536 [#allocation7]
        %v2162 = vld [vmem:[%s2161] sm:$0xff]
        %v2163 = vld [vmem:[%s2161 + $0x8] sm:$0xff]
        %v2164 = vld [vmem:[%s2161 + $0x10] sm:$0xff]
        %v2165 = vld [vmem:[%s2161 + $0x18] sm:$0xff]
        %v2166 = vld [vmem:[%s2161 + $0x20] sm:$0xff]
        %v2167 = vld [vmem:[%s2161 + $0x28] sm:$0xff]
        %v2168 = vld [vmem:[%s2161 + $0x30] sm:$0xff]
        %v2169 = vld [vmem:[%s2161 + $0x38] sm:$0xff]
        %v2170 = vld [vmem:[%s2161 + $0x40] sm:$0xff]
        %v2171 = vld [vmem:[%s2161 + $0x48] sm:$0xff]
        %v2172 = vld [vmem:[%s2161 + $0x50] sm:$0xff]
        %v2173 = vld [vmem:[%s2161 + $0x58] sm:$0xff]
        %v2174 = vld [vmem:[%s2161 + $0x60] sm:$0xff]
        %v2175 = vld [vmem:[%s2161 + $0x68] sm:$0xff]
        %v2176 = vld [vmem:[%s2161 + $0x70] sm:$0xff]
        %v2177 = vld [vmem:[%s2161 + $0x78] sm:$0xff]
        %v2178 = vld [vmem:[%s2161 + $0x80] sm:$0xff]
        %v2179 = vld [vmem:[%s2161 + $0x88] sm:$0xff]
        %v2180 = vld [vmem:[%s2161 + $0x90] sm:$0xff]
        %v2181 = vld [vmem:[%s2161 + $0x98] sm:$0xff]
        %v2182 = vld [vmem:[%s2161 + $0xa0] sm:$0xff]
        %v2183 = vld [vmem:[%s2161 + $0xa8] sm:$0xff]
        %v2184 = vld [vmem:[%s2161 + $0xb0] sm:$0xff]
        %v2185 = vld [vmem:[%s2161 + $0xb8] sm:$0xff]
        %v2186 = vld [vmem:[%s2161 + $0xc0] sm:$0xff]
        %v2187 = vld [vmem:[%s2161 + $0xc8] sm:$0xff]
        %v2188 = vld [vmem:[%s2161 + $0xd0] sm:$0xff]
        %v2189 = vld [vmem:[%s2161 + $0xd8] sm:$0xff]
        %v2190 = vld [vmem:[%s2161 + $0xe0] sm:$0xff]
        %v2191 = vld [vmem:[%s2161 + $0xe8] sm:$0xff]
        %v2192 = vld [vmem:[%s2161 + $0xf0] sm:$0xff]
        %v2193 = vld [vmem:[%s2161 + $0xf8] sm:$0xff]
        %v2194 = vld [vmem:[%s2161 + $0x100] sm:$0xff]
        %v2195 = vld [vmem:[%s2161 + $0x108] sm:$0xff]
        %v2196 = vld [vmem:[%s2161 + $0x110] sm:$0xff]
        %v2197 = vld [vmem:[%s2161 + $0x118] sm:$0xff]
        %v2198 = vld [vmem:[%s2161 + $0x120] sm:$0xff]
        %v2199 = vld [vmem:[%s2161 + $0x128] sm:$0xff]
        %v2200 = vld [vmem:[%s2161 + $0x130] sm:$0xff]
        %v2201 = vld [vmem:[%s2161 + $0x138] sm:$0xff]
        %v2202 = vld [vmem:[%s2161 + $0x140] sm:$0xff]
        %v2203 = vld [vmem:[%s2161 + $0x148] sm:$0xff]
        %v2204 = vld [vmem:[%s2161 + $0x150] sm:$0xff]
        %v2205 = vld [vmem:[%s2161 + $0x158] sm:$0xff]
        %v2206 = vld [vmem:[%s2161 + $0x160] sm:$0xff]
        %v2207 = vld [vmem:[%s2161 + $0x168] sm:$0xff]
        %v2208 = vld [vmem:[%s2161 + $0x170] sm:$0xff]
        %v2209 = vld [vmem:[%s2161 + $0x178] sm:$0xff]
        %v2210 = vld [vmem:[%s2161 + $0x180] sm:$0xff]
        %v2211 = vld [vmem:[%s2161 + $0x188] sm:$0xff]
        %v2212 = vld [vmem:[%s2161 + $0x190] sm:$0xff]
        %v2213 = vld [vmem:[%s2161 + $0x198] sm:$0xff]
        %v2214 = vld [vmem:[%s2161 + $0x1a0] sm:$0xff]
        %v2215 = vld [vmem:[%s2161 + $0x1a8] sm:$0xff]
        %v2216 = vld [vmem:[%s2161 + $0x1b0] sm:$0xff]
        %v2217 = vld [vmem:[%s2161 + $0x1b8] sm:$0xff]
        %v2218 = vld [vmem:[%s2161 + $0x1c0] sm:$0xff]
        %v2219 = vld [vmem:[%s2161 + $0x1c8] sm:$0xff]
        %v2220 = vld [vmem:[%s2161 + $0x1d0] sm:$0xff]
        %v2221 = vld [vmem:[%s2161 + $0x1d8] sm:$0xff]
        %v2222 = vld [vmem:[%s2161 + $0x1e0] sm:$0xff]
        %v2223 = vld [vmem:[%s2161 + $0x1e8] sm:$0xff]
        %v2224 = vld [vmem:[%s2161 + $0x1f0] sm:$0xff]
        %v2225 = vld [vmem:[%s2161 + $0x1f8] sm:$0xff]
        %s2226 = scalar_lea.vmem %s196, 1536 [#allocation9]
        %v2227 = vld [vmem:[%s2226] sm:$0xff]
        %v2228 = vld [vmem:[%s2226 + $0x8] sm:$0xff]
        %v2229 = vld [vmem:[%s2226 + $0x10] sm:$0xff]
        %v2230 = vld [vmem:[%s2226 + $0x18] sm:$0xff]
        %v2231 = vld [vmem:[%s2226 + $0x20] sm:$0xff]
        %v2232 = vld [vmem:[%s2226 + $0x28] sm:$0xff]
        %v2233 = vld [vmem:[%s2226 + $0x30] sm:$0xff]
        %v2234 = vld [vmem:[%s2226 + $0x38] sm:$0xff]
        %v2235 = vld [vmem:[%s2226 + $0x40] sm:$0xff]
        %v2236 = vld [vmem:[%s2226 + $0x48] sm:$0xff]
        %v2237 = vld [vmem:[%s2226 + $0x50] sm:$0xff]
        %v2238 = vld [vmem:[%s2226 + $0x58] sm:$0xff]
        %v2239 = vld [vmem:[%s2226 + $0x60] sm:$0xff]
        %v2240 = vld [vmem:[%s2226 + $0x68] sm:$0xff]
        %v2241 = vld [vmem:[%s2226 + $0x70] sm:$0xff]
        %v2242 = vld [vmem:[%s2226 + $0x78] sm:$0xff]
        %v2243 = vld [vmem:[%s2226 + $0x80] sm:$0xff]
        %v2244 = vld [vmem:[%s2226 + $0x88] sm:$0xff]
        %v2245 = vld [vmem:[%s2226 + $0x90] sm:$0xff]
        %v2246 = vld [vmem:[%s2226 + $0x98] sm:$0xff]
        %v2247 = vld [vmem:[%s2226 + $0xa0] sm:$0xff]
        %v2248 = vld [vmem:[%s2226 + $0xa8] sm:$0xff]
        %v2249 = vld [vmem:[%s2226 + $0xb0] sm:$0xff]
        %v2250 = vld [vmem:[%s2226 + $0xb8] sm:$0xff]
        %v2251 = vld [vmem:[%s2226 + $0xc0] sm:$0xff]
        %v2252 = vld [vmem:[%s2226 + $0xc8] sm:$0xff]
        %v2253 = vld [vmem:[%s2226 + $0xd0] sm:$0xff]
        %v2254 = vld [vmem:[%s2226 + $0xd8] sm:$0xff]
        %v2255 = vld [vmem:[%s2226 + $0xe0] sm:$0xff]
        %v2256 = vld [vmem:[%s2226 + $0xe8] sm:$0xff]
        %v2257 = vld [vmem:[%s2226 + $0xf0] sm:$0xff]
        %v2258 = vld [vmem:[%s2226 + $0xf8] sm:$0xff]
        %v2259 = vld [vmem:[%s2226 + $0x100] sm:$0xff]
        %v2260 = vld [vmem:[%s2226 + $0x108] sm:$0xff]
        %v2261 = vld [vmem:[%s2226 + $0x110] sm:$0xff]
        %v2262 = vld [vmem:[%s2226 + $0x118] sm:$0xff]
        %v2263 = vld [vmem:[%s2226 + $0x120] sm:$0xff]
        %v2264 = vld [vmem:[%s2226 + $0x128] sm:$0xff]
        %v2265 = vld [vmem:[%s2226 + $0x130] sm:$0xff]
        %v2266 = vld [vmem:[%s2226 + $0x138] sm:$0xff]
        %v2267 = vld [vmem:[%s2226 + $0x140] sm:$0xff]
        %v2268 = vld [vmem:[%s2226 + $0x148] sm:$0xff]
        %v2269 = vld [vmem:[%s2226 + $0x150] sm:$0xff]
        %v2270 = vld [vmem:[%s2226 + $0x158] sm:$0xff]
        %v2271 = vld [vmem:[%s2226 + $0x160] sm:$0xff]
        %v2272 = vld [vmem:[%s2226 + $0x168] sm:$0xff]
        %v2273 = vld [vmem:[%s2226 + $0x170] sm:$0xff]
        %v2274 = vld [vmem:[%s2226 + $0x178] sm:$0xff]
        %v2275 = vld [vmem:[%s2226 + $0x180] sm:$0xff]
        %v2276 = vld [vmem:[%s2226 + $0x188] sm:$0xff]
        %v2277 = vld [vmem:[%s2226 + $0x190] sm:$0xff]
        %v2278 = vld [vmem:[%s2226 + $0x198] sm:$0xff]
        %v2279 = vld [vmem:[%s2226 + $0x1a0] sm:$0xff]
        %v2280 = vld [vmem:[%s2226 + $0x1a8] sm:$0xff]
        %v2281 = vld [vmem:[%s2226 + $0x1b0] sm:$0xff]
        %v2282 = vld [vmem:[%s2226 + $0x1b8] sm:$0xff]
        %v2283 = vld [vmem:[%s2226 + $0x1c0] sm:$0xff]
        %v2284 = vld [vmem:[%s2226 + $0x1c8] sm:$0xff]
        %v2285 = vld [vmem:[%s2226 + $0x1d0] sm:$0xff]
        %v2286 = vld [vmem:[%s2226 + $0x1d8] sm:$0xff]
        %v2287 = vld [vmem:[%s2226 + $0x1e0] sm:$0xff]
        %v2288 = vld [vmem:[%s2226 + $0x1e8] sm:$0xff]
        %v2289 = vld [vmem:[%s2226 + $0x1f0] sm:$0xff]
        %v2290 = vld [vmem:[%s2226 + $0x1f8] sm:$0xff]
        %v2291 = vadd.f32 %v2162, %v2163
        %v2292 = vadd.f32 %v2291, %v2164
        %v2293 = vadd.f32 %v2292, %v2165
        %v2294 = vadd.f32 %v2293, %v2166
        %v2295 = vadd.f32 %v2294, %v2167
        %v2296 = vadd.f32 %v2295, %v2168
        %v2297 = vadd.f32 %v2296, %v2169
        %v2298 = vadd.f32 %v2297, %v2170
        %v2299 = vadd.f32 %v2298, %v2171
        %v2300 = vadd.f32 %v2299, %v2172
        %v2301 = vadd.f32 %v2300, %v2173
        %v2302 = vadd.f32 %v2301, %v2174
        %v2303 = vadd.f32 %v2302, %v2175
        %v2304 = vadd.f32 %v2303, %v2176
        %v2305 = vadd.f32 %v2304, %v2177
        %v2306 = vadd.f32 %v2305, %v2178
        %v2307 = vadd.f32 %v2306, %v2179
        %v2308 = vadd.f32 %v2307, %v2180
        %v2309 = vadd.f32 %v2308, %v2181
        %v2310 = vadd.f32 %v2309, %v2182
        %v2311 = vadd.f32 %v2310, %v2183
        %v2312 = vadd.f32 %v2311, %v2184
        %v2313 = vadd.f32 %v2312, %v2185
        %v2314 = vadd.f32 %v2313, %v2186
        %v2315 = vadd.f32 %v2314, %v2187
        %v2316 = vadd.f32 %v2315, %v2188
        %v2317 = vadd.f32 %v2316, %v2189
        %v2318 = vadd.f32 %v2317, %v2190
        %v2319 = vadd.f32 %v2318, %v2191
        %v2320 = vadd.f32 %v2319, %v2192
        %v2321 = vadd.f32 %v2320, %v2193
        %v2322 = vadd.f32 %v2321, %v2194
        %v2323 = vadd.f32 %v2322, %v2195
        %v2324 = vadd.f32 %v2323, %v2196
        %v2325 = vadd.f32 %v2324, %v2197
        %v2326 = vadd.f32 %v2325, %v2198
        %v2327 = vadd.f32 %v2326, %v2199
        %v2328 = vadd.f32 %v2327, %v2200
        %v2329 = vadd.f32 %v2328, %v2201
        %v2330 = vadd.f32 %v2329, %v2202
        %v2331 = vadd.f32 %v2330, %v2203
        %v2332 = vadd.f32 %v2331, %v2204
        %v2333 = vadd.f32 %v2332, %v2205
        %v2334 = vadd.f32 %v2333, %v2206
        %v2335 = vadd.f32 %v2334, %v2207
        %v2336 = vadd.f32 %v2335, %v2208
        %v2337 = vadd.f32 %v2336, %v2209
        %v2338 = vadd.f32 %v2337, %v2210
        %v2339 = vadd.f32 %v2338, %v2211
        %v2340 = vadd.f32 %v2339, %v2212
        %v2341 = vadd.f32 %v2340, %v2213
        %v2342 = vadd.f32 %v2341, %v2214
        %v2343 = vadd.f32 %v2342, %v2215
        %v2344 = vadd.f32 %v2343, %v2216
        %v2345 = vadd.f32 %v2344, %v2217
        %v2346 = vadd.f32 %v2345, %v2218
        %v2347 = vadd.f32 %v2346, %v2219
        %v2348 = vadd.f32 %v2347, %v2220
        %v2349 = vadd.f32 %v2348, %v2221
        %v2350 = vadd.f32 %v2349, %v2222
        %v2351 = vadd.f32 %v2350, %v2223
        %v2352 = vadd.f32 %v2351, %v2224
        %v2353 = vadd.f32 %v2352, %v2225
        %v2354 = vadd.f32 %v1712, %v2353
        %v2355 = vadd.f32 %v2227, %v2228
        %v2356 = vadd.f32 %v2355, %v2229
        %v2357 = vadd.f32 %v2356, %v2230
        %v2358 = vadd.f32 %v2357, %v2231
        %v2359 = vadd.f32 %v2358, %v2232
        %v2360 = vadd.f32 %v2359, %v2233
        %v2361 = vadd.f32 %v2360, %v2234
        %v2362 = vadd.f32 %v2361, %v2235
        %v2363 = vadd.f32 %v2362, %v2236
        %v2364 = vadd.f32 %v2363, %v2237
        %v2365 = vadd.f32 %v2364, %v2238
        %v2366 = vadd.f32 %v2365, %v2239
        %v2367 = vadd.f32 %v2366, %v2240
        %v2368 = vadd.f32 %v2367, %v2241
        %v2369 = vadd.f32 %v2368, %v2242
        %v2370 = vadd.f32 %v2369, %v2243
        %v2371 = vadd.f32 %v2370, %v2244
        %v2372 = vadd.f32 %v2371, %v2245
        %v2373 = vadd.f32 %v2372, %v2246
        %v2374 = vadd.f32 %v2373, %v2247
        %v2375 = vadd.f32 %v2374, %v2248
        %v2376 = vadd.f32 %v2375, %v2249
        %v2377 = vadd.f32 %v2376, %v2250
        %v2378 = vadd.f32 %v2377, %v2251
        %v2379 = vadd.f32 %v2378, %v2252
        %v2380 = vadd.f32 %v2379, %v2253
        %v2381 = vadd.f32 %v2380, %v2254
        %v2382 = vadd.f32 %v2381, %v2255
        %v2383 = vadd.f32 %v2382, %v2256
        %v2384 = vadd.f32 %v2383, %v2257
        %v2385 = vadd.f32 %v2384, %v2258
        %v2386 = vadd.f32 %v2385, %v2259
        %v2387 = vadd.f32 %v2386, %v2260
        %v2388 = vadd.f32 %v2387, %v2261
        %v2389 = vadd.f32 %v2388, %v2262
        %v2390 = vadd.f32 %v2389, %v2263
        %v2391 = vadd.f32 %v2390, %v2264
        %v2392 = vadd.f32 %v2391, %v2265
        %v2393 = vadd.f32 %v2392, %v2266
        %v2394 = vadd.f32 %v2393, %v2267
        %v2395 = vadd.f32 %v2394, %v2268
        %v2396 = vadd.f32 %v2395, %v2269
        %v2397 = vadd.f32 %v2396, %v2270
        %v2398 = vadd.f32 %v2397, %v2271
        %v2399 = vadd.f32 %v2398, %v2272
        %v2400 = vadd.f32 %v2399, %v2273
        %v2401 = vadd.f32 %v2400, %v2274
        %v2402 = vadd.f32 %v2401, %v2275
        %v2403 = vadd.f32 %v2402, %v2276
        %v2404 = vadd.f32 %v2403, %v2277
        %v2405 = vadd.f32 %v2404, %v2278
        %v2406 = vadd.f32 %v2405, %v2279
        %v2407 = vadd.f32 %v2406, %v2280
        %v2408 = vadd.f32 %v2407, %v2281
        %v2409 = vadd.f32 %v2408, %v2282
        %v2410 = vadd.f32 %v2409, %v2283
        %v2411 = vadd.f32 %v2410, %v2284
        %v2412 = vadd.f32 %v2411, %v2285
        %v2413 = vadd.f32 %v2412, %v2286
        %v2414 = vadd.f32 %v2413, %v2287
        %v2415 = vadd.f32 %v2414, %v2288
        %v2416 = vadd.f32 %v2415, %v2289
        %v2417 = vadd.f32 %v2416, %v2290
        %v2418 = vadd.f32 %v1776, %v2417
        %v2419 = vmul.f32 %v2162, %v2162
        %v2420 = vmul.f32 %v2163, %v2163
        %v2421 = vmul.f32 %v2164, %v2164
        %v2422 = vmul.f32 %v2165, %v2165
        %v2423 = vmul.f32 %v2166, %v2166
        %v2424 = vmul.f32 %v2167, %v2167
        %v2425 = vmul.f32 %v2168, %v2168
        %v2426 = vmul.f32 %v2169, %v2169
        %v2427 = vmul.f32 %v2170, %v2170
        %v2428 = vmul.f32 %v2171, %v2171
        %v2429 = vmul.f32 %v2172, %v2172
        %v2430 = vmul.f32 %v2173, %v2173
        %v2431 = vmul.f32 %v2174, %v2174
        %v2432 = vmul.f32 %v2175, %v2175
        %v2433 = vmul.f32 %v2176, %v2176
        %v2434 = vmul.f32 %v2177, %v2177
        %v2435 = vmul.f32 %v2178, %v2178
        %v2436 = vmul.f32 %v2179, %v2179
        %v2437 = vmul.f32 %v2180, %v2180
        %v2438 = vmul.f32 %v2181, %v2181
        %v2439 = vmul.f32 %v2182, %v2182
        %v2440 = vmul.f32 %v2183, %v2183
        %v2441 = vmul.f32 %v2184, %v2184
        %v2442 = vmul.f32 %v2185, %v2185
        %v2443 = vmul.f32 %v2186, %v2186
        %v2444 = vmul.f32 %v2187, %v2187
        %v2445 = vmul.f32 %v2188, %v2188
        %v2446 = vmul.f32 %v2189, %v2189
        %v2447 = vmul.f32 %v2190, %v2190
        %v2448 = vmul.f32 %v2191, %v2191
        %v2449 = vmul.f32 %v2192, %v2192
        %v2450 = vmul.f32 %v2193, %v2193
        %v2451 = vmul.f32 %v2194, %v2194
        %v2452 = vmul.f32 %v2195, %v2195
        %v2453 = vmul.f32 %v2196, %v2196
        %v2454 = vmul.f32 %v2197, %v2197
        %v2455 = vmul.f32 %v2198, %v2198
        %v2456 = vmul.f32 %v2199, %v2199
        %v2457 = vmul.f32 %v2200, %v2200
        %v2458 = vmul.f32 %v2201, %v2201
        %v2459 = vmul.f32 %v2202, %v2202
        %v2460 = vmul.f32 %v2203, %v2203
        %v2461 = vmul.f32 %v2204, %v2204
        %v2462 = vmul.f32 %v2205, %v2205
        %v2463 = vmul.f32 %v2206, %v2206
        %v2464 = vmul.f32 %v2207, %v2207
        %v2465 = vmul.f32 %v2208, %v2208
        %v2466 = vmul.f32 %v2209, %v2209
        %v2467 = vmul.f32 %v2210, %v2210
        %v2468 = vmul.f32 %v2211, %v2211
        %v2469 = vmul.f32 %v2212, %v2212
        %v2470 = vmul.f32 %v2213, %v2213
        %v2471 = vmul.f32 %v2214, %v2214
        %v2472 = vmul.f32 %v2215, %v2215
        %v2473 = vmul.f32 %v2216, %v2216
        %v2474 = vmul.f32 %v2217, %v2217
        %v2475 = vmul.f32 %v2218, %v2218
        %v2476 = vmul.f32 %v2219, %v2219
        %v2477 = vmul.f32 %v2220, %v2220
        %v2478 = vmul.f32 %v2221, %v2221
        %v2479 = vmul.f32 %v2222, %v2222
        %v2480 = vmul.f32 %v2223, %v2223
        %v2481 = vmul.f32 %v2224, %v2224
        %v2482 = vmul.f32 %v2225, %v2225
        %v2483 = vadd.f32 %v2419, %v2420
        %v2484 = vadd.f32 %v2483, %v2421
        %v2485 = vadd.f32 %v2484, %v2422
        %v2486 = vadd.f32 %v2485, %v2423
        %v2487 = vadd.f32 %v2486, %v2424
        %v2488 = vadd.f32 %v2487, %v2425
        %v2489 = vadd.f32 %v2488, %v2426
        %v2490 = vadd.f32 %v2489, %v2427
        %v2491 = vadd.f32 %v2490, %v2428
        %v2492 = vadd.f32 %v2491, %v2429
        %v2493 = vadd.f32 %v2492, %v2430
        %v2494 = vadd.f32 %v2493, %v2431
        %v2495 = vadd.f32 %v2494, %v2432
        %v2496 = vadd.f32 %v2495, %v2433
        %v2497 = vadd.f32 %v2496, %v2434
        %v2498 = vadd.f32 %v2497, %v2435
        %v2499 = vadd.f32 %v2498, %v2436
        %v2500 = vadd.f32 %v2499, %v2437
        %v2501 = vadd.f32 %v2500, %v2438
        %v2502 = vadd.f32 %v2501, %v2439
        %v2503 = vadd.f32 %v2502, %v2440
        %v2504 = vadd.f32 %v2503, %v2441
        %v2505 = vadd.f32 %v2504, %v2442
        %v2506 = vadd.f32 %v2505, %v2443
        %v2507 = vadd.f32 %v2506, %v2444
        %v2508 = vadd.f32 %v2507, %v2445
        %v2509 = vadd.f32 %v2508, %v2446
        %v2510 = vadd.f32 %v2509, %v2447
        %v2511 = vadd.f32 %v2510, %v2448
        %v2512 = vadd.f32 %v2511, %v2449
        %v2513 = vadd.f32 %v2512, %v2450
        %v2514 = vadd.f32 %v2513, %v2451
        %v2515 = vadd.f32 %v2514, %v2452
        %v2516 = vadd.f32 %v2515, %v2453
        %v2517 = vadd.f32 %v2516, %v2454
        %v2518 = vadd.f32 %v2517, %v2455
        %v2519 = vadd.f32 %v2518, %v2456
        %v2520 = vadd.f32 %v2519, %v2457
        %v2521 = vadd.f32 %v2520, %v2458
        %v2522 = vadd.f32 %v2521, %v2459
        %v2523 = vadd.f32 %v2522, %v2460
        %v2524 = vadd.f32 %v2523, %v2461
        %v2525 = vadd.f32 %v2524, %v2462
        %v2526 = vadd.f32 %v2525, %v2463
        %v2527 = vadd.f32 %v2526, %v2464
        %v2528 = vadd.f32 %v2527, %v2465
        %v2529 = vadd.f32 %v2528, %v2466
        %v2530 = vadd.f32 %v2529, %v2467
        %v2531 = vadd.f32 %v2530, %v2468
        %v2532 = vadd.f32 %v2531, %v2469
        %v2533 = vadd.f32 %v2532, %v2470
        %v2534 = vadd.f32 %v2533, %v2471
        %v2535 = vadd.f32 %v2534, %v2472
        %v2536 = vadd.f32 %v2535, %v2473
        %v2537 = vadd.f32 %v2536, %v2474
        %v2538 = vadd.f32 %v2537, %v2475
        %v2539 = vadd.f32 %v2538, %v2476
        %v2540 = vadd.f32 %v2539, %v2477
        %v2541 = vadd.f32 %v2540, %v2478
        %v2542 = vadd.f32 %v2541, %v2479
        %v2543 = vadd.f32 %v2542, %v2480
        %v2544 = vadd.f32 %v2543, %v2481
        %v2545 = vadd.f32 %v2544, %v2482
        %v2546 = vadd.f32 %v1904, %v2545
        %v2547 = vmul.f32 %v2227, %v2227
        %v2548 = vmul.f32 %v2228, %v2228
        %v2549 = vmul.f32 %v2229, %v2229
        %v2550 = vmul.f32 %v2230, %v2230
        %v2551 = vmul.f32 %v2231, %v2231
        %v2552 = vmul.f32 %v2232, %v2232
        %v2553 = vmul.f32 %v2233, %v2233
        %v2554 = vmul.f32 %v2234, %v2234
        %v2555 = vmul.f32 %v2235, %v2235
        %v2556 = vmul.f32 %v2236, %v2236
        %v2557 = vmul.f32 %v2237, %v2237
        %v2558 = vmul.f32 %v2238, %v2238
        %v2559 = vmul.f32 %v2239, %v2239
        %v2560 = vmul.f32 %v2240, %v2240
        %v2561 = vmul.f32 %v2241, %v2241
        %v2562 = vmul.f32 %v2242, %v2242
        %v2563 = vmul.f32 %v2243, %v2243
        %v2564 = vmul.f32 %v2244, %v2244
        %v2565 = vmul.f32 %v2245, %v2245
        %v2566 = vmul.f32 %v2246, %v2246
        %v2567 = vmul.f32 %v2247, %v2247
        %v2568 = vmul.f32 %v2248, %v2248
        %v2569 = vmul.f32 %v2249, %v2249
        %v2570 = vmul.f32 %v2250, %v2250
        %v2571 = vmul.f32 %v2251, %v2251
        %v2572 = vmul.f32 %v2252, %v2252
        %v2573 = vmul.f32 %v2253, %v2253
        %v2574 = vmul.f32 %v2254, %v2254
        %v2575 = vmul.f32 %v2255, %v2255
        %v2576 = vmul.f32 %v2256, %v2256
        %v2577 = vmul.f32 %v2257, %v2257
        %v2578 = vmul.f32 %v2258, %v2258
        %v2579 = vmul.f32 %v2259, %v2259
        %v2580 = vmul.f32 %v2260, %v2260
        %v2581 = vmul.f32 %v2261, %v2261
        %v2582 = vmul.f32 %v2262, %v2262
        %v2583 = vmul.f32 %v2263, %v2263
        %v2584 = vmul.f32 %v2264, %v2264
        %v2585 = vmul.f32 %v2265, %v2265
        %v2586 = vmul.f32 %v2266, %v2266
        %v2587 = vmul.f32 %v2267, %v2267
        %v2588 = vmul.f32 %v2268, %v2268
        %v2589 = vmul.f32 %v2269, %v2269
        %v2590 = vmul.f32 %v2270, %v2270
        %v2591 = vmul.f32 %v2271, %v2271
        %v2592 = vmul.f32 %v2272, %v2272
        %v2593 = vmul.f32 %v2273, %v2273
        %v2594 = vmul.f32 %v2274, %v2274
        %v2595 = vmul.f32 %v2275, %v2275
        %v2596 = vmul.f32 %v2276, %v2276
        %v2597 = vmul.f32 %v2277, %v2277
        %v2598 = vmul.f32 %v2278, %v2278
        %v2599 = vmul.f32 %v2279, %v2279
        %v2600 = vmul.f32 %v2280, %v2280
        %v2601 = vmul.f32 %v2281, %v2281
        %v2602 = vmul.f32 %v2282, %v2282
        %v2603 = vmul.f32 %v2283, %v2283
        %v2604 = vmul.f32 %v2284, %v2284
        %v2605 = vmul.f32 %v2285, %v2285
        %v2606 = vmul.f32 %v2286, %v2286
        %v2607 = vmul.f32 %v2287, %v2287
        %v2608 = vmul.f32 %v2288, %v2288
        %v2609 = vmul.f32 %v2289, %v2289
        %v2610 = vmul.f32 %v2290, %v2290
        %v2611 = vadd.f32 %v2547, %v2548
        %v2612 = vadd.f32 %v2611, %v2549
        %v2613 = vadd.f32 %v2612, %v2550
        %v2614 = vadd.f32 %v2613, %v2551
        %v2615 = vadd.f32 %v2614, %v2552
        %v2616 = vadd.f32 %v2615, %v2553
        %v2617 = vadd.f32 %v2616, %v2554
        %v2618 = vadd.f32 %v2617, %v2555
        %v2619 = vadd.f32 %v2618, %v2556
        %v2620 = vadd.f32 %v2619, %v2557
        %v2621 = vadd.f32 %v2620, %v2558
        %v2622 = vadd.f32 %v2621, %v2559
        %v2623 = vadd.f32 %v2622, %v2560
        %v2624 = vadd.f32 %v2623, %v2561
        %v2625 = vadd.f32 %v2624, %v2562
        %v2626 = vadd.f32 %v2625, %v2563
        %v2627 = vadd.f32 %v2626, %v2564
        %v2628 = vadd.f32 %v2627, %v2565
        %v2629 = vadd.f32 %v2628, %v2566
        %v2630 = vadd.f32 %v2629, %v2567
        %v2631 = vadd.f32 %v2630, %v2568
        %v2632 = vadd.f32 %v2631, %v2569
        %v2633 = vadd.f32 %v2632, %v2570
        %v2634 = vadd.f32 %v2633, %v2571
        %v2635 = vadd.f32 %v2634, %v2572
        %v2636 = vadd.f32 %v2635, %v2573
        %v2637 = vadd.f32 %v2636, %v2574
        %v2638 = vadd.f32 %v2637, %v2575
        %v2639 = vadd.f32 %v2638, %v2576
        %v2640 = vadd.f32 %v2639, %v2577
        %v2641 = vadd.f32 %v2640, %v2578
        %v2642 = vadd.f32 %v2641, %v2579
        %v2643 = vadd.f32 %v2642, %v2580
        %v2644 = vadd.f32 %v2643, %v2581
        %v2645 = vadd.f32 %v2644, %v2582
        %v2646 = vadd.f32 %v2645, %v2583
        %v2647 = vadd.f32 %v2646, %v2584
        %v2648 = vadd.f32 %v2647, %v2585
        %v2649 = vadd.f32 %v2648, %v2586
        %v2650 = vadd.f32 %v2649, %v2587
        %v2651 = vadd.f32 %v2650, %v2588
        %v2652 = vadd.f32 %v2651, %v2589
        %v2653 = vadd.f32 %v2652, %v2590
        %v2654 = vadd.f32 %v2653, %v2591
        %v2655 = vadd.f32 %v2654, %v2592
        %v2656 = vadd.f32 %v2655, %v2593
        %v2657 = vadd.f32 %v2656, %v2594
        %v2658 = vadd.f32 %v2657, %v2595
        %v2659 = vadd.f32 %v2658, %v2596
        %v2660 = vadd.f32 %v2659, %v2597
        %v2661 = vadd.f32 %v2660, %v2598
        %v2662 = vadd.f32 %v2661, %v2599
        %v2663 = vadd.f32 %v2662, %v2600
        %v2664 = vadd.f32 %v2663, %v2601
        %v2665 = vadd.f32 %v2664, %v2602
        %v2666 = vadd.f32 %v2665, %v2603
        %v2667 = vadd.f32 %v2666, %v2604
        %v2668 = vadd.f32 %v2667, %v2605
        %v2669 = vadd.f32 %v2668, %v2606
        %v2670 = vadd.f32 %v2669, %v2607
        %v2671 = vadd.f32 %v2670, %v2608
        %v2672 = vadd.f32 %v2671, %v2609
        %v2673 = vadd.f32 %v2672, %v2610
        %v2674 = vadd.f32 %v2032, %v2673
        %v2675 = vmul.f32 %v2162, %v2227
        %v2676 = vmul.f32 %v2163, %v2228
        %v2677 = vmul.f32 %v2164, %v2229
        %v2678 = vmul.f32 %v2165, %v2230
        %v2679 = vmul.f32 %v2166, %v2231
        %v2680 = vmul.f32 %v2167, %v2232
        %v2681 = vmul.f32 %v2168, %v2233
        %v2682 = vmul.f32 %v2169, %v2234
        %v2683 = vmul.f32 %v2170, %v2235
        %v2684 = vmul.f32 %v2171, %v2236
        %v2685 = vmul.f32 %v2172, %v2237
        %v2686 = vmul.f32 %v2173, %v2238
        %v2687 = vmul.f32 %v2174, %v2239
        %v2688 = vmul.f32 %v2175, %v2240
        %v2689 = vmul.f32 %v2176, %v2241
        %v2690 = vmul.f32 %v2177, %v2242
        %v2691 = vmul.f32 %v2178, %v2243
        %v2692 = vmul.f32 %v2179, %v2244
        %v2693 = vmul.f32 %v2180, %v2245
        %v2694 = vmul.f32 %v2181, %v2246
        %v2695 = vmul.f32 %v2182, %v2247
        %v2696 = vmul.f32 %v2183, %v2248
        %v2697 = vmul.f32 %v2184, %v2249
        %v2698 = vmul.f32 %v2185, %v2250
        %v2699 = vmul.f32 %v2186, %v2251
        %v2700 = vmul.f32 %v2187, %v2252
        %v2701 = vmul.f32 %v2188, %v2253
        %v2702 = vmul.f32 %v2189, %v2254
        %v2703 = vmul.f32 %v2190, %v2255
        %v2704 = vmul.f32 %v2191, %v2256
        %v2705 = vmul.f32 %v2192, %v2257
        %v2706 = vmul.f32 %v2193, %v2258
        %v2707 = vmul.f32 %v2194, %v2259
        %v2708 = vmul.f32 %v2195, %v2260
        %v2709 = vmul.f32 %v2196, %v2261
        %v2710 = vmul.f32 %v2197, %v2262
        %v2711 = vmul.f32 %v2198, %v2263
        %v2712 = vmul.f32 %v2199, %v2264
        %v2713 = vmul.f32 %v2200, %v2265
        %v2714 = vmul.f32 %v2201, %v2266
        %v2715 = vmul.f32 %v2202, %v2267
        %v2716 = vmul.f32 %v2203, %v2268
        %v2717 = vmul.f32 %v2204, %v2269
        %v2718 = vmul.f32 %v2205, %v2270
        %v2719 = vmul.f32 %v2206, %v2271
        %v2720 = vmul.f32 %v2207, %v2272
        %v2721 = vmul.f32 %v2208, %v2273
        %v2722 = vmul.f32 %v2209, %v2274
        %v2723 = vmul.f32 %v2210, %v2275
        %v2724 = vmul.f32 %v2211, %v2276
        %v2725 = vmul.f32 %v2212, %v2277
        %v2726 = vmul.f32 %v2213, %v2278
        %v2727 = vmul.f32 %v2214, %v2279
        %v2728 = vmul.f32 %v2215, %v2280
        %v2729 = vmul.f32 %v2216, %v2281
        %v2730 = vmul.f32 %v2217, %v2282
        %v2731 = vmul.f32 %v2218, %v2283
        %v2732 = vmul.f32 %v2219, %v2284
        %v2733 = vmul.f32 %v2220, %v2285
        %v2734 = vmul.f32 %v2221, %v2286
        %v2735 = vmul.f32 %v2222, %v2287
        %v2736 = vmul.f32 %v2223, %v2288
        %v2737 = vmul.f32 %v2224, %v2289
        %v2738 = vmul.f32 %v2225, %v2290
        %v2739 = vadd.f32 %v2675, %v2676
        %v2740 = vadd.f32 %v2739, %v2677
        %v2741 = vadd.f32 %v2740, %v2678
        %v2742 = vadd.f32 %v2741, %v2679
        %v2743 = vadd.f32 %v2742, %v2680
        %v2744 = vadd.f32 %v2743, %v2681
        %v2745 = vadd.f32 %v2744, %v2682
        %v2746 = vadd.f32 %v2745, %v2683
        %v2747 = vadd.f32 %v2746, %v2684
        %v2748 = vadd.f32 %v2747, %v2685
        %v2749 = vadd.f32 %v2748, %v2686
        %v2750 = vadd.f32 %v2749, %v2687
        %v2751 = vadd.f32 %v2750, %v2688
        %v2752 = vadd.f32 %v2751, %v2689
        %v2753 = vadd.f32 %v2752, %v2690
        %v2754 = vadd.f32 %v2753, %v2691
        %v2755 = vadd.f32 %v2754, %v2692
        %v2756 = vadd.f32 %v2755, %v2693
        %v2757 = vadd.f32 %v2756, %v2694
        %v2758 = vadd.f32 %v2757, %v2695
        %v2759 = vadd.f32 %v2758, %v2696
        %v2760 = vadd.f32 %v2759, %v2697
        %v2761 = vadd.f32 %v2760, %v2698
        %v2762 = vadd.f32 %v2761, %v2699
        %v2763 = vadd.f32 %v2762, %v2700
        %v2764 = vadd.f32 %v2763, %v2701
        %v2765 = vadd.f32 %v2764, %v2702
        %v2766 = vadd.f32 %v2765, %v2703
        %v2767 = vadd.f32 %v2766, %v2704
        %v2768 = vadd.f32 %v2767, %v2705
        %v2769 = vadd.f32 %v2768, %v2706
        %v2770 = vadd.f32 %v2769, %v2707
        %v2771 = vadd.f32 %v2770, %v2708
        %v2772 = vadd.f32 %v2771, %v2709
        %v2773 = vadd.f32 %v2772, %v2710
        %v2774 = vadd.f32 %v2773, %v2711
        %v2775 = vadd.f32 %v2774, %v2712
        %v2776 = vadd.f32 %v2775, %v2713
        %v2777 = vadd.f32 %v2776, %v2714
        %v2778 = vadd.f32 %v2777, %v2715
        %v2779 = vadd.f32 %v2778, %v2716
        %v2780 = vadd.f32 %v2779, %v2717
        %v2781 = vadd.f32 %v2780, %v2718
        %v2782 = vadd.f32 %v2781, %v2719
        %v2783 = vadd.f32 %v2782, %v2720
        %v2784 = vadd.f32 %v2783, %v2721
        %v2785 = vadd.f32 %v2784, %v2722
        %v2786 = vadd.f32 %v2785, %v2723
        %v2787 = vadd.f32 %v2786, %v2724
        %v2788 = vadd.f32 %v2787, %v2725
        %v2789 = vadd.f32 %v2788, %v2726
        %v2790 = vadd.f32 %v2789, %v2727
        %v2791 = vadd.f32 %v2790, %v2728
        %v2792 = vadd.f32 %v2791, %v2729
        %v2793 = vadd.f32 %v2792, %v2730
        %v2794 = vadd.f32 %v2793, %v2731
        %v2795 = vadd.f32 %v2794, %v2732
        %v2796 = vadd.f32 %v2795, %v2733
        %v2797 = vadd.f32 %v2796, %v2734
        %v2798 = vadd.f32 %v2797, %v2735
        %v2799 = vadd.f32 %v2798, %v2736
        %v2800 = vadd.f32 %v2799, %v2737
        %v2801 = vadd.f32 %v2800, %v2738
        %v2802 = vadd.f32 %v2160, %v2801
        %s2803 = scalar_lea.vmem %s186, 2048 [#allocation7]
        %v2804 = vld [vmem:[%s2803] sm:$0xff]
        %v2805 = vld [vmem:[%s2803 + $0x8] sm:$0xff]
        %v2806 = vld [vmem:[%s2803 + $0x10] sm:$0xff]
        %v2807 = vld [vmem:[%s2803 + $0x18] sm:$0xff]
        %v2808 = vld [vmem:[%s2803 + $0x20] sm:$0xff]
        %v2809 = vld [vmem:[%s2803 + $0x28] sm:$0xff]
        %v2810 = vld [vmem:[%s2803 + $0x30] sm:$0xff]
        %v2811 = vld [vmem:[%s2803 + $0x38] sm:$0xff]
        %v2812 = vld [vmem:[%s2803 + $0x40] sm:$0xff]
        %v2813 = vld [vmem:[%s2803 + $0x48] sm:$0xff]
        %v2814 = vld [vmem:[%s2803 + $0x50] sm:$0xff]
        %v2815 = vld [vmem:[%s2803 + $0x58] sm:$0xff]
        %v2816 = vld [vmem:[%s2803 + $0x60] sm:$0xff]
        %v2817 = vld [vmem:[%s2803 + $0x68] sm:$0xff]
        %v2818 = vld [vmem:[%s2803 + $0x70] sm:$0xff]
        %v2819 = vld [vmem:[%s2803 + $0x78] sm:$0xff]
        %v2820 = vld [vmem:[%s2803 + $0x80] sm:$0xff]
        %v2821 = vld [vmem:[%s2803 + $0x88] sm:$0xff]
        %v2822 = vld [vmem:[%s2803 + $0x90] sm:$0xff]
        %v2823 = vld [vmem:[%s2803 + $0x98] sm:$0xff]
        %v2824 = vld [vmem:[%s2803 + $0xa0] sm:$0xff]
        %v2825 = vld [vmem:[%s2803 + $0xa8] sm:$0xff]
        %v2826 = vld [vmem:[%s2803 + $0xb0] sm:$0xff]
        %v2827 = vld [vmem:[%s2803 + $0xb8] sm:$0xff]
        %v2828 = vld [vmem:[%s2803 + $0xc0] sm:$0xff]
        %v2829 = vld [vmem:[%s2803 + $0xc8] sm:$0xff]
        %v2830 = vld [vmem:[%s2803 + $0xd0] sm:$0xff]
        %v2831 = vld [vmem:[%s2803 + $0xd8] sm:$0xff]
        %v2832 = vld [vmem:[%s2803 + $0xe0] sm:$0xff]
        %v2833 = vld [vmem:[%s2803 + $0xe8] sm:$0xff]
        %v2834 = vld [vmem:[%s2803 + $0xf0] sm:$0xff]
        %v2835 = vld [vmem:[%s2803 + $0xf8] sm:$0xff]
        %v2836 = vld [vmem:[%s2803 + $0x100] sm:$0xff]
        %v2837 = vld [vmem:[%s2803 + $0x108] sm:$0xff]
        %v2838 = vld [vmem:[%s2803 + $0x110] sm:$0xff]
        %v2839 = vld [vmem:[%s2803 + $0x118] sm:$0xff]
        %v2840 = vld [vmem:[%s2803 + $0x120] sm:$0xff]
        %v2841 = vld [vmem:[%s2803 + $0x128] sm:$0xff]
        %v2842 = vld [vmem:[%s2803 + $0x130] sm:$0xff]
        %v2843 = vld [vmem:[%s2803 + $0x138] sm:$0xff]
        %v2844 = vld [vmem:[%s2803 + $0x140] sm:$0xff]
        %v2845 = vld [vmem:[%s2803 + $0x148] sm:$0xff]
        %v2846 = vld [vmem:[%s2803 + $0x150] sm:$0xff]
        %v2847 = vld [vmem:[%s2803 + $0x158] sm:$0xff]
        %v2848 = vld [vmem:[%s2803 + $0x160] sm:$0xff]
        %v2849 = vld [vmem:[%s2803 + $0x168] sm:$0xff]
        %v2850 = vld [vmem:[%s2803 + $0x170] sm:$0xff]
        %v2851 = vld [vmem:[%s2803 + $0x178] sm:$0xff]
        %v2852 = vld [vmem:[%s2803 + $0x180] sm:$0xff]
        %v2853 = vld [vmem:[%s2803 + $0x188] sm:$0xff]
        %v2854 = vld [vmem:[%s2803 + $0x190] sm:$0xff]
        %v2855 = vld [vmem:[%s2803 + $0x198] sm:$0xff]
        %v2856 = vld [vmem:[%s2803 + $0x1a0] sm:$0xff]
        %v2857 = vld [vmem:[%s2803 + $0x1a8] sm:$0xff]
        %v2858 = vld [vmem:[%s2803 + $0x1b0] sm:$0xff]
        %v2859 = vld [vmem:[%s2803 + $0x1b8] sm:$0xff]
        %v2860 = vld [vmem:[%s2803 + $0x1c0] sm:$0xff]
        %v2861 = vld [vmem:[%s2803 + $0x1c8] sm:$0xff]
        %v2862 = vld [vmem:[%s2803 + $0x1d0] sm:$0xff]
        %v2863 = vld [vmem:[%s2803 + $0x1d8] sm:$0xff]
        %v2864 = vld [vmem:[%s2803 + $0x1e0] sm:$0xff]
        %v2865 = vld [vmem:[%s2803 + $0x1e8] sm:$0xff]
        %v2866 = vld [vmem:[%s2803 + $0x1f0] sm:$0xff]
        %v2867 = vld [vmem:[%s2803 + $0x1f8] sm:$0xff]
        %s2868 = scalar_lea.vmem %s196, 2048 [#allocation9]
        %v2869 = vld [vmem:[%s2868] sm:$0xff]
        %v2870 = vld [vmem:[%s2868 + $0x8] sm:$0xff]
        %v2871 = vld [vmem:[%s2868 + $0x10] sm:$0xff]
        %v2872 = vld [vmem:[%s2868 + $0x18] sm:$0xff]
        %v2873 = vld [vmem:[%s2868 + $0x20] sm:$0xff]
        %v2874 = vld [vmem:[%s2868 + $0x28] sm:$0xff]
        %v2875 = vld [vmem:[%s2868 + $0x30] sm:$0xff]
        %v2876 = vld [vmem:[%s2868 + $0x38] sm:$0xff]
        %v2877 = vld [vmem:[%s2868 + $0x40] sm:$0xff]
        %v2878 = vld [vmem:[%s2868 + $0x48] sm:$0xff]
        %v2879 = vld [vmem:[%s2868 + $0x50] sm:$0xff]
        %v2880 = vld [vmem:[%s2868 + $0x58] sm:$0xff]
        %v2881 = vld [vmem:[%s2868 + $0x60] sm:$0xff]
        %v2882 = vld [vmem:[%s2868 + $0x68] sm:$0xff]
        %v2883 = vld [vmem:[%s2868 + $0x70] sm:$0xff]
        %v2884 = vld [vmem:[%s2868 + $0x78] sm:$0xff]
        %v2885 = vld [vmem:[%s2868 + $0x80] sm:$0xff]
        %v2886 = vld [vmem:[%s2868 + $0x88] sm:$0xff]
        %v2887 = vld [vmem:[%s2868 + $0x90] sm:$0xff]
        %v2888 = vld [vmem:[%s2868 + $0x98] sm:$0xff]
        %v2889 = vld [vmem:[%s2868 + $0xa0] sm:$0xff]
        %v2890 = vld [vmem:[%s2868 + $0xa8] sm:$0xff]
        %v2891 = vld [vmem:[%s2868 + $0xb0] sm:$0xff]
        %v2892 = vld [vmem:[%s2868 + $0xb8] sm:$0xff]
        %v2893 = vld [vmem:[%s2868 + $0xc0] sm:$0xff]
        %v2894 = vld [vmem:[%s2868 + $0xc8] sm:$0xff]
        %v2895 = vld [vmem:[%s2868 + $0xd0] sm:$0xff]
        %v2896 = vld [vmem:[%s2868 + $0xd8] sm:$0xff]
        %v2897 = vld [vmem:[%s2868 + $0xe0] sm:$0xff]
        %v2898 = vld [vmem:[%s2868 + $0xe8] sm:$0xff]
        %v2899 = vld [vmem:[%s2868 + $0xf0] sm:$0xff]
        %v2900 = vld [vmem:[%s2868 + $0xf8] sm:$0xff]
        %v2901 = vld [vmem:[%s2868 + $0x100] sm:$0xff]
        %v2902 = vld [vmem:[%s2868 + $0x108] sm:$0xff]
        %v2903 = vld [vmem:[%s2868 + $0x110] sm:$0xff]
        %v2904 = vld [vmem:[%s2868 + $0x118] sm:$0xff]
        %v2905 = vld [vmem:[%s2868 + $0x120] sm:$0xff]
        %v2906 = vld [vmem:[%s2868 + $0x128] sm:$0xff]
        %v2907 = vld [vmem:[%s2868 + $0x130] sm:$0xff]
        %v2908 = vld [vmem:[%s2868 + $0x138] sm:$0xff]
        %v2909 = vld [vmem:[%s2868 + $0x140] sm:$0xff]
        %v2910 = vld [vmem:[%s2868 + $0x148] sm:$0xff]
        %v2911 = vld [vmem:[%s2868 + $0x150] sm:$0xff]
        %v2912 = vld [vmem:[%s2868 + $0x158] sm:$0xff]
        %v2913 = vld [vmem:[%s2868 + $0x160] sm:$0xff]
        %v2914 = vld [vmem:[%s2868 + $0x168] sm:$0xff]
        %v2915 = vld [vmem:[%s2868 + $0x170] sm:$0xff]
        %v2916 = vld [vmem:[%s2868 + $0x178] sm:$0xff]
        %v2917 = vld [vmem:[%s2868 + $0x180] sm:$0xff]
        %v2918 = vld [vmem:[%s2868 + $0x188] sm:$0xff]
        %v2919 = vld [vmem:[%s2868 + $0x190] sm:$0xff]
        %v2920 = vld [vmem:[%s2868 + $0x198] sm:$0xff]
        %v2921 = vld [vmem:[%s2868 + $0x1a0] sm:$0xff]
        %v2922 = vld [vmem:[%s2868 + $0x1a8] sm:$0xff]
        %v2923 = vld [vmem:[%s2868 + $0x1b0] sm:$0xff]
        %v2924 = vld [vmem:[%s2868 + $0x1b8] sm:$0xff]
        %v2925 = vld [vmem:[%s2868 + $0x1c0] sm:$0xff]
        %v2926 = vld [vmem:[%s2868 + $0x1c8] sm:$0xff]
        %v2927 = vld [vmem:[%s2868 + $0x1d0] sm:$0xff]
        %v2928 = vld [vmem:[%s2868 + $0x1d8] sm:$0xff]
        %v2929 = vld [vmem:[%s2868 + $0x1e0] sm:$0xff]
        %v2930 = vld [vmem:[%s2868 + $0x1e8] sm:$0xff]
        %v2931 = vld [vmem:[%s2868 + $0x1f0] sm:$0xff]
        %v2932 = vld [vmem:[%s2868 + $0x1f8] sm:$0xff]
        %v2933 = vadd.f32 %v2804, %v2805
        %v2934 = vadd.f32 %v2933, %v2806
        %v2935 = vadd.f32 %v2934, %v2807
        %v2936 = vadd.f32 %v2935, %v2808
        %v2937 = vadd.f32 %v2936, %v2809
        %v2938 = vadd.f32 %v2937, %v2810
        %v2939 = vadd.f32 %v2938, %v2811
        %v2940 = vadd.f32 %v2939, %v2812
        %v2941 = vadd.f32 %v2940, %v2813
        %v2942 = vadd.f32 %v2941, %v2814
        %v2943 = vadd.f32 %v2942, %v2815
        %v2944 = vadd.f32 %v2943, %v2816
        %v2945 = vadd.f32 %v2944, %v2817
        %v2946 = vadd.f32 %v2945, %v2818
        %v2947 = vadd.f32 %v2946, %v2819
        %v2948 = vadd.f32 %v2947, %v2820
        %v2949 = vadd.f32 %v2948, %v2821
        %v2950 = vadd.f32 %v2949, %v2822
        %v2951 = vadd.f32 %v2950, %v2823
        %v2952 = vadd.f32 %v2951, %v2824
        %v2953 = vadd.f32 %v2952, %v2825
        %v2954 = vadd.f32 %v2953, %v2826
        %v2955 = vadd.f32 %v2954, %v2827
        %v2956 = vadd.f32 %v2955, %v2828
        %v2957 = vadd.f32 %v2956, %v2829
        %v2958 = vadd.f32 %v2957, %v2830
        %v2959 = vadd.f32 %v2958, %v2831
        %v2960 = vadd.f32 %v2959, %v2832
        %v2961 = vadd.f32 %v2960, %v2833
        %v2962 = vadd.f32 %v2961, %v2834
        %v2963 = vadd.f32 %v2962, %v2835
        %v2964 = vadd.f32 %v2963, %v2836
        %v2965 = vadd.f32 %v2964, %v2837
        %v2966 = vadd.f32 %v2965, %v2838
        %v2967 = vadd.f32 %v2966, %v2839
        %v2968 = vadd.f32 %v2967, %v2840
        %v2969 = vadd.f32 %v2968, %v2841
        %v2970 = vadd.f32 %v2969, %v2842
        %v2971 = vadd.f32 %v2970, %v2843
        %v2972 = vadd.f32 %v2971, %v2844
        %v2973 = vadd.f32 %v2972, %v2845
        %v2974 = vadd.f32 %v2973, %v2846
        %v2975 = vadd.f32 %v2974, %v2847
        %v2976 = vadd.f32 %v2975, %v2848
        %v2977 = vadd.f32 %v2976, %v2849
        %v2978 = vadd.f32 %v2977, %v2850
        %v2979 = vadd.f32 %v2978, %v2851
        %v2980 = vadd.f32 %v2979, %v2852
        %v2981 = vadd.f32 %v2980, %v2853
        %v2982 = vadd.f32 %v2981, %v2854
        %v2983 = vadd.f32 %v2982, %v2855
        %v2984 = vadd.f32 %v2983, %v2856
        %v2985 = vadd.f32 %v2984, %v2857
        %v2986 = vadd.f32 %v2985, %v2858
        %v2987 = vadd.f32 %v2986, %v2859
        %v2988 = vadd.f32 %v2987, %v2860
        %v2989 = vadd.f32 %v2988, %v2861
        %v2990 = vadd.f32 %v2989, %v2862
        %v2991 = vadd.f32 %v2990, %v2863
        %v2992 = vadd.f32 %v2991, %v2864
        %v2993 = vadd.f32 %v2992, %v2865
        %v2994 = vadd.f32 %v2993, %v2866
        %v2995 = vadd.f32 %v2994, %v2867
        %v2996 = vadd.f32 %v2354, %v2995
        %v2997 = vadd.f32 %v2869, %v2870
        %v2998 = vadd.f32 %v2997, %v2871
        %v2999 = vadd.f32 %v2998, %v2872
        %v3000 = vadd.f32 %v2999, %v2873
        %v3001 = vadd.f32 %v3000, %v2874
        %v3002 = vadd.f32 %v3001, %v2875
        %v3003 = vadd.f32 %v3002, %v2876
        %v3004 = vadd.f32 %v3003, %v2877
        %v3005 = vadd.f32 %v3004, %v2878
        %v3006 = vadd.f32 %v3005, %v2879
        %v3007 = vadd.f32 %v3006, %v2880
        %v3008 = vadd.f32 %v3007, %v2881
        %v3009 = vadd.f32 %v3008, %v2882
        %v3010 = vadd.f32 %v3009, %v2883
        %v3011 = vadd.f32 %v3010, %v2884
        %v3012 = vadd.f32 %v3011, %v2885
        %v3013 = vadd.f32 %v3012, %v2886
        %v3014 = vadd.f32 %v3013, %v2887
        %v3015 = vadd.f32 %v3014, %v2888
        %v3016 = vadd.f32 %v3015, %v2889
        %v3017 = vadd.f32 %v3016, %v2890
        %v3018 = vadd.f32 %v3017, %v2891
        %v3019 = vadd.f32 %v3018, %v2892
        %v3020 = vadd.f32 %v3019, %v2893
        %v3021 = vadd.f32 %v3020, %v2894
        %v3022 = vadd.f32 %v3021, %v2895
        %v3023 = vadd.f32 %v3022, %v2896
        %v3024 = vadd.f32 %v3023, %v2897
        %v3025 = vadd.f32 %v3024, %v2898
        %v3026 = vadd.f32 %v3025, %v2899
        %v3027 = vadd.f32 %v3026, %v2900
        %v3028 = vadd.f32 %v3027, %v2901
        %v3029 = vadd.f32 %v3028, %v2902
        %v3030 = vadd.f32 %v3029, %v2903
        %v3031 = vadd.f32 %v3030, %v2904
        %v3032 = vadd.f32 %v3031, %v2905
        %v3033 = vadd.f32 %v3032, %v2906
        %v3034 = vadd.f32 %v3033, %v2907
        %v3035 = vadd.f32 %v3034, %v2908
        %v3036 = vadd.f32 %v3035, %v2909
        %v3037 = vadd.f32 %v3036, %v2910
        %v3038 = vadd.f32 %v3037, %v2911
        %v3039 = vadd.f32 %v3038, %v2912
        %v3040 = vadd.f32 %v3039, %v2913
        %v3041 = vadd.f32 %v3040, %v2914
        %v3042 = vadd.f32 %v3041, %v2915
        %v3043 = vadd.f32 %v3042, %v2916
        %v3044 = vadd.f32 %v3043, %v2917
        %v3045 = vadd.f32 %v3044, %v2918
        %v3046 = vadd.f32 %v3045, %v2919
        %v3047 = vadd.f32 %v3046, %v2920
        %v3048 = vadd.f32 %v3047, %v2921
        %v3049 = vadd.f32 %v3048, %v2922
        %v3050 = vadd.f32 %v3049, %v2923
        %v3051 = vadd.f32 %v3050, %v2924
        %v3052 = vadd.f32 %v3051, %v2925
        %v3053 = vadd.f32 %v3052, %v2926
        %v3054 = vadd.f32 %v3053, %v2927
        %v3055 = vadd.f32 %v3054, %v2928
        %v3056 = vadd.f32 %v3055, %v2929
        %v3057 = vadd.f32 %v3056, %v2930
        %v3058 = vadd.f32 %v3057, %v2931
        %v3059 = vadd.f32 %v3058, %v2932
        %v3060 = vadd.f32 %v2418, %v3059
        %v3061 = vmul.f32 %v2804, %v2804
        %v3062 = vmul.f32 %v2805, %v2805
        %v3063 = vmul.f32 %v2806, %v2806
        %v3064 = vmul.f32 %v2807, %v2807
        %v3065 = vmul.f32 %v2808, %v2808
        %v3066 = vmul.f32 %v2809, %v2809
        %v3067 = vmul.f32 %v2810, %v2810
        %v3068 = vmul.f32 %v2811, %v2811
        %v3069 = vmul.f32 %v2812, %v2812
        %v3070 = vmul.f32 %v2813, %v2813
        %v3071 = vmul.f32 %v2814, %v2814
        %v3072 = vmul.f32 %v2815, %v2815
        %v3073 = vmul.f32 %v2816, %v2816
        %v3074 = vmul.f32 %v2817, %v2817
        %v3075 = vmul.f32 %v2818, %v2818
        %v3076 = vmul.f32 %v2819, %v2819
        %v3077 = vmul.f32 %v2820, %v2820
        %v3078 = vmul.f32 %v2821, %v2821
        %v3079 = vmul.f32 %v2822, %v2822
        %v3080 = vmul.f32 %v2823, %v2823
        %v3081 = vmul.f32 %v2824, %v2824
        %v3082 = vmul.f32 %v2825, %v2825
        %v3083 = vmul.f32 %v2826, %v2826
        %v3084 = vmul.f32 %v2827, %v2827
        %v3085 = vmul.f32 %v2828, %v2828
        %v3086 = vmul.f32 %v2829, %v2829
        %v3087 = vmul.f32 %v2830, %v2830
        %v3088 = vmul.f32 %v2831, %v2831
        %v3089 = vmul.f32 %v2832, %v2832
        %v3090 = vmul.f32 %v2833, %v2833
        %v3091 = vmul.f32 %v2834, %v2834
        %v3092 = vmul.f32 %v2835, %v2835
        %v3093 = vmul.f32 %v2836, %v2836
        %v3094 = vmul.f32 %v2837, %v2837
        %v3095 = vmul.f32 %v2838, %v2838
        %v3096 = vmul.f32 %v2839, %v2839
        %v3097 = vmul.f32 %v2840, %v2840
        %v3098 = vmul.f32 %v2841, %v2841
        %v3099 = vmul.f32 %v2842, %v2842
        %v3100 = vmul.f32 %v2843, %v2843
        %v3101 = vmul.f32 %v2844, %v2844
        %v3102 = vmul.f32 %v2845, %v2845
        %v3103 = vmul.f32 %v2846, %v2846
        %v3104 = vmul.f32 %v2847, %v2847
        %v3105 = vmul.f32 %v2848, %v2848
        %v3106 = vmul.f32 %v2849, %v2849
        %v3107 = vmul.f32 %v2850, %v2850
        %v3108 = vmul.f32 %v2851, %v2851
        %v3109 = vmul.f32 %v2852, %v2852
        %v3110 = vmul.f32 %v2853, %v2853
        %v3111 = vmul.f32 %v2854, %v2854
        %v3112 = vmul.f32 %v2855, %v2855
        %v3113 = vmul.f32 %v2856, %v2856
        %v3114 = vmul.f32 %v2857, %v2857
        %v3115 = vmul.f32 %v2858, %v2858
        %v3116 = vmul.f32 %v2859, %v2859
        %v3117 = vmul.f32 %v2860, %v2860
        %v3118 = vmul.f32 %v2861, %v2861
        %v3119 = vmul.f32 %v2862, %v2862
        %v3120 = vmul.f32 %v2863, %v2863
        %v3121 = vmul.f32 %v2864, %v2864
        %v3122 = vmul.f32 %v2865, %v2865
        %v3123 = vmul.f32 %v2866, %v2866
        %v3124 = vmul.f32 %v2867, %v2867
        %v3125 = vadd.f32 %v3061, %v3062
        %v3126 = vadd.f32 %v3125, %v3063
        %v3127 = vadd.f32 %v3126, %v3064
        %v3128 = vadd.f32 %v3127, %v3065
        %v3129 = vadd.f32 %v3128, %v3066
        %v3130 = vadd.f32 %v3129, %v3067
        %v3131 = vadd.f32 %v3130, %v3068
        %v3132 = vadd.f32 %v3131, %v3069
        %v3133 = vadd.f32 %v3132, %v3070
        %v3134 = vadd.f32 %v3133, %v3071
        %v3135 = vadd.f32 %v3134, %v3072
        %v3136 = vadd.f32 %v3135, %v3073
        %v3137 = vadd.f32 %v3136, %v3074
        %v3138 = vadd.f32 %v3137, %v3075
        %v3139 = vadd.f32 %v3138, %v3076
        %v3140 = vadd.f32 %v3139, %v3077
        %v3141 = vadd.f32 %v3140, %v3078
        %v3142 = vadd.f32 %v3141, %v3079
        %v3143 = vadd.f32 %v3142, %v3080
        %v3144 = vadd.f32 %v3143, %v3081
        %v3145 = vadd.f32 %v3144, %v3082
        %v3146 = vadd.f32 %v3145, %v3083
        %v3147 = vadd.f32 %v3146, %v3084
        %v3148 = vadd.f32 %v3147, %v3085
        %v3149 = vadd.f32 %v3148, %v3086
        %v3150 = vadd.f32 %v3149, %v3087
        %v3151 = vadd.f32 %v3150, %v3088
        %v3152 = vadd.f32 %v3151, %v3089
        %v3153 = vadd.f32 %v3152, %v3090
        %v3154 = vadd.f32 %v3153, %v3091
        %v3155 = vadd.f32 %v3154, %v3092
        %v3156 = vadd.f32 %v3155, %v3093
        %v3157 = vadd.f32 %v3156, %v3094
        %v3158 = vadd.f32 %v3157, %v3095
        %v3159 = vadd.f32 %v3158, %v3096
        %v3160 = vadd.f32 %v3159, %v3097
        %v3161 = vadd.f32 %v3160, %v3098
        %v3162 = vadd.f32 %v3161, %v3099
        %v3163 = vadd.f32 %v3162, %v3100
        %v3164 = vadd.f32 %v3163, %v3101
        %v3165 = vadd.f32 %v3164, %v3102
        %v3166 = vadd.f32 %v3165, %v3103
        %v3167 = vadd.f32 %v3166, %v3104
        %v3168 = vadd.f32 %v3167, %v3105
        %v3169 = vadd.f32 %v3168, %v3106
        %v3170 = vadd.f32 %v3169, %v3107
        %v3171 = vadd.f32 %v3170, %v3108
        %v3172 = vadd.f32 %v3171, %v3109
        %v3173 = vadd.f32 %v3172, %v3110
        %v3174 = vadd.f32 %v3173, %v3111
        %v3175 = vadd.f32 %v3174, %v3112
        %v3176 = vadd.f32 %v3175, %v3113
        %v3177 = vadd.f32 %v3176, %v3114
        %v3178 = vadd.f32 %v3177, %v3115
        %v3179 = vadd.f32 %v3178, %v3116
        %v3180 = vadd.f32 %v3179, %v3117
        %v3181 = vadd.f32 %v3180, %v3118
        %v3182 = vadd.f32 %v3181, %v3119
        %v3183 = vadd.f32 %v3182, %v3120
        %v3184 = vadd.f32 %v3183, %v3121
        %v3185 = vadd.f32 %v3184, %v3122
        %v3186 = vadd.f32 %v3185, %v3123
        %v3187 = vadd.f32 %v3186, %v3124
        %v3188 = vadd.f32 %v2546, %v3187
        %v3189 = vmul.f32 %v2869, %v2869
        %v3190 = vmul.f32 %v2870, %v2870
        %v3191 = vmul.f32 %v2871, %v2871
        %v3192 = vmul.f32 %v2872, %v2872
        %v3193 = vmul.f32 %v2873, %v2873
        %v3194 = vmul.f32 %v2874, %v2874
        %v3195 = vmul.f32 %v2875, %v2875
        %v3196 = vmul.f32 %v2876, %v2876
        %v3197 = vmul.f32 %v2877, %v2877
        %v3198 = vmul.f32 %v2878, %v2878
        %v3199 = vmul.f32 %v2879, %v2879
        %v3200 = vmul.f32 %v2880, %v2880
        %v3201 = vmul.f32 %v2881, %v2881
        %v3202 = vmul.f32 %v2882, %v2882
        %v3203 = vmul.f32 %v2883, %v2883
        %v3204 = vmul.f32 %v2884, %v2884
        %v3205 = vmul.f32 %v2885, %v2885
        %v3206 = vmul.f32 %v2886, %v2886
        %v3207 = vmul.f32 %v2887, %v2887
        %v3208 = vmul.f32 %v2888, %v2888
        %v3209 = vmul.f32 %v2889, %v2889
        %v3210 = vmul.f32 %v2890, %v2890
        %v3211 = vmul.f32 %v2891, %v2891
        %v3212 = vmul.f32 %v2892, %v2892
        %v3213 = vmul.f32 %v2893, %v2893
        %v3214 = vmul.f32 %v2894, %v2894
        %v3215 = vmul.f32 %v2895, %v2895
        %v3216 = vmul.f32 %v2896, %v2896
        %v3217 = vmul.f32 %v2897, %v2897
        %v3218 = vmul.f32 %v2898, %v2898
        %v3219 = vmul.f32 %v2899, %v2899
        %v3220 = vmul.f32 %v2900, %v2900
        %v3221 = vmul.f32 %v2901, %v2901
        %v3222 = vmul.f32 %v2902, %v2902
        %v3223 = vmul.f32 %v2903, %v2903
        %v3224 = vmul.f32 %v2904, %v2904
        %v3225 = vmul.f32 %v2905, %v2905
        %v3226 = vmul.f32 %v2906, %v2906
        %v3227 = vmul.f32 %v2907, %v2907
        %v3228 = vmul.f32 %v2908, %v2908
        %v3229 = vmul.f32 %v2909, %v2909
        %v3230 = vmul.f32 %v2910, %v2910
        %v3231 = vmul.f32 %v2911, %v2911
        %v3232 = vmul.f32 %v2912, %v2912
        %v3233 = vmul.f32 %v2913, %v2913
        %v3234 = vmul.f32 %v2914, %v2914
        %v3235 = vmul.f32 %v2915, %v2915
        %v3236 = vmul.f32 %v2916, %v2916
        %v3237 = vmul.f32 %v2917, %v2917
        %v3238 = vmul.f32 %v2918, %v2918
        %v3239 = vmul.f32 %v2919, %v2919
        %v3240 = vmul.f32 %v2920, %v2920
        %v3241 = vmul.f32 %v2921, %v2921
        %v3242 = vmul.f32 %v2922, %v2922
        %v3243 = vmul.f32 %v2923, %v2923
        %v3244 = vmul.f32 %v2924, %v2924
        %v3245 = vmul.f32 %v2925, %v2925
        %v3246 = vmul.f32 %v2926, %v2926
        %v3247 = vmul.f32 %v2927, %v2927
        %v3248 = vmul.f32 %v2928, %v2928
        %v3249 = vmul.f32 %v2929, %v2929
        %v3250 = vmul.f32 %v2930, %v2930
        %v3251 = vmul.f32 %v2931, %v2931
        %v3252 = vmul.f32 %v2932, %v2932
        %v3253 = vadd.f32 %v3189, %v3190
        %v3254 = vadd.f32 %v3253, %v3191
        %v3255 = vadd.f32 %v3254, %v3192
        %v3256 = vadd.f32 %v3255, %v3193
        %v3257 = vadd.f32 %v3256, %v3194
        %v3258 = vadd.f32 %v3257, %v3195
        %v3259 = vadd.f32 %v3258, %v3196
        %v3260 = vadd.f32 %v3259, %v3197
        %v3261 = vadd.f32 %v3260, %v3198
        %v3262 = vadd.f32 %v3261, %v3199
        %v3263 = vadd.f32 %v3262, %v3200
        %v3264 = vadd.f32 %v3263, %v3201
        %v3265 = vadd.f32 %v3264, %v3202
        %v3266 = vadd.f32 %v3265, %v3203
        %v3267 = vadd.f32 %v3266, %v3204
        %v3268 = vadd.f32 %v3267, %v3205
        %v3269 = vadd.f32 %v3268, %v3206
        %v3270 = vadd.f32 %v3269, %v3207
        %v3271 = vadd.f32 %v3270, %v3208
        %v3272 = vadd.f32 %v3271, %v3209
        %v3273 = vadd.f32 %v3272, %v3210
        %v3274 = vadd.f32 %v3273, %v3211
        %v3275 = vadd.f32 %v3274, %v3212
        %v3276 = vadd.f32 %v3275, %v3213
        %v3277 = vadd.f32 %v3276, %v3214
        %v3278 = vadd.f32 %v3277, %v3215
        %v3279 = vadd.f32 %v3278, %v3216
        %v3280 = vadd.f32 %v3279, %v3217
        %v3281 = vadd.f32 %v3280, %v3218
        %v3282 = vadd.f32 %v3281, %v3219
        %v3283 = vadd.f32 %v3282, %v3220
        %v3284 = vadd.f32 %v3283, %v3221
        %v3285 = vadd.f32 %v3284, %v3222
        %v3286 = vadd.f32 %v3285, %v3223
        %v3287 = vadd.f32 %v3286, %v3224
        %v3288 = vadd.f32 %v3287, %v3225
        %v3289 = vadd.f32 %v3288, %v3226
        %v3290 = vadd.f32 %v3289, %v3227
        %v3291 = vadd.f32 %v3290, %v3228
        %v3292 = vadd.f32 %v3291, %v3229
        %v3293 = vadd.f32 %v3292, %v3230
        %v3294 = vadd.f32 %v3293, %v3231
        %v3295 = vadd.f32 %v3294, %v3232
        %v3296 = vadd.f32 %v3295, %v3233
        %v3297 = vadd.f32 %v3296, %v3234
        %v3298 = vadd.f32 %v3297, %v3235
        %v3299 = vadd.f32 %v3298, %v3236
        %v3300 = vadd.f32 %v3299, %v3237
        %v3301 = vadd.f32 %v3300, %v3238
        %v3302 = vadd.f32 %v3301, %v3239
        %v3303 = vadd.f32 %v3302, %v3240
        %v3304 = vadd.f32 %v3303, %v3241
        %v3305 = vadd.f32 %v3304, %v3242
        %v3306 = vadd.f32 %v3305, %v3243
        %v3307 = vadd.f32 %v3306, %v3244
        %v3308 = vadd.f32 %v3307, %v3245
        %v3309 = vadd.f32 %v3308, %v3246
        %v3310 = vadd.f32 %v3309, %v3247
        %v3311 = vadd.f32 %v3310, %v3248
        %v3312 = vadd.f32 %v3311, %v3249
        %v3313 = vadd.f32 %v3312, %v3250
        %v3314 = vadd.f32 %v3313, %v3251
        %v3315 = vadd.f32 %v3314, %v3252
        %v3316 = vadd.f32 %v2674, %v3315
        %v3317 = vmul.f32 %v2804, %v2869
        %v3318 = vmul.f32 %v2805, %v2870
        %v3319 = vmul.f32 %v2806, %v2871
        %v3320 = vmul.f32 %v2807, %v2872
        %v3321 = vmul.f32 %v2808, %v2873
        %v3322 = vmul.f32 %v2809, %v2874
        %v3323 = vmul.f32 %v2810, %v2875
        %v3324 = vmul.f32 %v2811, %v2876
        %v3325 = vmul.f32 %v2812, %v2877
        %v3326 = vmul.f32 %v2813, %v2878
        %v3327 = vmul.f32 %v2814, %v2879
        %v3328 = vmul.f32 %v2815, %v2880
        %v3329 = vmul.f32 %v2816, %v2881
        %v3330 = vmul.f32 %v2817, %v2882
        %v3331 = vmul.f32 %v2818, %v2883
        %v3332 = vmul.f32 %v2819, %v2884
        %v3333 = vmul.f32 %v2820, %v2885
        %v3334 = vmul.f32 %v2821, %v2886
        %v3335 = vmul.f32 %v2822, %v2887
        %v3336 = vmul.f32 %v2823, %v2888
        %v3337 = vmul.f32 %v2824, %v2889
        %v3338 = vmul.f32 %v2825, %v2890
        %v3339 = vmul.f32 %v2826, %v2891
        %v3340 = vmul.f32 %v2827, %v2892
        %v3341 = vmul.f32 %v2828, %v2893
        %v3342 = vmul.f32 %v2829, %v2894
        %v3343 = vmul.f32 %v2830, %v2895
        %v3344 = vmul.f32 %v2831, %v2896
        %v3345 = vmul.f32 %v2832, %v2897
        %v3346 = vmul.f32 %v2833, %v2898
        %v3347 = vmul.f32 %v2834, %v2899
        %v3348 = vmul.f32 %v2835, %v2900
        %v3349 = vmul.f32 %v2836, %v2901
        %v3350 = vmul.f32 %v2837, %v2902
        %v3351 = vmul.f32 %v2838, %v2903
        %v3352 = vmul.f32 %v2839, %v2904
        %v3353 = vmul.f32 %v2840, %v2905
        %v3354 = vmul.f32 %v2841, %v2906
        %v3355 = vmul.f32 %v2842, %v2907
        %v3356 = vmul.f32 %v2843, %v2908
        %v3357 = vmul.f32 %v2844, %v2909
        %v3358 = vmul.f32 %v2845, %v2910
        %v3359 = vmul.f32 %v2846, %v2911
        %v3360 = vmul.f32 %v2847, %v2912
        %v3361 = vmul.f32 %v2848, %v2913
        %v3362 = vmul.f32 %v2849, %v2914
        %v3363 = vmul.f32 %v2850, %v2915
        %v3364 = vmul.f32 %v2851, %v2916
        %v3365 = vmul.f32 %v2852, %v2917
        %v3366 = vmul.f32 %v2853, %v2918
        %v3367 = vmul.f32 %v2854, %v2919
        %v3368 = vmul.f32 %v2855, %v2920
        %v3369 = vmul.f32 %v2856, %v2921
        %v3370 = vmul.f32 %v2857, %v2922
        %v3371 = vmul.f32 %v2858, %v2923
        %v3372 = vmul.f32 %v2859, %v2924
        %v3373 = vmul.f32 %v2860, %v2925
        %v3374 = vmul.f32 %v2861, %v2926
        %v3375 = vmul.f32 %v2862, %v2927
        %v3376 = vmul.f32 %v2863, %v2928
        %v3377 = vmul.f32 %v2864, %v2929
        %v3378 = vmul.f32 %v2865, %v2930
        %v3379 = vmul.f32 %v2866, %v2931
        %v3380 = vmul.f32 %v2867, %v2932
        %v3381 = vadd.f32 %v3317, %v3318
        %v3382 = vadd.f32 %v3381, %v3319
        %v3383 = vadd.f32 %v3382, %v3320
        %v3384 = vadd.f32 %v3383, %v3321
        %v3385 = vadd.f32 %v3384, %v3322
        %v3386 = vadd.f32 %v3385, %v3323
        %v3387 = vadd.f32 %v3386, %v3324
        %v3388 = vadd.f32 %v3387, %v3325
        %v3389 = vadd.f32 %v3388, %v3326
        %v3390 = vadd.f32 %v3389, %v3327
        %v3391 = vadd.f32 %v3390, %v3328
        %v3392 = vadd.f32 %v3391, %v3329
        %v3393 = vadd.f32 %v3392, %v3330
        %v3394 = vadd.f32 %v3393, %v3331
        %v3395 = vadd.f32 %v3394, %v3332
        %v3396 = vadd.f32 %v3395, %v3333
        %v3397 = vadd.f32 %v3396, %v3334
        %v3398 = vadd.f32 %v3397, %v3335
        %v3399 = vadd.f32 %v3398, %v3336
        %v3400 = vadd.f32 %v3399, %v3337
        %v3401 = vadd.f32 %v3400, %v3338
        %v3402 = vadd.f32 %v3401, %v3339
        %v3403 = vadd.f32 %v3402, %v3340
        %v3404 = vadd.f32 %v3403, %v3341
        %v3405 = vadd.f32 %v3404, %v3342
        %v3406 = vadd.f32 %v3405, %v3343
        %v3407 = vadd.f32 %v3406, %v3344
        %v3408 = vadd.f32 %v3407, %v3345
        %v3409 = vadd.f32 %v3408, %v3346
        %v3410 = vadd.f32 %v3409, %v3347
        %v3411 = vadd.f32 %v3410, %v3348
        %v3412 = vadd.f32 %v3411, %v3349
        %v3413 = vadd.f32 %v3412, %v3350
        %v3414 = vadd.f32 %v3413, %v3351
        %v3415 = vadd.f32 %v3414, %v3352
        %v3416 = vadd.f32 %v3415, %v3353
        %v3417 = vadd.f32 %v3416, %v3354
        %v3418 = vadd.f32 %v3417, %v3355
        %v3419 = vadd.f32 %v3418, %v3356
        %v3420 = vadd.f32 %v3419, %v3357
        %v3421 = vadd.f32 %v3420, %v3358
        %v3422 = vadd.f32 %v3421, %v3359
        %v3423 = vadd.f32 %v3422, %v3360
        %v3424 = vadd.f32 %v3423, %v3361
        %v3425 = vadd.f32 %v3424, %v3362
        %v3426 = vadd.f32 %v3425, %v3363
        %v3427 = vadd.f32 %v3426, %v3364
        %v3428 = vadd.f32 %v3427, %v3365
        %v3429 = vadd.f32 %v3428, %v3366
        %v3430 = vadd.f32 %v3429, %v3367
        %v3431 = vadd.f32 %v3430, %v3368
        %v3432 = vadd.f32 %v3431, %v3369
        %v3433 = vadd.f32 %v3432, %v3370
        %v3434 = vadd.f32 %v3433, %v3371
        %v3435 = vadd.f32 %v3434, %v3372
        %v3436 = vadd.f32 %v3435, %v3373
        %v3437 = vadd.f32 %v3436, %v3374
        %v3438 = vadd.f32 %v3437, %v3375
        %v3439 = vadd.f32 %v3438, %v3376
        %v3440 = vadd.f32 %v3439, %v3377
        %v3441 = vadd.f32 %v3440, %v3378
        %v3442 = vadd.f32 %v3441, %v3379
        %v3443 = vadd.f32 %v3442, %v3380
        %v3444 = vadd.f32 %v2802, %v3443
        %s3445 = scalar_lea.vmem %s186, 2560 [#allocation7]
        %v3446 = vld [vmem:[%s3445] sm:$0xff]
        %v3447 = vld [vmem:[%s3445 + $0x8] sm:$0xff]
        %v3448 = vld [vmem:[%s3445 + $0x10] sm:$0xff]
        %v3449 = vld [vmem:[%s3445 + $0x18] sm:$0xff]
        %v3450 = vld [vmem:[%s3445 + $0x20] sm:$0xff]
        %v3451 = vld [vmem:[%s3445 + $0x28] sm:$0xff]
        %v3452 = vld [vmem:[%s3445 + $0x30] sm:$0xff]
        %v3453 = vld [vmem:[%s3445 + $0x38] sm:$0xff]
        %v3454 = vld [vmem:[%s3445 + $0x40] sm:$0xff]
        %v3455 = vld [vmem:[%s3445 + $0x48] sm:$0xff]
        %v3456 = vld [vmem:[%s3445 + $0x50] sm:$0xff]
        %v3457 = vld [vmem:[%s3445 + $0x58] sm:$0xff]
        %v3458 = vld [vmem:[%s3445 + $0x60] sm:$0xff]
        %v3459 = vld [vmem:[%s3445 + $0x68] sm:$0xff]
        %v3460 = vld [vmem:[%s3445 + $0x70] sm:$0xff]
        %v3461 = vld [vmem:[%s3445 + $0x78] sm:$0xff]
        %v3462 = vld [vmem:[%s3445 + $0x80] sm:$0xff]
        %v3463 = vld [vmem:[%s3445 + $0x88] sm:$0xff]
        %v3464 = vld [vmem:[%s3445 + $0x90] sm:$0xff]
        %v3465 = vld [vmem:[%s3445 + $0x98] sm:$0xff]
        %v3466 = vld [vmem:[%s3445 + $0xa0] sm:$0xff]
        %v3467 = vld [vmem:[%s3445 + $0xa8] sm:$0xff]
        %v3468 = vld [vmem:[%s3445 + $0xb0] sm:$0xff]
        %v3469 = vld [vmem:[%s3445 + $0xb8] sm:$0xff]
        %v3470 = vld [vmem:[%s3445 + $0xc0] sm:$0xff]
        %v3471 = vld [vmem:[%s3445 + $0xc8] sm:$0xff]
        %v3472 = vld [vmem:[%s3445 + $0xd0] sm:$0xff]
        %v3473 = vld [vmem:[%s3445 + $0xd8] sm:$0xff]
        %v3474 = vld [vmem:[%s3445 + $0xe0] sm:$0xff]
        %v3475 = vld [vmem:[%s3445 + $0xe8] sm:$0xff]
        %v3476 = vld [vmem:[%s3445 + $0xf0] sm:$0xff]
        %v3477 = vld [vmem:[%s3445 + $0xf8] sm:$0xff]
        %v3478 = vld [vmem:[%s3445 + $0x100] sm:$0xff]
        %v3479 = vld [vmem:[%s3445 + $0x108] sm:$0xff]
        %v3480 = vld [vmem:[%s3445 + $0x110] sm:$0xff]
        %v3481 = vld [vmem:[%s3445 + $0x118] sm:$0xff]
        %v3482 = vld [vmem:[%s3445 + $0x120] sm:$0xff]
        %v3483 = vld [vmem:[%s3445 + $0x128] sm:$0xff]
        %v3484 = vld [vmem:[%s3445 + $0x130] sm:$0xff]
        %v3485 = vld [vmem:[%s3445 + $0x138] sm:$0xff]
        %v3486 = vld [vmem:[%s3445 + $0x140] sm:$0xff]
        %v3487 = vld [vmem:[%s3445 + $0x148] sm:$0xff]
        %v3488 = vld [vmem:[%s3445 + $0x150] sm:$0xff]
        %v3489 = vld [vmem:[%s3445 + $0x158] sm:$0xff]
        %v3490 = vld [vmem:[%s3445 + $0x160] sm:$0xff]
        %v3491 = vld [vmem:[%s3445 + $0x168] sm:$0xff]
        %v3492 = vld [vmem:[%s3445 + $0x170] sm:$0xff]
        %v3493 = vld [vmem:[%s3445 + $0x178] sm:$0xff]
        %v3494 = vld [vmem:[%s3445 + $0x180] sm:$0xff]
        %v3495 = vld [vmem:[%s3445 + $0x188] sm:$0xff]
        %v3496 = vld [vmem:[%s3445 + $0x190] sm:$0xff]
        %v3497 = vld [vmem:[%s3445 + $0x198] sm:$0xff]
        %v3498 = vld [vmem:[%s3445 + $0x1a0] sm:$0xff]
        %v3499 = vld [vmem:[%s3445 + $0x1a8] sm:$0xff]
        %v3500 = vld [vmem:[%s3445 + $0x1b0] sm:$0xff]
        %v3501 = vld [vmem:[%s3445 + $0x1b8] sm:$0xff]
        %v3502 = vld [vmem:[%s3445 + $0x1c0] sm:$0xff]
        %v3503 = vld [vmem:[%s3445 + $0x1c8] sm:$0xff]
        %v3504 = vld [vmem:[%s3445 + $0x1d0] sm:$0xff]
        %v3505 = vld [vmem:[%s3445 + $0x1d8] sm:$0xff]
        %v3506 = vld [vmem:[%s3445 + $0x1e0] sm:$0xff]
        %v3507 = vld [vmem:[%s3445 + $0x1e8] sm:$0xff]
        %v3508 = vld [vmem:[%s3445 + $0x1f0] sm:$0xff]
        %v3509 = vld [vmem:[%s3445 + $0x1f8] sm:$0xff]
        %s3510 = scalar_lea.vmem %s196, 2560 [#allocation9]
        %v3511 = vld [vmem:[%s3510] sm:$0xff]
        %v3512 = vld [vmem:[%s3510 + $0x8] sm:$0xff]
        %v3513 = vld [vmem:[%s3510 + $0x10] sm:$0xff]
        %v3514 = vld [vmem:[%s3510 + $0x18] sm:$0xff]
        %v3515 = vld [vmem:[%s3510 + $0x20] sm:$0xff]
        %v3516 = vld [vmem:[%s3510 + $0x28] sm:$0xff]
        %v3517 = vld [vmem:[%s3510 + $0x30] sm:$0xff]
        %v3518 = vld [vmem:[%s3510 + $0x38] sm:$0xff]
        %v3519 = vld [vmem:[%s3510 + $0x40] sm:$0xff]
        %v3520 = vld [vmem:[%s3510 + $0x48] sm:$0xff]
        %v3521 = vld [vmem:[%s3510 + $0x50] sm:$0xff]
        %v3522 = vld [vmem:[%s3510 + $0x58] sm:$0xff]
        %v3523 = vld [vmem:[%s3510 + $0x60] sm:$0xff]
        %v3524 = vld [vmem:[%s3510 + $0x68] sm:$0xff]
        %v3525 = vld [vmem:[%s3510 + $0x70] sm:$0xff]
        %v3526 = vld [vmem:[%s3510 + $0x78] sm:$0xff]
        %v3527 = vld [vmem:[%s3510 + $0x80] sm:$0xff]
        %v3528 = vld [vmem:[%s3510 + $0x88] sm:$0xff]
        %v3529 = vld [vmem:[%s3510 + $0x90] sm:$0xff]
        %v3530 = vld [vmem:[%s3510 + $0x98] sm:$0xff]
        %v3531 = vld [vmem:[%s3510 + $0xa0] sm:$0xff]
        %v3532 = vld [vmem:[%s3510 + $0xa8] sm:$0xff]
        %v3533 = vld [vmem:[%s3510 + $0xb0] sm:$0xff]
        %v3534 = vld [vmem:[%s3510 + $0xb8] sm:$0xff]
        %v3535 = vld [vmem:[%s3510 + $0xc0] sm:$0xff]
        %v3536 = vld [vmem:[%s3510 + $0xc8] sm:$0xff]
        %v3537 = vld [vmem:[%s3510 + $0xd0] sm:$0xff]
        %v3538 = vld [vmem:[%s3510 + $0xd8] sm:$0xff]
        %v3539 = vld [vmem:[%s3510 + $0xe0] sm:$0xff]
        %v3540 = vld [vmem:[%s3510 + $0xe8] sm:$0xff]
        %v3541 = vld [vmem:[%s3510 + $0xf0] sm:$0xff]
        %v3542 = vld [vmem:[%s3510 + $0xf8] sm:$0xff]
        %v3543 = vld [vmem:[%s3510 + $0x100] sm:$0xff]
        %v3544 = vld [vmem:[%s3510 + $0x108] sm:$0xff]
        %v3545 = vld [vmem:[%s3510 + $0x110] sm:$0xff]
        %v3546 = vld [vmem:[%s3510 + $0x118] sm:$0xff]
        %v3547 = vld [vmem:[%s3510 + $0x120] sm:$0xff]
        %v3548 = vld [vmem:[%s3510 + $0x128] sm:$0xff]
        %v3549 = vld [vmem:[%s3510 + $0x130] sm:$0xff]
        %v3550 = vld [vmem:[%s3510 + $0x138] sm:$0xff]
        %v3551 = vld [vmem:[%s3510 + $0x140] sm:$0xff]
        %v3552 = vld [vmem:[%s3510 + $0x148] sm:$0xff]
        %v3553 = vld [vmem:[%s3510 + $0x150] sm:$0xff]
        %v3554 = vld [vmem:[%s3510 + $0x158] sm:$0xff]
        %v3555 = vld [vmem:[%s3510 + $0x160] sm:$0xff]
        %v3556 = vld [vmem:[%s3510 + $0x168] sm:$0xff]
        %v3557 = vld [vmem:[%s3510 + $0x170] sm:$0xff]
        %v3558 = vld [vmem:[%s3510 + $0x178] sm:$0xff]
        %v3559 = vld [vmem:[%s3510 + $0x180] sm:$0xff]
        %v3560 = vld [vmem:[%s3510 + $0x188] sm:$0xff]
        %v3561 = vld [vmem:[%s3510 + $0x190] sm:$0xff]
        %v3562 = vld [vmem:[%s3510 + $0x198] sm:$0xff]
        %v3563 = vld [vmem:[%s3510 + $0x1a0] sm:$0xff]
        %v3564 = vld [vmem:[%s3510 + $0x1a8] sm:$0xff]
        %v3565 = vld [vmem:[%s3510 + $0x1b0] sm:$0xff]
        %v3566 = vld [vmem:[%s3510 + $0x1b8] sm:$0xff]
        %v3567 = vld [vmem:[%s3510 + $0x1c0] sm:$0xff]
        %v3568 = vld [vmem:[%s3510 + $0x1c8] sm:$0xff]
        %v3569 = vld [vmem:[%s3510 + $0x1d0] sm:$0xff]
        %v3570 = vld [vmem:[%s3510 + $0x1d8] sm:$0xff]
        %v3571 = vld [vmem:[%s3510 + $0x1e0] sm:$0xff]
        %v3572 = vld [vmem:[%s3510 + $0x1e8] sm:$0xff]
        %v3573 = vld [vmem:[%s3510 + $0x1f0] sm:$0xff]
        %v3574 = vld [vmem:[%s3510 + $0x1f8] sm:$0xff]
        %v3575 = vadd.f32 %v3446, %v3447
        %v3576 = vadd.f32 %v3575, %v3448
        %v3577 = vadd.f32 %v3576, %v3449
        %v3578 = vadd.f32 %v3577, %v3450
        %v3579 = vadd.f32 %v3578, %v3451
        %v3580 = vadd.f32 %v3579, %v3452
        %v3581 = vadd.f32 %v3580, %v3453
        %v3582 = vadd.f32 %v3581, %v3454
        %v3583 = vadd.f32 %v3582, %v3455
        %v3584 = vadd.f32 %v3583, %v3456
        %v3585 = vadd.f32 %v3584, %v3457
        %v3586 = vadd.f32 %v3585, %v3458
        %v3587 = vadd.f32 %v3586, %v3459
        %v3588 = vadd.f32 %v3587, %v3460
        %v3589 = vadd.f32 %v3588, %v3461
        %v3590 = vadd.f32 %v3589, %v3462
        %v3591 = vadd.f32 %v3590, %v3463
        %v3592 = vadd.f32 %v3591, %v3464
        %v3593 = vadd.f32 %v3592, %v3465
        %v3594 = vadd.f32 %v3593, %v3466
        %v3595 = vadd.f32 %v3594, %v3467
        %v3596 = vadd.f32 %v3595, %v3468
        %v3597 = vadd.f32 %v3596, %v3469
        %v3598 = vadd.f32 %v3597, %v3470
        %v3599 = vadd.f32 %v3598, %v3471
        %v3600 = vadd.f32 %v3599, %v3472
        %v3601 = vadd.f32 %v3600, %v3473
        %v3602 = vadd.f32 %v3601, %v3474
        %v3603 = vadd.f32 %v3602, %v3475
        %v3604 = vadd.f32 %v3603, %v3476
        %v3605 = vadd.f32 %v3604, %v3477
        %v3606 = vadd.f32 %v3605, %v3478
        %v3607 = vadd.f32 %v3606, %v3479
        %v3608 = vadd.f32 %v3607, %v3480
        %v3609 = vadd.f32 %v3608, %v3481
        %v3610 = vadd.f32 %v3609, %v3482
        %v3611 = vadd.f32 %v3610, %v3483
        %v3612 = vadd.f32 %v3611, %v3484
        %v3613 = vadd.f32 %v3612, %v3485
        %v3614 = vadd.f32 %v3613, %v3486
        %v3615 = vadd.f32 %v3614, %v3487
        %v3616 = vadd.f32 %v3615, %v3488
        %v3617 = vadd.f32 %v3616, %v3489
        %v3618 = vadd.f32 %v3617, %v3490
        %v3619 = vadd.f32 %v3618, %v3491
        %v3620 = vadd.f32 %v3619, %v3492
        %v3621 = vadd.f32 %v3620, %v3493
        %v3622 = vadd.f32 %v3621, %v3494
        %v3623 = vadd.f32 %v3622, %v3495
        %v3624 = vadd.f32 %v3623, %v3496
        %v3625 = vadd.f32 %v3624, %v3497
        %v3626 = vadd.f32 %v3625, %v3498
        %v3627 = vadd.f32 %v3626, %v3499
        %v3628 = vadd.f32 %v3627, %v3500
        %v3629 = vadd.f32 %v3628, %v3501
        %v3630 = vadd.f32 %v3629, %v3502
        %v3631 = vadd.f32 %v3630, %v3503
        %v3632 = vadd.f32 %v3631, %v3504
        %v3633 = vadd.f32 %v3632, %v3505
        %v3634 = vadd.f32 %v3633, %v3506
        %v3635 = vadd.f32 %v3634, %v3507
        %v3636 = vadd.f32 %v3635, %v3508
        %v3637 = vadd.f32 %v3636, %v3509
        %v3638 = vadd.f32 %v2996, %v3637
        %v3639 = vadd.f32 %v3511, %v3512
        %v3640 = vadd.f32 %v3639, %v3513
        %v3641 = vadd.f32 %v3640, %v3514
        %v3642 = vadd.f32 %v3641, %v3515
        %v3643 = vadd.f32 %v3642, %v3516
        %v3644 = vadd.f32 %v3643, %v3517
        %v3645 = vadd.f32 %v3644, %v3518
        %v3646 = vadd.f32 %v3645, %v3519
        %v3647 = vadd.f32 %v3646, %v3520
        %v3648 = vadd.f32 %v3647, %v3521
        %v3649 = vadd.f32 %v3648, %v3522
        %v3650 = vadd.f32 %v3649, %v3523
        %v3651 = vadd.f32 %v3650, %v3524
        %v3652 = vadd.f32 %v3651, %v3525
        %v3653 = vadd.f32 %v3652, %v3526
        %v3654 = vadd.f32 %v3653, %v3527
        %v3655 = vadd.f32 %v3654, %v3528
        %v3656 = vadd.f32 %v3655, %v3529
        %v3657 = vadd.f32 %v3656, %v3530
        %v3658 = vadd.f32 %v3657, %v3531
        %v3659 = vadd.f32 %v3658, %v3532
        %v3660 = vadd.f32 %v3659, %v3533
        %v3661 = vadd.f32 %v3660, %v3534
        %v3662 = vadd.f32 %v3661, %v3535
        %v3663 = vadd.f32 %v3662, %v3536
        %v3664 = vadd.f32 %v3663, %v3537
        %v3665 = vadd.f32 %v3664, %v3538
        %v3666 = vadd.f32 %v3665, %v3539
        %v3667 = vadd.f32 %v3666, %v3540
        %v3668 = vadd.f32 %v3667, %v3541
        %v3669 = vadd.f32 %v3668, %v3542
        %v3670 = vadd.f32 %v3669, %v3543
        %v3671 = vadd.f32 %v3670, %v3544
        %v3672 = vadd.f32 %v3671, %v3545
        %v3673 = vadd.f32 %v3672, %v3546
        %v3674 = vadd.f32 %v3673, %v3547
        %v3675 = vadd.f32 %v3674, %v3548
        %v3676 = vadd.f32 %v3675, %v3549
        %v3677 = vadd.f32 %v3676, %v3550
        %v3678 = vadd.f32 %v3677, %v3551
        %v3679 = vadd.f32 %v3678, %v3552
        %v3680 = vadd.f32 %v3679, %v3553
        %v3681 = vadd.f32 %v3680, %v3554
        %v3682 = vadd.f32 %v3681, %v3555
        %v3683 = vadd.f32 %v3682, %v3556
        %v3684 = vadd.f32 %v3683, %v3557
        %v3685 = vadd.f32 %v3684, %v3558
        %v3686 = vadd.f32 %v3685, %v3559
        %v3687 = vadd.f32 %v3686, %v3560
        %v3688 = vadd.f32 %v3687, %v3561
        %v3689 = vadd.f32 %v3688, %v3562
        %v3690 = vadd.f32 %v3689, %v3563
        %v3691 = vadd.f32 %v3690, %v3564
        %v3692 = vadd.f32 %v3691, %v3565
        %v3693 = vadd.f32 %v3692, %v3566
        %v3694 = vadd.f32 %v3693, %v3567
        %v3695 = vadd.f32 %v3694, %v3568
        %v3696 = vadd.f32 %v3695, %v3569
        %v3697 = vadd.f32 %v3696, %v3570
        %v3698 = vadd.f32 %v3697, %v3571
        %v3699 = vadd.f32 %v3698, %v3572
        %v3700 = vadd.f32 %v3699, %v3573
        %v3701 = vadd.f32 %v3700, %v3574
        %v3702 = vadd.f32 %v3060, %v3701
        %v3703 = vmul.f32 %v3446, %v3446
        %v3704 = vmul.f32 %v3447, %v3447
        %v3705 = vmul.f32 %v3448, %v3448
        %v3706 = vmul.f32 %v3449, %v3449
        %v3707 = vmul.f32 %v3450, %v3450
        %v3708 = vmul.f32 %v3451, %v3451
        %v3709 = vmul.f32 %v3452, %v3452
        %v3710 = vmul.f32 %v3453, %v3453
        %v3711 = vmul.f32 %v3454, %v3454
        %v3712 = vmul.f32 %v3455, %v3455
        %v3713 = vmul.f32 %v3456, %v3456
        %v3714 = vmul.f32 %v3457, %v3457
        %v3715 = vmul.f32 %v3458, %v3458
        %v3716 = vmul.f32 %v3459, %v3459
        %v3717 = vmul.f32 %v3460, %v3460
        %v3718 = vmul.f32 %v3461, %v3461
        %v3719 = vmul.f32 %v3462, %v3462
        %v3720 = vmul.f32 %v3463, %v3463
        %v3721 = vmul.f32 %v3464, %v3464
        %v3722 = vmul.f32 %v3465, %v3465
        %v3723 = vmul.f32 %v3466, %v3466
        %v3724 = vmul.f32 %v3467, %v3467
        %v3725 = vmul.f32 %v3468, %v3468
        %v3726 = vmul.f32 %v3469, %v3469
        %v3727 = vmul.f32 %v3470, %v3470
        %v3728 = vmul.f32 %v3471, %v3471
        %v3729 = vmul.f32 %v3472, %v3472
        %v3730 = vmul.f32 %v3473, %v3473
        %v3731 = vmul.f32 %v3474, %v3474
        %v3732 = vmul.f32 %v3475, %v3475
        %v3733 = vmul.f32 %v3476, %v3476
        %v3734 = vmul.f32 %v3477, %v3477
        %v3735 = vmul.f32 %v3478, %v3478
        %v3736 = vmul.f32 %v3479, %v3479
        %v3737 = vmul.f32 %v3480, %v3480
        %v3738 = vmul.f32 %v3481, %v3481
        %v3739 = vmul.f32 %v3482, %v3482
        %v3740 = vmul.f32 %v3483, %v3483
        %v3741 = vmul.f32 %v3484, %v3484
        %v3742 = vmul.f32 %v3485, %v3485
        %v3743 = vmul.f32 %v3486, %v3486
        %v3744 = vmul.f32 %v3487, %v3487
        %v3745 = vmul.f32 %v3488, %v3488
        %v3746 = vmul.f32 %v3489, %v3489
        %v3747 = vmul.f32 %v3490, %v3490
        %v3748 = vmul.f32 %v3491, %v3491
        %v3749 = vmul.f32 %v3492, %v3492
        %v3750 = vmul.f32 %v3493, %v3493
        %v3751 = vmul.f32 %v3494, %v3494
        %v3752 = vmul.f32 %v3495, %v3495
        %v3753 = vmul.f32 %v3496, %v3496
        %v3754 = vmul.f32 %v3497, %v3497
        %v3755 = vmul.f32 %v3498, %v3498
        %v3756 = vmul.f32 %v3499, %v3499
        %v3757 = vmul.f32 %v3500, %v3500
        %v3758 = vmul.f32 %v3501, %v3501
        %v3759 = vmul.f32 %v3502, %v3502
        %v3760 = vmul.f32 %v3503, %v3503
        %v3761 = vmul.f32 %v3504, %v3504
        %v3762 = vmul.f32 %v3505, %v3505
        %v3763 = vmul.f32 %v3506, %v3506
        %v3764 = vmul.f32 %v3507, %v3507
        %v3765 = vmul.f32 %v3508, %v3508
        %v3766 = vmul.f32 %v3509, %v3509
        %v3767 = vadd.f32 %v3703, %v3704
        %v3768 = vadd.f32 %v3767, %v3705
        %v3769 = vadd.f32 %v3768, %v3706
        %v3770 = vadd.f32 %v3769, %v3707
        %v3771 = vadd.f32 %v3770, %v3708
        %v3772 = vadd.f32 %v3771, %v3709
        %v3773 = vadd.f32 %v3772, %v3710
        %v3774 = vadd.f32 %v3773, %v3711
        %v3775 = vadd.f32 %v3774, %v3712
        %v3776 = vadd.f32 %v3775, %v3713
        %v3777 = vadd.f32 %v3776, %v3714
        %v3778 = vadd.f32 %v3777, %v3715
        %v3779 = vadd.f32 %v3778, %v3716
        %v3780 = vadd.f32 %v3779, %v3717
        %v3781 = vadd.f32 %v3780, %v3718
        %v3782 = vadd.f32 %v3781, %v3719
        %v3783 = vadd.f32 %v3782, %v3720
        %v3784 = vadd.f32 %v3783, %v3721
        %v3785 = vadd.f32 %v3784, %v3722
        %v3786 = vadd.f32 %v3785, %v3723
        %v3787 = vadd.f32 %v3786, %v3724
        %v3788 = vadd.f32 %v3787, %v3725
        %v3789 = vadd.f32 %v3788, %v3726
        %v3790 = vadd.f32 %v3789, %v3727
        %v3791 = vadd.f32 %v3790, %v3728
        %v3792 = vadd.f32 %v3791, %v3729
        %v3793 = vadd.f32 %v3792, %v3730
        %v3794 = vadd.f32 %v3793, %v3731
        %v3795 = vadd.f32 %v3794, %v3732
        %v3796 = vadd.f32 %v3795, %v3733
        %v3797 = vadd.f32 %v3796, %v3734
        %v3798 = vadd.f32 %v3797, %v3735
        %v3799 = vadd.f32 %v3798, %v3736
        %v3800 = vadd.f32 %v3799, %v3737
        %v3801 = vadd.f32 %v3800, %v3738
        %v3802 = vadd.f32 %v3801, %v3739
        %v3803 = vadd.f32 %v3802, %v3740
        %v3804 = vadd.f32 %v3803, %v3741
        %v3805 = vadd.f32 %v3804, %v3742
        %v3806 = vadd.f32 %v3805, %v3743
        %v3807 = vadd.f32 %v3806, %v3744
        %v3808 = vadd.f32 %v3807, %v3745
        %v3809 = vadd.f32 %v3808, %v3746
        %v3810 = vadd.f32 %v3809, %v3747
        %v3811 = vadd.f32 %v3810, %v3748
        %v3812 = vadd.f32 %v3811, %v3749
        %v3813 = vadd.f32 %v3812, %v3750
        %v3814 = vadd.f32 %v3813, %v3751
        %v3815 = vadd.f32 %v3814, %v3752
        %v3816 = vadd.f32 %v3815, %v3753
        %v3817 = vadd.f32 %v3816, %v3754
        %v3818 = vadd.f32 %v3817, %v3755
        %v3819 = vadd.f32 %v3818, %v3756
        %v3820 = vadd.f32 %v3819, %v3757
        %v3821 = vadd.f32 %v3820, %v3758
        %v3822 = vadd.f32 %v3821, %v3759
        %v3823 = vadd.f32 %v3822, %v3760
        %v3824 = vadd.f32 %v3823, %v3761
        %v3825 = vadd.f32 %v3824, %v3762
        %v3826 = vadd.f32 %v3825, %v3763
        %v3827 = vadd.f32 %v3826, %v3764
        %v3828 = vadd.f32 %v3827, %v3765
        %v3829 = vadd.f32 %v3828, %v3766
        %v3830 = vadd.f32 %v3188, %v3829
        %v3831 = vmul.f32 %v3511, %v3511
        %v3832 = vmul.f32 %v3512, %v3512
        %v3833 = vmul.f32 %v3513, %v3513
        %v3834 = vmul.f32 %v3514, %v3514
        %v3835 = vmul.f32 %v3515, %v3515
        %v3836 = vmul.f32 %v3516, %v3516
        %v3837 = vmul.f32 %v3517, %v3517
        %v3838 = vmul.f32 %v3518, %v3518
        %v3839 = vmul.f32 %v3519, %v3519
        %v3840 = vmul.f32 %v3520, %v3520
        %v3841 = vmul.f32 %v3521, %v3521
        %v3842 = vmul.f32 %v3522, %v3522
        %v3843 = vmul.f32 %v3523, %v3523
        %v3844 = vmul.f32 %v3524, %v3524
        %v3845 = vmul.f32 %v3525, %v3525
        %v3846 = vmul.f32 %v3526, %v3526
        %v3847 = vmul.f32 %v3527, %v3527
        %v3848 = vmul.f32 %v3528, %v3528
        %v3849 = vmul.f32 %v3529, %v3529
        %v3850 = vmul.f32 %v3530, %v3530
        %v3851 = vmul.f32 %v3531, %v3531
        %v3852 = vmul.f32 %v3532, %v3532
        %v3853 = vmul.f32 %v3533, %v3533
        %v3854 = vmul.f32 %v3534, %v3534
        %v3855 = vmul.f32 %v3535, %v3535
        %v3856 = vmul.f32 %v3536, %v3536
        %v3857 = vmul.f32 %v3537, %v3537
        %v3858 = vmul.f32 %v3538, %v3538
        %v3859 = vmul.f32 %v3539, %v3539
        %v3860 = vmul.f32 %v3540, %v3540
        %v3861 = vmul.f32 %v3541, %v3541
        %v3862 = vmul.f32 %v3542, %v3542
        %v3863 = vmul.f32 %v3543, %v3543
        %v3864 = vmul.f32 %v3544, %v3544
        %v3865 = vmul.f32 %v3545, %v3545
        %v3866 = vmul.f32 %v3546, %v3546
        %v3867 = vmul.f32 %v3547, %v3547
        %v3868 = vmul.f32 %v3548, %v3548
        %v3869 = vmul.f32 %v3549, %v3549
        %v3870 = vmul.f32 %v3550, %v3550
        %v3871 = vmul.f32 %v3551, %v3551
        %v3872 = vmul.f32 %v3552, %v3552
        %v3873 = vmul.f32 %v3553, %v3553
        %v3874 = vmul.f32 %v3554, %v3554
        %v3875 = vmul.f32 %v3555, %v3555
        %v3876 = vmul.f32 %v3556, %v3556
        %v3877 = vmul.f32 %v3557, %v3557
        %v3878 = vmul.f32 %v3558, %v3558
        %v3879 = vmul.f32 %v3559, %v3559
        %v3880 = vmul.f32 %v3560, %v3560
        %v3881 = vmul.f32 %v3561, %v3561
        %v3882 = vmul.f32 %v3562, %v3562
        %v3883 = vmul.f32 %v3563, %v3563
        %v3884 = vmul.f32 %v3564, %v3564
        %v3885 = vmul.f32 %v3565, %v3565
        %v3886 = vmul.f32 %v3566, %v3566
        %v3887 = vmul.f32 %v3567, %v3567
        %v3888 = vmul.f32 %v3568, %v3568
        %v3889 = vmul.f32 %v3569, %v3569
        %v3890 = vmul.f32 %v3570, %v3570
        %v3891 = vmul.f32 %v3571, %v3571
        %v3892 = vmul.f32 %v3572, %v3572
        %v3893 = vmul.f32 %v3573, %v3573
        %v3894 = vmul.f32 %v3574, %v3574
        %v3895 = vadd.f32 %v3831, %v3832
        %v3896 = vadd.f32 %v3895, %v3833
        %v3897 = vadd.f32 %v3896, %v3834
        %v3898 = vadd.f32 %v3897, %v3835
        %v3899 = vadd.f32 %v3898, %v3836
        %v3900 = vadd.f32 %v3899, %v3837
        %v3901 = vadd.f32 %v3900, %v3838
        %v3902 = vadd.f32 %v3901, %v3839
        %v3903 = vadd.f32 %v3902, %v3840
        %v3904 = vadd.f32 %v3903, %v3841
        %v3905 = vadd.f32 %v3904, %v3842
        %v3906 = vadd.f32 %v3905, %v3843
        %v3907 = vadd.f32 %v3906, %v3844
        %v3908 = vadd.f32 %v3907, %v3845
        %v3909 = vadd.f32 %v3908, %v3846
        %v3910 = vadd.f32 %v3909, %v3847
        %v3911 = vadd.f32 %v3910, %v3848
        %v3912 = vadd.f32 %v3911, %v3849
        %v3913 = vadd.f32 %v3912, %v3850
        %v3914 = vadd.f32 %v3913, %v3851
        %v3915 = vadd.f32 %v3914, %v3852
        %v3916 = vadd.f32 %v3915, %v3853
        %v3917 = vadd.f32 %v3916, %v3854
        %v3918 = vadd.f32 %v3917, %v3855
        %v3919 = vadd.f32 %v3918, %v3856
        %v3920 = vadd.f32 %v3919, %v3857
        %v3921 = vadd.f32 %v3920, %v3858
        %v3922 = vadd.f32 %v3921, %v3859
        %v3923 = vadd.f32 %v3922, %v3860
        %v3924 = vadd.f32 %v3923, %v3861
        %v3925 = vadd.f32 %v3924, %v3862
        %v3926 = vadd.f32 %v3925, %v3863
        %v3927 = vadd.f32 %v3926, %v3864
        %v3928 = vadd.f32 %v3927, %v3865
        %v3929 = vadd.f32 %v3928, %v3866
        %v3930 = vadd.f32 %v3929, %v3867
        %v3931 = vadd.f32 %v3930, %v3868
        %v3932 = vadd.f32 %v3931, %v3869
        %v3933 = vadd.f32 %v3932, %v3870
        %v3934 = vadd.f32 %v3933, %v3871
        %v3935 = vadd.f32 %v3934, %v3872
        %v3936 = vadd.f32 %v3935, %v3873
        %v3937 = vadd.f32 %v3936, %v3874
        %v3938 = vadd.f32 %v3937, %v3875
        %v3939 = vadd.f32 %v3938, %v3876
        %v3940 = vadd.f32 %v3939, %v3877
        %v3941 = vadd.f32 %v3940, %v3878
        %v3942 = vadd.f32 %v3941, %v3879
        %v3943 = vadd.f32 %v3942, %v3880
        %v3944 = vadd.f32 %v3943, %v3881
        %v3945 = vadd.f32 %v3944, %v3882
        %v3946 = vadd.f32 %v3945, %v3883
        %v3947 = vadd.f32 %v3946, %v3884
        %v3948 = vadd.f32 %v3947, %v3885
        %v3949 = vadd.f32 %v3948, %v3886
        %v3950 = vadd.f32 %v3949, %v3887
        %v3951 = vadd.f32 %v3950, %v3888
        %v3952 = vadd.f32 %v3951, %v3889
        %v3953 = vadd.f32 %v3952, %v3890
        %v3954 = vadd.f32 %v3953, %v3891
        %v3955 = vadd.f32 %v3954, %v3892
        %v3956 = vadd.f32 %v3955, %v3893
        %v3957 = vadd.f32 %v3956, %v3894
        %v3958 = vadd.f32 %v3316, %v3957
        %v3959 = vmul.f32 %v3446, %v3511
        %v3960 = vmul.f32 %v3447, %v3512
        %v3961 = vmul.f32 %v3448, %v3513
        %v3962 = vmul.f32 %v3449, %v3514
        %v3963 = vmul.f32 %v3450, %v3515
        %v3964 = vmul.f32 %v3451, %v3516
        %v3965 = vmul.f32 %v3452, %v3517
        %v3966 = vmul.f32 %v3453, %v3518
        %v3967 = vmul.f32 %v3454, %v3519
        %v3968 = vmul.f32 %v3455, %v3520
        %v3969 = vmul.f32 %v3456, %v3521
        %v3970 = vmul.f32 %v3457, %v3522
        %v3971 = vmul.f32 %v3458, %v3523
        %v3972 = vmul.f32 %v3459, %v3524
        %v3973 = vmul.f32 %v3460, %v3525
        %v3974 = vmul.f32 %v3461, %v3526
        %v3975 = vmul.f32 %v3462, %v3527
        %v3976 = vmul.f32 %v3463, %v3528
        %v3977 = vmul.f32 %v3464, %v3529
        %v3978 = vmul.f32 %v3465, %v3530
        %v3979 = vmul.f32 %v3466, %v3531
        %v3980 = vmul.f32 %v3467, %v3532
        %v3981 = vmul.f32 %v3468, %v3533
        %v3982 = vmul.f32 %v3469, %v3534
        %v3983 = vmul.f32 %v3470, %v3535
        %v3984 = vmul.f32 %v3471, %v3536
        %v3985 = vmul.f32 %v3472, %v3537
        %v3986 = vmul.f32 %v3473, %v3538
        %v3987 = vmul.f32 %v3474, %v3539
        %v3988 = vmul.f32 %v3475, %v3540
        %v3989 = vmul.f32 %v3476, %v3541
        %v3990 = vmul.f32 %v3477, %v3542
        %v3991 = vmul.f32 %v3478, %v3543
        %v3992 = vmul.f32 %v3479, %v3544
        %v3993 = vmul.f32 %v3480, %v3545
        %v3994 = vmul.f32 %v3481, %v3546
        %v3995 = vmul.f32 %v3482, %v3547
        %v3996 = vmul.f32 %v3483, %v3548
        %v3997 = vmul.f32 %v3484, %v3549
        %v3998 = vmul.f32 %v3485, %v3550
        %v3999 = vmul.f32 %v3486, %v3551
        %v4000 = vmul.f32 %v3487, %v3552
        %v4001 = vmul.f32 %v3488, %v3553
        %v4002 = vmul.f32 %v3489, %v3554
        %v4003 = vmul.f32 %v3490, %v3555
        %v4004 = vmul.f32 %v3491, %v3556
        %v4005 = vmul.f32 %v3492, %v3557
        %v4006 = vmul.f32 %v3493, %v3558
        %v4007 = vmul.f32 %v3494, %v3559
        %v4008 = vmul.f32 %v3495, %v3560
        %v4009 = vmul.f32 %v3496, %v3561
        %v4010 = vmul.f32 %v3497, %v3562
        %v4011 = vmul.f32 %v3498, %v3563
        %v4012 = vmul.f32 %v3499, %v3564
        %v4013 = vmul.f32 %v3500, %v3565
        %v4014 = vmul.f32 %v3501, %v3566
        %v4015 = vmul.f32 %v3502, %v3567
        %v4016 = vmul.f32 %v3503, %v3568
        %v4017 = vmul.f32 %v3504, %v3569
        %v4018 = vmul.f32 %v3505, %v3570
        %v4019 = vmul.f32 %v3506, %v3571
        %v4020 = vmul.f32 %v3507, %v3572
        %v4021 = vmul.f32 %v3508, %v3573
        %v4022 = vmul.f32 %v3509, %v3574
        %v4023 = vadd.f32 %v3959, %v3960
        %v4024 = vadd.f32 %v4023, %v3961
        %v4025 = vadd.f32 %v4024, %v3962
        %v4026 = vadd.f32 %v4025, %v3963
        %v4027 = vadd.f32 %v4026, %v3964
        %v4028 = vadd.f32 %v4027, %v3965
        %v4029 = vadd.f32 %v4028, %v3966
        %v4030 = vadd.f32 %v4029, %v3967
        %v4031 = vadd.f32 %v4030, %v3968
        %v4032 = vadd.f32 %v4031, %v3969
        %v4033 = vadd.f32 %v4032, %v3970
        %v4034 = vadd.f32 %v4033, %v3971
        %v4035 = vadd.f32 %v4034, %v3972
        %v4036 = vadd.f32 %v4035, %v3973
        %v4037 = vadd.f32 %v4036, %v3974
        %v4038 = vadd.f32 %v4037, %v3975
        %v4039 = vadd.f32 %v4038, %v3976
        %v4040 = vadd.f32 %v4039, %v3977
        %v4041 = vadd.f32 %v4040, %v3978
        %v4042 = vadd.f32 %v4041, %v3979
        %v4043 = vadd.f32 %v4042, %v3980
        %v4044 = vadd.f32 %v4043, %v3981
        %v4045 = vadd.f32 %v4044, %v3982
        %v4046 = vadd.f32 %v4045, %v3983
        %v4047 = vadd.f32 %v4046, %v3984
        %v4048 = vadd.f32 %v4047, %v3985
        %v4049 = vadd.f32 %v4048, %v3986
        %v4050 = vadd.f32 %v4049, %v3987
        %v4051 = vadd.f32 %v4050, %v3988
        %v4052 = vadd.f32 %v4051, %v3989
        %v4053 = vadd.f32 %v4052, %v3990
        %v4054 = vadd.f32 %v4053, %v3991
        %v4055 = vadd.f32 %v4054, %v3992
        %v4056 = vadd.f32 %v4055, %v3993
        %v4057 = vadd.f32 %v4056, %v3994
        %v4058 = vadd.f32 %v4057, %v3995
        %v4059 = vadd.f32 %v4058, %v3996
        %v4060 = vadd.f32 %v4059, %v3997
        %v4061 = vadd.f32 %v4060, %v3998
        %v4062 = vadd.f32 %v4061, %v3999
        %v4063 = vadd.f32 %v4062, %v4000
        %v4064 = vadd.f32 %v4063, %v4001
        %v4065 = vadd.f32 %v4064, %v4002
        %v4066 = vadd.f32 %v4065, %v4003
        %v4067 = vadd.f32 %v4066, %v4004
        %v4068 = vadd.f32 %v4067, %v4005
        %v4069 = vadd.f32 %v4068, %v4006
        %v4070 = vadd.f32 %v4069, %v4007
        %v4071 = vadd.f32 %v4070, %v4008
        %v4072 = vadd.f32 %v4071, %v4009
        %v4073 = vadd.f32 %v4072, %v4010
        %v4074 = vadd.f32 %v4073, %v4011
        %v4075 = vadd.f32 %v4074, %v4012
        %v4076 = vadd.f32 %v4075, %v4013
        %v4077 = vadd.f32 %v4076, %v4014
        %v4078 = vadd.f32 %v4077, %v4015
        %v4079 = vadd.f32 %v4078, %v4016
        %v4080 = vadd.f32 %v4079, %v4017
        %v4081 = vadd.f32 %v4080, %v4018
        %v4082 = vadd.f32 %v4081, %v4019
        %v4083 = vadd.f32 %v4082, %v4020
        %v4084 = vadd.f32 %v4083, %v4021
        %v4085 = vadd.f32 %v4084, %v4022
        %v4086 = vadd.f32 %v3444, %v4085
        %s4087 = scalar_lea.vmem %s186, 3072 [#allocation7]
        %v4088 = vld [vmem:[%s4087] sm:$0xff]
        %v4089 = vld [vmem:[%s4087 + $0x8] sm:$0xff]
        %v4090 = vld [vmem:[%s4087 + $0x10] sm:$0xff]
        %v4091 = vld [vmem:[%s4087 + $0x18] sm:$0xff]
        %v4092 = vld [vmem:[%s4087 + $0x20] sm:$0xff]
        %v4093 = vld [vmem:[%s4087 + $0x28] sm:$0xff]
        %v4094 = vld [vmem:[%s4087 + $0x30] sm:$0xff]
        %v4095 = vld [vmem:[%s4087 + $0x38] sm:$0xff]
        %v4096 = vld [vmem:[%s4087 + $0x40] sm:$0xff]
        %v4097 = vld [vmem:[%s4087 + $0x48] sm:$0xff]
        %v4098 = vld [vmem:[%s4087 + $0x50] sm:$0xff]
        %v4099 = vld [vmem:[%s4087 + $0x58] sm:$0xff]
        %v4100 = vld [vmem:[%s4087 + $0x60] sm:$0xff]
        %v4101 = vld [vmem:[%s4087 + $0x68] sm:$0xff]
        %v4102 = vld [vmem:[%s4087 + $0x70] sm:$0xff]
        %v4103 = vld [vmem:[%s4087 + $0x78] sm:$0xff]
        %v4104 = vld [vmem:[%s4087 + $0x80] sm:$0xff]
        %v4105 = vld [vmem:[%s4087 + $0x88] sm:$0xff]
        %v4106 = vld [vmem:[%s4087 + $0x90] sm:$0xff]
        %v4107 = vld [vmem:[%s4087 + $0x98] sm:$0xff]
        %v4108 = vld [vmem:[%s4087 + $0xa0] sm:$0xff]
        %v4109 = vld [vmem:[%s4087 + $0xa8] sm:$0xff]
        %v4110 = vld [vmem:[%s4087 + $0xb0] sm:$0xff]
        %v4111 = vld [vmem:[%s4087 + $0xb8] sm:$0xff]
        %v4112 = vld [vmem:[%s4087 + $0xc0] sm:$0xff]
        %v4113 = vld [vmem:[%s4087 + $0xc8] sm:$0xff]
        %v4114 = vld [vmem:[%s4087 + $0xd0] sm:$0xff]
        %v4115 = vld [vmem:[%s4087 + $0xd8] sm:$0xff]
        %v4116 = vld [vmem:[%s4087 + $0xe0] sm:$0xff]
        %v4117 = vld [vmem:[%s4087 + $0xe8] sm:$0xff]
        %v4118 = vld [vmem:[%s4087 + $0xf0] sm:$0xff]
        %v4119 = vld [vmem:[%s4087 + $0xf8] sm:$0xff]
        %v4120 = vld [vmem:[%s4087 + $0x100] sm:$0xff]
        %v4121 = vld [vmem:[%s4087 + $0x108] sm:$0xff]
        %v4122 = vld [vmem:[%s4087 + $0x110] sm:$0xff]
        %v4123 = vld [vmem:[%s4087 + $0x118] sm:$0xff]
        %v4124 = vld [vmem:[%s4087 + $0x120] sm:$0xff]
        %v4125 = vld [vmem:[%s4087 + $0x128] sm:$0xff]
        %v4126 = vld [vmem:[%s4087 + $0x130] sm:$0xff]
        %v4127 = vld [vmem:[%s4087 + $0x138] sm:$0xff]
        %v4128 = vld [vmem:[%s4087 + $0x140] sm:$0xff]
        %v4129 = vld [vmem:[%s4087 + $0x148] sm:$0xff]
        %v4130 = vld [vmem:[%s4087 + $0x150] sm:$0xff]
        %v4131 = vld [vmem:[%s4087 + $0x158] sm:$0xff]
        %v4132 = vld [vmem:[%s4087 + $0x160] sm:$0xff]
        %v4133 = vld [vmem:[%s4087 + $0x168] sm:$0xff]
        %v4134 = vld [vmem:[%s4087 + $0x170] sm:$0xff]
        %v4135 = vld [vmem:[%s4087 + $0x178] sm:$0xff]
        %v4136 = vld [vmem:[%s4087 + $0x180] sm:$0xff]
        %v4137 = vld [vmem:[%s4087 + $0x188] sm:$0xff]
        %v4138 = vld [vmem:[%s4087 + $0x190] sm:$0xff]
        %v4139 = vld [vmem:[%s4087 + $0x198] sm:$0xff]
        %v4140 = vld [vmem:[%s4087 + $0x1a0] sm:$0xff]
        %v4141 = vld [vmem:[%s4087 + $0x1a8] sm:$0xff]
        %v4142 = vld [vmem:[%s4087 + $0x1b0] sm:$0xff]
        %v4143 = vld [vmem:[%s4087 + $0x1b8] sm:$0xff]
        %v4144 = vld [vmem:[%s4087 + $0x1c0] sm:$0xff]
        %v4145 = vld [vmem:[%s4087 + $0x1c8] sm:$0xff]
        %v4146 = vld [vmem:[%s4087 + $0x1d0] sm:$0xff]
        %v4147 = vld [vmem:[%s4087 + $0x1d8] sm:$0xff]
        %v4148 = vld [vmem:[%s4087 + $0x1e0] sm:$0xff]
        %v4149 = vld [vmem:[%s4087 + $0x1e8] sm:$0xff]
        %v4150 = vld [vmem:[%s4087 + $0x1f0] sm:$0xff]
        %v4151 = vld [vmem:[%s4087 + $0x1f8] sm:$0xff]
        %s4152 = scalar_lea.vmem %s196, 3072 [#allocation9]
        %v4153 = vld [vmem:[%s4152] sm:$0xff]
        %v4154 = vld [vmem:[%s4152 + $0x8] sm:$0xff]
        %v4155 = vld [vmem:[%s4152 + $0x10] sm:$0xff]
        %v4156 = vld [vmem:[%s4152 + $0x18] sm:$0xff]
        %v4157 = vld [vmem:[%s4152 + $0x20] sm:$0xff]
        %v4158 = vld [vmem:[%s4152 + $0x28] sm:$0xff]
        %v4159 = vld [vmem:[%s4152 + $0x30] sm:$0xff]
        %v4160 = vld [vmem:[%s4152 + $0x38] sm:$0xff]
        %v4161 = vld [vmem:[%s4152 + $0x40] sm:$0xff]
        %v4162 = vld [vmem:[%s4152 + $0x48] sm:$0xff]
        %v4163 = vld [vmem:[%s4152 + $0x50] sm:$0xff]
        %v4164 = vld [vmem:[%s4152 + $0x58] sm:$0xff]
        %v4165 = vld [vmem:[%s4152 + $0x60] sm:$0xff]
        %v4166 = vld [vmem:[%s4152 + $0x68] sm:$0xff]
        %v4167 = vld [vmem:[%s4152 + $0x70] sm:$0xff]
        %v4168 = vld [vmem:[%s4152 + $0x78] sm:$0xff]
        %v4169 = vld [vmem:[%s4152 + $0x80] sm:$0xff]
        %v4170 = vld [vmem:[%s4152 + $0x88] sm:$0xff]
        %v4171 = vld [vmem:[%s4152 + $0x90] sm:$0xff]
        %v4172 = vld [vmem:[%s4152 + $0x98] sm:$0xff]
        %v4173 = vld [vmem:[%s4152 + $0xa0] sm:$0xff]
        %v4174 = vld [vmem:[%s4152 + $0xa8] sm:$0xff]
        %v4175 = vld [vmem:[%s4152 + $0xb0] sm:$0xff]
        %v4176 = vld [vmem:[%s4152 + $0xb8] sm:$0xff]
        %v4177 = vld [vmem:[%s4152 + $0xc0] sm:$0xff]
        %v4178 = vld [vmem:[%s4152 + $0xc8] sm:$0xff]
        %v4179 = vld [vmem:[%s4152 + $0xd0] sm:$0xff]
        %v4180 = vld [vmem:[%s4152 + $0xd8] sm:$0xff]
        %v4181 = vld [vmem:[%s4152 + $0xe0] sm:$0xff]
        %v4182 = vld [vmem:[%s4152 + $0xe8] sm:$0xff]
        %v4183 = vld [vmem:[%s4152 + $0xf0] sm:$0xff]
        %v4184 = vld [vmem:[%s4152 + $0xf8] sm:$0xff]
        %v4185 = vld [vmem:[%s4152 + $0x100] sm:$0xff]
        %v4186 = vld [vmem:[%s4152 + $0x108] sm:$0xff]
        %v4187 = vld [vmem:[%s4152 + $0x110] sm:$0xff]
        %v4188 = vld [vmem:[%s4152 + $0x118] sm:$0xff]
        %v4189 = vld [vmem:[%s4152 + $0x120] sm:$0xff]
        %v4190 = vld [vmem:[%s4152 + $0x128] sm:$0xff]
        %v4191 = vld [vmem:[%s4152 + $0x130] sm:$0xff]
        %v4192 = vld [vmem:[%s4152 + $0x138] sm:$0xff]
        %v4193 = vld [vmem:[%s4152 + $0x140] sm:$0xff]
        %v4194 = vld [vmem:[%s4152 + $0x148] sm:$0xff]
        %v4195 = vld [vmem:[%s4152 + $0x150] sm:$0xff]
        %v4196 = vld [vmem:[%s4152 + $0x158] sm:$0xff]
        %v4197 = vld [vmem:[%s4152 + $0x160] sm:$0xff]
        %v4198 = vld [vmem:[%s4152 + $0x168] sm:$0xff]
        %v4199 = vld [vmem:[%s4152 + $0x170] sm:$0xff]
        %v4200 = vld [vmem:[%s4152 + $0x178] sm:$0xff]
        %v4201 = vld [vmem:[%s4152 + $0x180] sm:$0xff]
        %v4202 = vld [vmem:[%s4152 + $0x188] sm:$0xff]
        %v4203 = vld [vmem:[%s4152 + $0x190] sm:$0xff]
        %v4204 = vld [vmem:[%s4152 + $0x198] sm:$0xff]
        %v4205 = vld [vmem:[%s4152 + $0x1a0] sm:$0xff]
        %v4206 = vld [vmem:[%s4152 + $0x1a8] sm:$0xff]
        %v4207 = vld [vmem:[%s4152 + $0x1b0] sm:$0xff]
        %v4208 = vld [vmem:[%s4152 + $0x1b8] sm:$0xff]
        %v4209 = vld [vmem:[%s4152 + $0x1c0] sm:$0xff]
        %v4210 = vld [vmem:[%s4152 + $0x1c8] sm:$0xff]
        %v4211 = vld [vmem:[%s4152 + $0x1d0] sm:$0xff]
        %v4212 = vld [vmem:[%s4152 + $0x1d8] sm:$0xff]
        %v4213 = vld [vmem:[%s4152 + $0x1e0] sm:$0xff]
        %v4214 = vld [vmem:[%s4152 + $0x1e8] sm:$0xff]
        %v4215 = vld [vmem:[%s4152 + $0x1f0] sm:$0xff]
        %v4216 = vld [vmem:[%s4152 + $0x1f8] sm:$0xff]
        %v4217 = vadd.f32 %v4088, %v4089
        %v4218 = vadd.f32 %v4217, %v4090
        %v4219 = vadd.f32 %v4218, %v4091
        %v4220 = vadd.f32 %v4219, %v4092
        %v4221 = vadd.f32 %v4220, %v4093
        %v4222 = vadd.f32 %v4221, %v4094
        %v4223 = vadd.f32 %v4222, %v4095
        %v4224 = vadd.f32 %v4223, %v4096
        %v4225 = vadd.f32 %v4224, %v4097
        %v4226 = vadd.f32 %v4225, %v4098
        %v4227 = vadd.f32 %v4226, %v4099
        %v4228 = vadd.f32 %v4227, %v4100
        %v4229 = vadd.f32 %v4228, %v4101
        %v4230 = vadd.f32 %v4229, %v4102
        %v4231 = vadd.f32 %v4230, %v4103
        %v4232 = vadd.f32 %v4231, %v4104
        %v4233 = vadd.f32 %v4232, %v4105
        %v4234 = vadd.f32 %v4233, %v4106
        %v4235 = vadd.f32 %v4234, %v4107
        %v4236 = vadd.f32 %v4235, %v4108
        %v4237 = vadd.f32 %v4236, %v4109
        %v4238 = vadd.f32 %v4237, %v4110
        %v4239 = vadd.f32 %v4238, %v4111
        %v4240 = vadd.f32 %v4239, %v4112
        %v4241 = vadd.f32 %v4240, %v4113
        %v4242 = vadd.f32 %v4241, %v4114
        %v4243 = vadd.f32 %v4242, %v4115
        %v4244 = vadd.f32 %v4243, %v4116
        %v4245 = vadd.f32 %v4244, %v4117
        %v4246 = vadd.f32 %v4245, %v4118
        %v4247 = vadd.f32 %v4246, %v4119
        %v4248 = vadd.f32 %v4247, %v4120
        %v4249 = vadd.f32 %v4248, %v4121
        %v4250 = vadd.f32 %v4249, %v4122
        %v4251 = vadd.f32 %v4250, %v4123
        %v4252 = vadd.f32 %v4251, %v4124
        %v4253 = vadd.f32 %v4252, %v4125
        %v4254 = vadd.f32 %v4253, %v4126
        %v4255 = vadd.f32 %v4254, %v4127
        %v4256 = vadd.f32 %v4255, %v4128
        %v4257 = vadd.f32 %v4256, %v4129
        %v4258 = vadd.f32 %v4257, %v4130
        %v4259 = vadd.f32 %v4258, %v4131
        %v4260 = vadd.f32 %v4259, %v4132
        %v4261 = vadd.f32 %v4260, %v4133
        %v4262 = vadd.f32 %v4261, %v4134
        %v4263 = vadd.f32 %v4262, %v4135
        %v4264 = vadd.f32 %v4263, %v4136
        %v4265 = vadd.f32 %v4264, %v4137
        %v4266 = vadd.f32 %v4265, %v4138
        %v4267 = vadd.f32 %v4266, %v4139
        %v4268 = vadd.f32 %v4267, %v4140
        %v4269 = vadd.f32 %v4268, %v4141
        %v4270 = vadd.f32 %v4269, %v4142
        %v4271 = vadd.f32 %v4270, %v4143
        %v4272 = vadd.f32 %v4271, %v4144
        %v4273 = vadd.f32 %v4272, %v4145
        %v4274 = vadd.f32 %v4273, %v4146
        %v4275 = vadd.f32 %v4274, %v4147
        %v4276 = vadd.f32 %v4275, %v4148
        %v4277 = vadd.f32 %v4276, %v4149
        %v4278 = vadd.f32 %v4277, %v4150
        %v4279 = vadd.f32 %v4278, %v4151
        %v4280 = vadd.f32 %v3638, %v4279
        %v4281 = vadd.f32 %v4153, %v4154
        %v4282 = vadd.f32 %v4281, %v4155
        %v4283 = vadd.f32 %v4282, %v4156
        %v4284 = vadd.f32 %v4283, %v4157
        %v4285 = vadd.f32 %v4284, %v4158
        %v4286 = vadd.f32 %v4285, %v4159
        %v4287 = vadd.f32 %v4286, %v4160
        %v4288 = vadd.f32 %v4287, %v4161
        %v4289 = vadd.f32 %v4288, %v4162
        %v4290 = vadd.f32 %v4289, %v4163
        %v4291 = vadd.f32 %v4290, %v4164
        %v4292 = vadd.f32 %v4291, %v4165
        %v4293 = vadd.f32 %v4292, %v4166
        %v4294 = vadd.f32 %v4293, %v4167
        %v4295 = vadd.f32 %v4294, %v4168
        %v4296 = vadd.f32 %v4295, %v4169
        %v4297 = vadd.f32 %v4296, %v4170
        %v4298 = vadd.f32 %v4297, %v4171
        %v4299 = vadd.f32 %v4298, %v4172
        %v4300 = vadd.f32 %v4299, %v4173
        %v4301 = vadd.f32 %v4300, %v4174
        %v4302 = vadd.f32 %v4301, %v4175
        %v4303 = vadd.f32 %v4302, %v4176
        %v4304 = vadd.f32 %v4303, %v4177
        %v4305 = vadd.f32 %v4304, %v4178
        %v4306 = vadd.f32 %v4305, %v4179
        %v4307 = vadd.f32 %v4306, %v4180
        %v4308 = vadd.f32 %v4307, %v4181
        %v4309 = vadd.f32 %v4308, %v4182
        %v4310 = vadd.f32 %v4309, %v4183
        %v4311 = vadd.f32 %v4310, %v4184
        %v4312 = vadd.f32 %v4311, %v4185
        %v4313 = vadd.f32 %v4312, %v4186
        %v4314 = vadd.f32 %v4313, %v4187
        %v4315 = vadd.f32 %v4314, %v4188
        %v4316 = vadd.f32 %v4315, %v4189
        %v4317 = vadd.f32 %v4316, %v4190
        %v4318 = vadd.f32 %v4317, %v4191
        %v4319 = vadd.f32 %v4318, %v4192
        %v4320 = vadd.f32 %v4319, %v4193
        %v4321 = vadd.f32 %v4320, %v4194
        %v4322 = vadd.f32 %v4321, %v4195
        %v4323 = vadd.f32 %v4322, %v4196
        %v4324 = vadd.f32 %v4323, %v4197
        %v4325 = vadd.f32 %v4324, %v4198
        %v4326 = vadd.f32 %v4325, %v4199
        %v4327 = vadd.f32 %v4326, %v4200
        %v4328 = vadd.f32 %v4327, %v4201
        %v4329 = vadd.f32 %v4328, %v4202
        %v4330 = vadd.f32 %v4329, %v4203
        %v4331 = vadd.f32 %v4330, %v4204
        %v4332 = vadd.f32 %v4331, %v4205
        %v4333 = vadd.f32 %v4332, %v4206
        %v4334 = vadd.f32 %v4333, %v4207
        %v4335 = vadd.f32 %v4334, %v4208
        %v4336 = vadd.f32 %v4335, %v4209
        %v4337 = vadd.f32 %v4336, %v4210
        %v4338 = vadd.f32 %v4337, %v4211
        %v4339 = vadd.f32 %v4338, %v4212
        %v4340 = vadd.f32 %v4339, %v4213
        %v4341 = vadd.f32 %v4340, %v4214
        %v4342 = vadd.f32 %v4341, %v4215
        %v4343 = vadd.f32 %v4342, %v4216
        %v4344 = vadd.f32 %v3702, %v4343
        %v4345 = vmul.f32 %v4088, %v4088
        %v4346 = vmul.f32 %v4089, %v4089
        %v4347 = vmul.f32 %v4090, %v4090
        %v4348 = vmul.f32 %v4091, %v4091
        %v4349 = vmul.f32 %v4092, %v4092
        %v4350 = vmul.f32 %v4093, %v4093
        %v4351 = vmul.f32 %v4094, %v4094
        %v4352 = vmul.f32 %v4095, %v4095
        %v4353 = vmul.f32 %v4096, %v4096
        %v4354 = vmul.f32 %v4097, %v4097
        %v4355 = vmul.f32 %v4098, %v4098
        %v4356 = vmul.f32 %v4099, %v4099
        %v4357 = vmul.f32 %v4100, %v4100
        %v4358 = vmul.f32 %v4101, %v4101
        %v4359 = vmul.f32 %v4102, %v4102
        %v4360 = vmul.f32 %v4103, %v4103
        %v4361 = vmul.f32 %v4104, %v4104
        %v4362 = vmul.f32 %v4105, %v4105
        %v4363 = vmul.f32 %v4106, %v4106
        %v4364 = vmul.f32 %v4107, %v4107
        %v4365 = vmul.f32 %v4108, %v4108
        %v4366 = vmul.f32 %v4109, %v4109
        %v4367 = vmul.f32 %v4110, %v4110
        %v4368 = vmul.f32 %v4111, %v4111
        %v4369 = vmul.f32 %v4112, %v4112
        %v4370 = vmul.f32 %v4113, %v4113
        %v4371 = vmul.f32 %v4114, %v4114
        %v4372 = vmul.f32 %v4115, %v4115
        %v4373 = vmul.f32 %v4116, %v4116
        %v4374 = vmul.f32 %v4117, %v4117
        %v4375 = vmul.f32 %v4118, %v4118
        %v4376 = vmul.f32 %v4119, %v4119
        %v4377 = vmul.f32 %v4120, %v4120
        %v4378 = vmul.f32 %v4121, %v4121
        %v4379 = vmul.f32 %v4122, %v4122
        %v4380 = vmul.f32 %v4123, %v4123
        %v4381 = vmul.f32 %v4124, %v4124
        %v4382 = vmul.f32 %v4125, %v4125
        %v4383 = vmul.f32 %v4126, %v4126
        %v4384 = vmul.f32 %v4127, %v4127
        %v4385 = vmul.f32 %v4128, %v4128
        %v4386 = vmul.f32 %v4129, %v4129
        %v4387 = vmul.f32 %v4130, %v4130
        %v4388 = vmul.f32 %v4131, %v4131
        %v4389 = vmul.f32 %v4132, %v4132
        %v4390 = vmul.f32 %v4133, %v4133
        %v4391 = vmul.f32 %v4134, %v4134
        %v4392 = vmul.f32 %v4135, %v4135
        %v4393 = vmul.f32 %v4136, %v4136
        %v4394 = vmul.f32 %v4137, %v4137
        %v4395 = vmul.f32 %v4138, %v4138
        %v4396 = vmul.f32 %v4139, %v4139
        %v4397 = vmul.f32 %v4140, %v4140
        %v4398 = vmul.f32 %v4141, %v4141
        %v4399 = vmul.f32 %v4142, %v4142
        %v4400 = vmul.f32 %v4143, %v4143
        %v4401 = vmul.f32 %v4144, %v4144
        %v4402 = vmul.f32 %v4145, %v4145
        %v4403 = vmul.f32 %v4146, %v4146
        %v4404 = vmul.f32 %v4147, %v4147
        %v4405 = vmul.f32 %v4148, %v4148
        %v4406 = vmul.f32 %v4149, %v4149
        %v4407 = vmul.f32 %v4150, %v4150
        %v4408 = vmul.f32 %v4151, %v4151
        %v4409 = vadd.f32 %v4345, %v4346
        %v4410 = vadd.f32 %v4409, %v4347
        %v4411 = vadd.f32 %v4410, %v4348
        %v4412 = vadd.f32 %v4411, %v4349
        %v4413 = vadd.f32 %v4412, %v4350
        %v4414 = vadd.f32 %v4413, %v4351
        %v4415 = vadd.f32 %v4414, %v4352
        %v4416 = vadd.f32 %v4415, %v4353
        %v4417 = vadd.f32 %v4416, %v4354
        %v4418 = vadd.f32 %v4417, %v4355
        %v4419 = vadd.f32 %v4418, %v4356
        %v4420 = vadd.f32 %v4419, %v4357
        %v4421 = vadd.f32 %v4420, %v4358
        %v4422 = vadd.f32 %v4421, %v4359
        %v4423 = vadd.f32 %v4422, %v4360
        %v4424 = vadd.f32 %v4423, %v4361
        %v4425 = vadd.f32 %v4424, %v4362
        %v4426 = vadd.f32 %v4425, %v4363
        %v4427 = vadd.f32 %v4426, %v4364
        %v4428 = vadd.f32 %v4427, %v4365
        %v4429 = vadd.f32 %v4428, %v4366
        %v4430 = vadd.f32 %v4429, %v4367
        %v4431 = vadd.f32 %v4430, %v4368
        %v4432 = vadd.f32 %v4431, %v4369
        %v4433 = vadd.f32 %v4432, %v4370
        %v4434 = vadd.f32 %v4433, %v4371
        %v4435 = vadd.f32 %v4434, %v4372
        %v4436 = vadd.f32 %v4435, %v4373
        %v4437 = vadd.f32 %v4436, %v4374
        %v4438 = vadd.f32 %v4437, %v4375
        %v4439 = vadd.f32 %v4438, %v4376
        %v4440 = vadd.f32 %v4439, %v4377
        %v4441 = vadd.f32 %v4440, %v4378
        %v4442 = vadd.f32 %v4441, %v4379
        %v4443 = vadd.f32 %v4442, %v4380
        %v4444 = vadd.f32 %v4443, %v4381
        %v4445 = vadd.f32 %v4444, %v4382
        %v4446 = vadd.f32 %v4445, %v4383
        %v4447 = vadd.f32 %v4446, %v4384
        %v4448 = vadd.f32 %v4447, %v4385
        %v4449 = vadd.f32 %v4448, %v4386
        %v4450 = vadd.f32 %v4449, %v4387
        %v4451 = vadd.f32 %v4450, %v4388
        %v4452 = vadd.f32 %v4451, %v4389
        %v4453 = vadd.f32 %v4452, %v4390
        %v4454 = vadd.f32 %v4453, %v4391
        %v4455 = vadd.f32 %v4454, %v4392
        %v4456 = vadd.f32 %v4455, %v4393
        %v4457 = vadd.f32 %v4456, %v4394
        %v4458 = vadd.f32 %v4457, %v4395
        %v4459 = vadd.f32 %v4458, %v4396
        %v4460 = vadd.f32 %v4459, %v4397
        %v4461 = vadd.f32 %v4460, %v4398
        %v4462 = vadd.f32 %v4461, %v4399
        %v4463 = vadd.f32 %v4462, %v4400
        %v4464 = vadd.f32 %v4463, %v4401
        %v4465 = vadd.f32 %v4464, %v4402
        %v4466 = vadd.f32 %v4465, %v4403
        %v4467 = vadd.f32 %v4466, %v4404
        %v4468 = vadd.f32 %v4467, %v4405
        %v4469 = vadd.f32 %v4468, %v4406
        %v4470 = vadd.f32 %v4469, %v4407
        %v4471 = vadd.f32 %v4470, %v4408
        %v4472 = vadd.f32 %v3830, %v4471
        %v4473 = vmul.f32 %v4153, %v4153
        %v4474 = vmul.f32 %v4154, %v4154
        %v4475 = vmul.f32 %v4155, %v4155
        %v4476 = vmul.f32 %v4156, %v4156
        %v4477 = vmul.f32 %v4157, %v4157
        %v4478 = vmul.f32 %v4158, %v4158
        %v4479 = vmul.f32 %v4159, %v4159
        %v4480 = vmul.f32 %v4160, %v4160
        %v4481 = vmul.f32 %v4161, %v4161
        %v4482 = vmul.f32 %v4162, %v4162
        %v4483 = vmul.f32 %v4163, %v4163
        %v4484 = vmul.f32 %v4164, %v4164
        %v4485 = vmul.f32 %v4165, %v4165
        %v4486 = vmul.f32 %v4166, %v4166
        %v4487 = vmul.f32 %v4167, %v4167
        %v4488 = vmul.f32 %v4168, %v4168
        %v4489 = vmul.f32 %v4169, %v4169
        %v4490 = vmul.f32 %v4170, %v4170
        %v4491 = vmul.f32 %v4171, %v4171
        %v4492 = vmul.f32 %v4172, %v4172
        %v4493 = vmul.f32 %v4173, %v4173
        %v4494 = vmul.f32 %v4174, %v4174
        %v4495 = vmul.f32 %v4175, %v4175
        %v4496 = vmul.f32 %v4176, %v4176
        %v4497 = vmul.f32 %v4177, %v4177
        %v4498 = vmul.f32 %v4178, %v4178
        %v4499 = vmul.f32 %v4179, %v4179
        %v4500 = vmul.f32 %v4180, %v4180
        %v4501 = vmul.f32 %v4181, %v4181
        %v4502 = vmul.f32 %v4182, %v4182
        %v4503 = vmul.f32 %v4183, %v4183
        %v4504 = vmul.f32 %v4184, %v4184
        %v4505 = vmul.f32 %v4185, %v4185
        %v4506 = vmul.f32 %v4186, %v4186
        %v4507 = vmul.f32 %v4187, %v4187
        %v4508 = vmul.f32 %v4188, %v4188
        %v4509 = vmul.f32 %v4189, %v4189
        %v4510 = vmul.f32 %v4190, %v4190
        %v4511 = vmul.f32 %v4191, %v4191
        %v4512 = vmul.f32 %v4192, %v4192
        %v4513 = vmul.f32 %v4193, %v4193
        %v4514 = vmul.f32 %v4194, %v4194
        %v4515 = vmul.f32 %v4195, %v4195
        %v4516 = vmul.f32 %v4196, %v4196
        %v4517 = vmul.f32 %v4197, %v4197
        %v4518 = vmul.f32 %v4198, %v4198
        %v4519 = vmul.f32 %v4199, %v4199
        %v4520 = vmul.f32 %v4200, %v4200
        %v4521 = vmul.f32 %v4201, %v4201
        %v4522 = vmul.f32 %v4202, %v4202
        %v4523 = vmul.f32 %v4203, %v4203
        %v4524 = vmul.f32 %v4204, %v4204
        %v4525 = vmul.f32 %v4205, %v4205
        %v4526 = vmul.f32 %v4206, %v4206
        %v4527 = vmul.f32 %v4207, %v4207
        %v4528 = vmul.f32 %v4208, %v4208
        %v4529 = vmul.f32 %v4209, %v4209
        %v4530 = vmul.f32 %v4210, %v4210
        %v4531 = vmul.f32 %v4211, %v4211
        %v4532 = vmul.f32 %v4212, %v4212
        %v4533 = vmul.f32 %v4213, %v4213
        %v4534 = vmul.f32 %v4214, %v4214
        %v4535 = vmul.f32 %v4215, %v4215
        %v4536 = vmul.f32 %v4216, %v4216
        %v4537 = vadd.f32 %v4473, %v4474
        %v4538 = vadd.f32 %v4537, %v4475
        %v4539 = vadd.f32 %v4538, %v4476
        %v4540 = vadd.f32 %v4539, %v4477
        %v4541 = vadd.f32 %v4540, %v4478
        %v4542 = vadd.f32 %v4541, %v4479
        %v4543 = vadd.f32 %v4542, %v4480
        %v4544 = vadd.f32 %v4543, %v4481
        %v4545 = vadd.f32 %v4544, %v4482
        %v4546 = vadd.f32 %v4545, %v4483
        %v4547 = vadd.f32 %v4546, %v4484
        %v4548 = vadd.f32 %v4547, %v4485
        %v4549 = vadd.f32 %v4548, %v4486
        %v4550 = vadd.f32 %v4549, %v4487
        %v4551 = vadd.f32 %v4550, %v4488
        %v4552 = vadd.f32 %v4551, %v4489
        %v4553 = vadd.f32 %v4552, %v4490
        %v4554 = vadd.f32 %v4553, %v4491
        %v4555 = vadd.f32 %v4554, %v4492
        %v4556 = vadd.f32 %v4555, %v4493
        %v4557 = vadd.f32 %v4556, %v4494
        %v4558 = vadd.f32 %v4557, %v4495
        %v4559 = vadd.f32 %v4558, %v4496
        %v4560 = vadd.f32 %v4559, %v4497
        %v4561 = vadd.f32 %v4560, %v4498
        %v4562 = vadd.f32 %v4561, %v4499
        %v4563 = vadd.f32 %v4562, %v4500
        %v4564 = vadd.f32 %v4563, %v4501
        %v4565 = vadd.f32 %v4564, %v4502
        %v4566 = vadd.f32 %v4565, %v4503
        %v4567 = vadd.f32 %v4566, %v4504
        %v4568 = vadd.f32 %v4567, %v4505
        %v4569 = vadd.f32 %v4568, %v4506
        %v4570 = vadd.f32 %v4569, %v4507
        %v4571 = vadd.f32 %v4570, %v4508
        %v4572 = vadd.f32 %v4571, %v4509
        %v4573 = vadd.f32 %v4572, %v4510
        %v4574 = vadd.f32 %v4573, %v4511
        %v4575 = vadd.f32 %v4574, %v4512
        %v4576 = vadd.f32 %v4575, %v4513
        %v4577 = vadd.f32 %v4576, %v4514
        %v4578 = vadd.f32 %v4577, %v4515
        %v4579 = vadd.f32 %v4578, %v4516
        %v4580 = vadd.f32 %v4579, %v4517
        %v4581 = vadd.f32 %v4580, %v4518
        %v4582 = vadd.f32 %v4581, %v4519
        %v4583 = vadd.f32 %v4582, %v4520
        %v4584 = vadd.f32 %v4583, %v4521
        %v4585 = vadd.f32 %v4584, %v4522
        %v4586 = vadd.f32 %v4585, %v4523
        %v4587 = vadd.f32 %v4586, %v4524
        %v4588 = vadd.f32 %v4587, %v4525
        %v4589 = vadd.f32 %v4588, %v4526
        %v4590 = vadd.f32 %v4589, %v4527
        %v4591 = vadd.f32 %v4590, %v4528
        %v4592 = vadd.f32 %v4591, %v4529
        %v4593 = vadd.f32 %v4592, %v4530
        %v4594 = vadd.f32 %v4593, %v4531
        %v4595 = vadd.f32 %v4594, %v4532
        %v4596 = vadd.f32 %v4595, %v4533
        %v4597 = vadd.f32 %v4596, %v4534
        %v4598 = vadd.f32 %v4597, %v4535
        %v4599 = vadd.f32 %v4598, %v4536
        %v4600 = vadd.f32 %v3958, %v4599
        %v4601 = vmul.f32 %v4088, %v4153
        %v4602 = vmul.f32 %v4089, %v4154
        %v4603 = vmul.f32 %v4090, %v4155
        %v4604 = vmul.f32 %v4091, %v4156
        %v4605 = vmul.f32 %v4092, %v4157
        %v4606 = vmul.f32 %v4093, %v4158
        %v4607 = vmul.f32 %v4094, %v4159
        %v4608 = vmul.f32 %v4095, %v4160
        %v4609 = vmul.f32 %v4096, %v4161
        %v4610 = vmul.f32 %v4097, %v4162
        %v4611 = vmul.f32 %v4098, %v4163
        %v4612 = vmul.f32 %v4099, %v4164
        %v4613 = vmul.f32 %v4100, %v4165
        %v4614 = vmul.f32 %v4101, %v4166
        %v4615 = vmul.f32 %v4102, %v4167
        %v4616 = vmul.f32 %v4103, %v4168
        %v4617 = vmul.f32 %v4104, %v4169
        %v4618 = vmul.f32 %v4105, %v4170
        %v4619 = vmul.f32 %v4106, %v4171
        %v4620 = vmul.f32 %v4107, %v4172
        %v4621 = vmul.f32 %v4108, %v4173
        %v4622 = vmul.f32 %v4109, %v4174
        %v4623 = vmul.f32 %v4110, %v4175
        %v4624 = vmul.f32 %v4111, %v4176
        %v4625 = vmul.f32 %v4112, %v4177
        %v4626 = vmul.f32 %v4113, %v4178
        %v4627 = vmul.f32 %v4114, %v4179
        %v4628 = vmul.f32 %v4115, %v4180
        %v4629 = vmul.f32 %v4116, %v4181
        %v4630 = vmul.f32 %v4117, %v4182
        %v4631 = vmul.f32 %v4118, %v4183
        %v4632 = vmul.f32 %v4119, %v4184
        %v4633 = vmul.f32 %v4120, %v4185
        %v4634 = vmul.f32 %v4121, %v4186
        %v4635 = vmul.f32 %v4122, %v4187
        %v4636 = vmul.f32 %v4123, %v4188
        %v4637 = vmul.f32 %v4124, %v4189
        %v4638 = vmul.f32 %v4125, %v4190
        %v4639 = vmul.f32 %v4126, %v4191
        %v4640 = vmul.f32 %v4127, %v4192
        %v4641 = vmul.f32 %v4128, %v4193
        %v4642 = vmul.f32 %v4129, %v4194
        %v4643 = vmul.f32 %v4130, %v4195
        %v4644 = vmul.f32 %v4131, %v4196
        %v4645 = vmul.f32 %v4132, %v4197
        %v4646 = vmul.f32 %v4133, %v4198
        %v4647 = vmul.f32 %v4134, %v4199
        %v4648 = vmul.f32 %v4135, %v4200
        %v4649 = vmul.f32 %v4136, %v4201
        %v4650 = vmul.f32 %v4137, %v4202
        %v4651 = vmul.f32 %v4138, %v4203
        %v4652 = vmul.f32 %v4139, %v4204
        %v4653 = vmul.f32 %v4140, %v4205
        %v4654 = vmul.f32 %v4141, %v4206
        %v4655 = vmul.f32 %v4142, %v4207
        %v4656 = vmul.f32 %v4143, %v4208
        %v4657 = vmul.f32 %v4144, %v4209
        %v4658 = vmul.f32 %v4145, %v4210
        %v4659 = vmul.f32 %v4146, %v4211
        %v4660 = vmul.f32 %v4147, %v4212
        %v4661 = vmul.f32 %v4148, %v4213
        %v4662 = vmul.f32 %v4149, %v4214
        %v4663 = vmul.f32 %v4150, %v4215
        %v4664 = vmul.f32 %v4151, %v4216
        %v4665 = vadd.f32 %v4601, %v4602
        %v4666 = vadd.f32 %v4665, %v4603
        %v4667 = vadd.f32 %v4666, %v4604
        %v4668 = vadd.f32 %v4667, %v4605
        %v4669 = vadd.f32 %v4668, %v4606
        %v4670 = vadd.f32 %v4669, %v4607
        %v4671 = vadd.f32 %v4670, %v4608
        %v4672 = vadd.f32 %v4671, %v4609
        %v4673 = vadd.f32 %v4672, %v4610
        %v4674 = vadd.f32 %v4673, %v4611
        %v4675 = vadd.f32 %v4674, %v4612
        %v4676 = vadd.f32 %v4675, %v4613
        %v4677 = vadd.f32 %v4676, %v4614
        %v4678 = vadd.f32 %v4677, %v4615
        %v4679 = vadd.f32 %v4678, %v4616
        %v4680 = vadd.f32 %v4679, %v4617
        %v4681 = vadd.f32 %v4680, %v4618
        %v4682 = vadd.f32 %v4681, %v4619
        %v4683 = vadd.f32 %v4682, %v4620
        %v4684 = vadd.f32 %v4683, %v4621
        %v4685 = vadd.f32 %v4684, %v4622
        %v4686 = vadd.f32 %v4685, %v4623
        %v4687 = vadd.f32 %v4686, %v4624
        %v4688 = vadd.f32 %v4687, %v4625
        %v4689 = vadd.f32 %v4688, %v4626
        %v4690 = vadd.f32 %v4689, %v4627
        %v4691 = vadd.f32 %v4690, %v4628
        %v4692 = vadd.f32 %v4691, %v4629
        %v4693 = vadd.f32 %v4692, %v4630
        %v4694 = vadd.f32 %v4693, %v4631
        %v4695 = vadd.f32 %v4694, %v4632
        %v4696 = vadd.f32 %v4695, %v4633
        %v4697 = vadd.f32 %v4696, %v4634
        %v4698 = vadd.f32 %v4697, %v4635
        %v4699 = vadd.f32 %v4698, %v4636
        %v4700 = vadd.f32 %v4699, %v4637
        %v4701 = vadd.f32 %v4700, %v4638
        %v4702 = vadd.f32 %v4701, %v4639
        %v4703 = vadd.f32 %v4702, %v4640
        %v4704 = vadd.f32 %v4703, %v4641
        %v4705 = vadd.f32 %v4704, %v4642
        %v4706 = vadd.f32 %v4705, %v4643
        %v4707 = vadd.f32 %v4706, %v4644
        %v4708 = vadd.f32 %v4707, %v4645
        %v4709 = vadd.f32 %v4708, %v4646
        %v4710 = vadd.f32 %v4709, %v4647
        %v4711 = vadd.f32 %v4710, %v4648
        %v4712 = vadd.f32 %v4711, %v4649
        %v4713 = vadd.f32 %v4712, %v4650
        %v4714 = vadd.f32 %v4713, %v4651
        %v4715 = vadd.f32 %v4714, %v4652
        %v4716 = vadd.f32 %v4715, %v4653
        %v4717 = vadd.f32 %v4716, %v4654
        %v4718 = vadd.f32 %v4717, %v4655
        %v4719 = vadd.f32 %v4718, %v4656
        %v4720 = vadd.f32 %v4719, %v4657
        %v4721 = vadd.f32 %v4720, %v4658
        %v4722 = vadd.f32 %v4721, %v4659
        %v4723 = vadd.f32 %v4722, %v4660
        %v4724 = vadd.f32 %v4723, %v4661
        %v4725 = vadd.f32 %v4724, %v4662
        %v4726 = vadd.f32 %v4725, %v4663
        %v4727 = vadd.f32 %v4726, %v4664
        %v4728 = vadd.f32 %v4086, %v4727
        %s4729 = scalar_lea.vmem %s186, 3584 [#allocation7]
        %v4730 = vld [vmem:[%s4729] sm:$0xff]
        %v4731 = vld [vmem:[%s4729 + $0x8] sm:$0xff]
        %v4732 = vld [vmem:[%s4729 + $0x10] sm:$0xff]
        %v4733 = vld [vmem:[%s4729 + $0x18] sm:$0xff]
        %v4734 = vld [vmem:[%s4729 + $0x20] sm:$0xff]
        %v4735 = vld [vmem:[%s4729 + $0x28] sm:$0xff]
        %v4736 = vld [vmem:[%s4729 + $0x30] sm:$0xff]
        %v4737 = vld [vmem:[%s4729 + $0x38] sm:$0xff]
        %v4738 = vld [vmem:[%s4729 + $0x40] sm:$0xff]
        %v4739 = vld [vmem:[%s4729 + $0x48] sm:$0xff]
        %v4740 = vld [vmem:[%s4729 + $0x50] sm:$0xff]
        %v4741 = vld [vmem:[%s4729 + $0x58] sm:$0xff]
        %v4742 = vld [vmem:[%s4729 + $0x60] sm:$0xff]
        %v4743 = vld [vmem:[%s4729 + $0x68] sm:$0xff]
        %v4744 = vld [vmem:[%s4729 + $0x70] sm:$0xff]
        %v4745 = vld [vmem:[%s4729 + $0x78] sm:$0xff]
        %v4746 = vld [vmem:[%s4729 + $0x80] sm:$0xff]
        %v4747 = vld [vmem:[%s4729 + $0x88] sm:$0xff]
        %v4748 = vld [vmem:[%s4729 + $0x90] sm:$0xff]
        %v4749 = vld [vmem:[%s4729 + $0x98] sm:$0xff]
        %v4750 = vld [vmem:[%s4729 + $0xa0] sm:$0xff]
        %v4751 = vld [vmem:[%s4729 + $0xa8] sm:$0xff]
        %v4752 = vld [vmem:[%s4729 + $0xb0] sm:$0xff]
        %v4753 = vld [vmem:[%s4729 + $0xb8] sm:$0xff]
        %v4754 = vld [vmem:[%s4729 + $0xc0] sm:$0xff]
        %v4755 = vld [vmem:[%s4729 + $0xc8] sm:$0xff]
        %v4756 = vld [vmem:[%s4729 + $0xd0] sm:$0xff]
        %v4757 = vld [vmem:[%s4729 + $0xd8] sm:$0xff]
        %v4758 = vld [vmem:[%s4729 + $0xe0] sm:$0xff]
        %v4759 = vld [vmem:[%s4729 + $0xe8] sm:$0xff]
        %v4760 = vld [vmem:[%s4729 + $0xf0] sm:$0xff]
        %v4761 = vld [vmem:[%s4729 + $0xf8] sm:$0xff]
        %v4762 = vld [vmem:[%s4729 + $0x100] sm:$0xff]
        %v4763 = vld [vmem:[%s4729 + $0x108] sm:$0xff]
        %v4764 = vld [vmem:[%s4729 + $0x110] sm:$0xff]
        %v4765 = vld [vmem:[%s4729 + $0x118] sm:$0xff]
        %v4766 = vld [vmem:[%s4729 + $0x120] sm:$0xff]
        %v4767 = vld [vmem:[%s4729 + $0x128] sm:$0xff]
        %v4768 = vld [vmem:[%s4729 + $0x130] sm:$0xff]
        %v4769 = vld [vmem:[%s4729 + $0x138] sm:$0xff]
        %v4770 = vld [vmem:[%s4729 + $0x140] sm:$0xff]
        %v4771 = vld [vmem:[%s4729 + $0x148] sm:$0xff]
        %v4772 = vld [vmem:[%s4729 + $0x150] sm:$0xff]
        %v4773 = vld [vmem:[%s4729 + $0x158] sm:$0xff]
        %v4774 = vld [vmem:[%s4729 + $0x160] sm:$0xff]
        %v4775 = vld [vmem:[%s4729 + $0x168] sm:$0xff]
        %v4776 = vld [vmem:[%s4729 + $0x170] sm:$0xff]
        %v4777 = vld [vmem:[%s4729 + $0x178] sm:$0xff]
        %v4778 = vld [vmem:[%s4729 + $0x180] sm:$0xff]
        %v4779 = vld [vmem:[%s4729 + $0x188] sm:$0xff]
        %v4780 = vld [vmem:[%s4729 + $0x190] sm:$0xff]
        %v4781 = vld [vmem:[%s4729 + $0x198] sm:$0xff]
        %v4782 = vld [vmem:[%s4729 + $0x1a0] sm:$0xff]
        %v4783 = vld [vmem:[%s4729 + $0x1a8] sm:$0xff]
        %v4784 = vld [vmem:[%s4729 + $0x1b0] sm:$0xff]
        %v4785 = vld [vmem:[%s4729 + $0x1b8] sm:$0xff]
        %v4786 = vld [vmem:[%s4729 + $0x1c0] sm:$0xff]
        %v4787 = vld [vmem:[%s4729 + $0x1c8] sm:$0xff]
        %v4788 = vld [vmem:[%s4729 + $0x1d0] sm:$0xff]
        %v4789 = vld [vmem:[%s4729 + $0x1d8] sm:$0xff]
        %v4790 = vld [vmem:[%s4729 + $0x1e0] sm:$0xff]
        %v4791 = vld [vmem:[%s4729 + $0x1e8] sm:$0xff]
        %v4792 = vld [vmem:[%s4729 + $0x1f0] sm:$0xff]
        %v4793 = vld [vmem:[%s4729 + $0x1f8] sm:$0xff]
        %s4794 = scalar_lea.vmem %s196, 3584 [#allocation9]
        %v4795 = vld [vmem:[%s4794] sm:$0xff]
        %v4796 = vld [vmem:[%s4794 + $0x8] sm:$0xff]
        %v4797 = vld [vmem:[%s4794 + $0x10] sm:$0xff]
        %v4798 = vld [vmem:[%s4794 + $0x18] sm:$0xff]
        %v4799 = vld [vmem:[%s4794 + $0x20] sm:$0xff]
        %v4800 = vld [vmem:[%s4794 + $0x28] sm:$0xff]
        %v4801 = vld [vmem:[%s4794 + $0x30] sm:$0xff]
        %v4802 = vld [vmem:[%s4794 + $0x38] sm:$0xff]
        %v4803 = vld [vmem:[%s4794 + $0x40] sm:$0xff]
        %v4804 = vld [vmem:[%s4794 + $0x48] sm:$0xff]
        %v4805 = vld [vmem:[%s4794 + $0x50] sm:$0xff]
        %v4806 = vld [vmem:[%s4794 + $0x58] sm:$0xff]
        %v4807 = vld [vmem:[%s4794 + $0x60] sm:$0xff]
        %v4808 = vld [vmem:[%s4794 + $0x68] sm:$0xff]
        %v4809 = vld [vmem:[%s4794 + $0x70] sm:$0xff]
        %v4810 = vld [vmem:[%s4794 + $0x78] sm:$0xff]
        %v4811 = vld [vmem:[%s4794 + $0x80] sm:$0xff]
        %v4812 = vld [vmem:[%s4794 + $0x88] sm:$0xff]
        %v4813 = vld [vmem:[%s4794 + $0x90] sm:$0xff]
        %v4814 = vld [vmem:[%s4794 + $0x98] sm:$0xff]
        %v4815 = vld [vmem:[%s4794 + $0xa0] sm:$0xff]
        %v4816 = vld [vmem:[%s4794 + $0xa8] sm:$0xff]
        %v4817 = vld [vmem:[%s4794 + $0xb0] sm:$0xff]
        %v4818 = vld [vmem:[%s4794 + $0xb8] sm:$0xff]
        %v4819 = vld [vmem:[%s4794 + $0xc0] sm:$0xff]
        %v4820 = vld [vmem:[%s4794 + $0xc8] sm:$0xff]
        %v4821 = vld [vmem:[%s4794 + $0xd0] sm:$0xff]
        %v4822 = vld [vmem:[%s4794 + $0xd8] sm:$0xff]
        %v4823 = vld [vmem:[%s4794 + $0xe0] sm:$0xff]
        %v4824 = vld [vmem:[%s4794 + $0xe8] sm:$0xff]
        %v4825 = vld [vmem:[%s4794 + $0xf0] sm:$0xff]
        %v4826 = vld [vmem:[%s4794 + $0xf8] sm:$0xff]
        %v4827 = vld [vmem:[%s4794 + $0x100] sm:$0xff]
        %v4828 = vld [vmem:[%s4794 + $0x108] sm:$0xff]
        %v4829 = vld [vmem:[%s4794 + $0x110] sm:$0xff]
        %v4830 = vld [vmem:[%s4794 + $0x118] sm:$0xff]
        %v4831 = vld [vmem:[%s4794 + $0x120] sm:$0xff]
        %v4832 = vld [vmem:[%s4794 + $0x128] sm:$0xff]
        %v4833 = vld [vmem:[%s4794 + $0x130] sm:$0xff]
        %v4834 = vld [vmem:[%s4794 + $0x138] sm:$0xff]
        %v4835 = vld [vmem:[%s4794 + $0x140] sm:$0xff]
        %v4836 = vld [vmem:[%s4794 + $0x148] sm:$0xff]
        %v4837 = vld [vmem:[%s4794 + $0x150] sm:$0xff]
        %v4838 = vld [vmem:[%s4794 + $0x158] sm:$0xff]
        %v4839 = vld [vmem:[%s4794 + $0x160] sm:$0xff]
        %v4840 = vld [vmem:[%s4794 + $0x168] sm:$0xff]
        %v4841 = vld [vmem:[%s4794 + $0x170] sm:$0xff]
        %v4842 = vld [vmem:[%s4794 + $0x178] sm:$0xff]
        %v4843 = vld [vmem:[%s4794 + $0x180] sm:$0xff]
        %v4844 = vld [vmem:[%s4794 + $0x188] sm:$0xff]
        %v4845 = vld [vmem:[%s4794 + $0x190] sm:$0xff]
        %v4846 = vld [vmem:[%s4794 + $0x198] sm:$0xff]
        %v4847 = vld [vmem:[%s4794 + $0x1a0] sm:$0xff]
        %v4848 = vld [vmem:[%s4794 + $0x1a8] sm:$0xff]
        %v4849 = vld [vmem:[%s4794 + $0x1b0] sm:$0xff]
        %v4850 = vld [vmem:[%s4794 + $0x1b8] sm:$0xff]
        %v4851 = vld [vmem:[%s4794 + $0x1c0] sm:$0xff]
        %v4852 = vld [vmem:[%s4794 + $0x1c8] sm:$0xff]
        %v4853 = vld [vmem:[%s4794 + $0x1d0] sm:$0xff]
        %v4854 = vld [vmem:[%s4794 + $0x1d8] sm:$0xff]
        %v4855 = vld [vmem:[%s4794 + $0x1e0] sm:$0xff]
        %v4856 = vld [vmem:[%s4794 + $0x1e8] sm:$0xff]
        %v4857 = vld [vmem:[%s4794 + $0x1f0] sm:$0xff]
        %v4858 = vld [vmem:[%s4794 + $0x1f8] sm:$0xff]
        %v4859 = vadd.f32 %v4730, %v4731
        %v4860 = vadd.f32 %v4859, %v4732
        %v4861 = vadd.f32 %v4860, %v4733
        %v4862 = vadd.f32 %v4861, %v4734
        %v4863 = vadd.f32 %v4862, %v4735
        %v4864 = vadd.f32 %v4863, %v4736
        %v4865 = vadd.f32 %v4864, %v4737
        %v4866 = vadd.f32 %v4865, %v4738
        %v4867 = vadd.f32 %v4866, %v4739
        %v4868 = vadd.f32 %v4867, %v4740
        %v4869 = vadd.f32 %v4868, %v4741
        %v4870 = vadd.f32 %v4869, %v4742
        %v4871 = vadd.f32 %v4870, %v4743
        %v4872 = vadd.f32 %v4871, %v4744
        %v4873 = vadd.f32 %v4872, %v4745
        %v4874 = vadd.f32 %v4873, %v4746
        %v4875 = vadd.f32 %v4874, %v4747
        %v4876 = vadd.f32 %v4875, %v4748
        %v4877 = vadd.f32 %v4876, %v4749
        %v4878 = vadd.f32 %v4877, %v4750
        %v4879 = vadd.f32 %v4878, %v4751
        %v4880 = vadd.f32 %v4879, %v4752
        %v4881 = vadd.f32 %v4880, %v4753
        %v4882 = vadd.f32 %v4881, %v4754
        %v4883 = vadd.f32 %v4882, %v4755
        %v4884 = vadd.f32 %v4883, %v4756
        %v4885 = vadd.f32 %v4884, %v4757
        %v4886 = vadd.f32 %v4885, %v4758
        %v4887 = vadd.f32 %v4886, %v4759
        %v4888 = vadd.f32 %v4887, %v4760
        %v4889 = vadd.f32 %v4888, %v4761
        %v4890 = vadd.f32 %v4889, %v4762
        %v4891 = vadd.f32 %v4890, %v4763
        %v4892 = vadd.f32 %v4891, %v4764
        %v4893 = vadd.f32 %v4892, %v4765
        %v4894 = vadd.f32 %v4893, %v4766
        %v4895 = vadd.f32 %v4894, %v4767
        %v4896 = vadd.f32 %v4895, %v4768
        %v4897 = vadd.f32 %v4896, %v4769
        %v4898 = vadd.f32 %v4897, %v4770
        %v4899 = vadd.f32 %v4898, %v4771
        %v4900 = vadd.f32 %v4899, %v4772
        %v4901 = vadd.f32 %v4900, %v4773
        %v4902 = vadd.f32 %v4901, %v4774
        %v4903 = vadd.f32 %v4902, %v4775
        %v4904 = vadd.f32 %v4903, %v4776
        %v4905 = vadd.f32 %v4904, %v4777
        %v4906 = vadd.f32 %v4905, %v4778
        %v4907 = vadd.f32 %v4906, %v4779
        %v4908 = vadd.f32 %v4907, %v4780
        %v4909 = vadd.f32 %v4908, %v4781
        %v4910 = vadd.f32 %v4909, %v4782
        %v4911 = vadd.f32 %v4910, %v4783
        %v4912 = vadd.f32 %v4911, %v4784
        %v4913 = vadd.f32 %v4912, %v4785
        %v4914 = vadd.f32 %v4913, %v4786
        %v4915 = vadd.f32 %v4914, %v4787
        %v4916 = vadd.f32 %v4915, %v4788
        %v4917 = vadd.f32 %v4916, %v4789
        %v4918 = vadd.f32 %v4917, %v4790
        %v4919 = vadd.f32 %v4918, %v4791
        %v4920 = vadd.f32 %v4919, %v4792
        %v4921 = vadd.f32 %v4920, %v4793
        %v4922 = vadd.f32 %v4280, %v4921
        %v4923 = vadd.f32 %v4795, %v4796
        %v4924 = vadd.f32 %v4923, %v4797
        %v4925 = vadd.f32 %v4924, %v4798
        %v4926 = vadd.f32 %v4925, %v4799
        %v4927 = vadd.f32 %v4926, %v4800
        %v4928 = vadd.f32 %v4927, %v4801
        %v4929 = vadd.f32 %v4928, %v4802
        %v4930 = vadd.f32 %v4929, %v4803
        %v4931 = vadd.f32 %v4930, %v4804
        %v4932 = vadd.f32 %v4931, %v4805
        %v4933 = vadd.f32 %v4932, %v4806
        %v4934 = vadd.f32 %v4933, %v4807
        %v4935 = vadd.f32 %v4934, %v4808
        %v4936 = vadd.f32 %v4935, %v4809
        %v4937 = vadd.f32 %v4936, %v4810
        %v4938 = vadd.f32 %v4937, %v4811
        %v4939 = vadd.f32 %v4938, %v4812
        %v4940 = vadd.f32 %v4939, %v4813
        %v4941 = vadd.f32 %v4940, %v4814
        %v4942 = vadd.f32 %v4941, %v4815
        %v4943 = vadd.f32 %v4942, %v4816
        %v4944 = vadd.f32 %v4943, %v4817
        %v4945 = vadd.f32 %v4944, %v4818
        %v4946 = vadd.f32 %v4945, %v4819
        %v4947 = vadd.f32 %v4946, %v4820
        %v4948 = vadd.f32 %v4947, %v4821
        %v4949 = vadd.f32 %v4948, %v4822
        %v4950 = vadd.f32 %v4949, %v4823
        %v4951 = vadd.f32 %v4950, %v4824
        %v4952 = vadd.f32 %v4951, %v4825
        %v4953 = vadd.f32 %v4952, %v4826
        %v4954 = vadd.f32 %v4953, %v4827
        %v4955 = vadd.f32 %v4954, %v4828
        %v4956 = vadd.f32 %v4955, %v4829
        %v4957 = vadd.f32 %v4956, %v4830
        %v4958 = vadd.f32 %v4957, %v4831
        %v4959 = vadd.f32 %v4958, %v4832
        %v4960 = vadd.f32 %v4959, %v4833
        %v4961 = vadd.f32 %v4960, %v4834
        %v4962 = vadd.f32 %v4961, %v4835
        %v4963 = vadd.f32 %v4962, %v4836
        %v4964 = vadd.f32 %v4963, %v4837
        %v4965 = vadd.f32 %v4964, %v4838
        %v4966 = vadd.f32 %v4965, %v4839
        %v4967 = vadd.f32 %v4966, %v4840
        %v4968 = vadd.f32 %v4967, %v4841
        %v4969 = vadd.f32 %v4968, %v4842
        %v4970 = vadd.f32 %v4969, %v4843
        %v4971 = vadd.f32 %v4970, %v4844
        %v4972 = vadd.f32 %v4971, %v4845
        %v4973 = vadd.f32 %v4972, %v4846
        %v4974 = vadd.f32 %v4973, %v4847
        %v4975 = vadd.f32 %v4974, %v4848
        %v4976 = vadd.f32 %v4975, %v4849
        %v4977 = vadd.f32 %v4976, %v4850
        %v4978 = vadd.f32 %v4977, %v4851
        %v4979 = vadd.f32 %v4978, %v4852
        %v4980 = vadd.f32 %v4979, %v4853
        %v4981 = vadd.f32 %v4980, %v4854
        %v4982 = vadd.f32 %v4981, %v4855
        %v4983 = vadd.f32 %v4982, %v4856
        %v4984 = vadd.f32 %v4983, %v4857
        %v4985 = vadd.f32 %v4984, %v4858
        %v4986 = vadd.f32 %v4344, %v4985
        %v4987 = vmul.f32 %v4730, %v4730
        %v4988 = vmul.f32 %v4731, %v4731
        %v4989 = vmul.f32 %v4732, %v4732
        %v4990 = vmul.f32 %v4733, %v4733
        %v4991 = vmul.f32 %v4734, %v4734
        %v4992 = vmul.f32 %v4735, %v4735
        %v4993 = vmul.f32 %v4736, %v4736
        %v4994 = vmul.f32 %v4737, %v4737
        %v4995 = vmul.f32 %v4738, %v4738
        %v4996 = vmul.f32 %v4739, %v4739
        %v4997 = vmul.f32 %v4740, %v4740
        %v4998 = vmul.f32 %v4741, %v4741
        %v4999 = vmul.f32 %v4742, %v4742
        %v5000 = vmul.f32 %v4743, %v4743
        %v5001 = vmul.f32 %v4744, %v4744
        %v5002 = vmul.f32 %v4745, %v4745
        %v5003 = vmul.f32 %v4746, %v4746
        %v5004 = vmul.f32 %v4747, %v4747
        %v5005 = vmul.f32 %v4748, %v4748
        %v5006 = vmul.f32 %v4749, %v4749
        %v5007 = vmul.f32 %v4750, %v4750
        %v5008 = vmul.f32 %v4751, %v4751
        %v5009 = vmul.f32 %v4752, %v4752
        %v5010 = vmul.f32 %v4753, %v4753
        %v5011 = vmul.f32 %v4754, %v4754
        %v5012 = vmul.f32 %v4755, %v4755
        %v5013 = vmul.f32 %v4756, %v4756
        %v5014 = vmul.f32 %v4757, %v4757
        %v5015 = vmul.f32 %v4758, %v4758
        %v5016 = vmul.f32 %v4759, %v4759
        %v5017 = vmul.f32 %v4760, %v4760
        %v5018 = vmul.f32 %v4761, %v4761
        %v5019 = vmul.f32 %v4762, %v4762
        %v5020 = vmul.f32 %v4763, %v4763
        %v5021 = vmul.f32 %v4764, %v4764
        %v5022 = vmul.f32 %v4765, %v4765
        %v5023 = vmul.f32 %v4766, %v4766
        %v5024 = vmul.f32 %v4767, %v4767
        %v5025 = vmul.f32 %v4768, %v4768
        %v5026 = vmul.f32 %v4769, %v4769
        %v5027 = vmul.f32 %v4770, %v4770
        %v5028 = vmul.f32 %v4771, %v4771
        %v5029 = vmul.f32 %v4772, %v4772
        %v5030 = vmul.f32 %v4773, %v4773
        %v5031 = vmul.f32 %v4774, %v4774
        %v5032 = vmul.f32 %v4775, %v4775
        %v5033 = vmul.f32 %v4776, %v4776
        %v5034 = vmul.f32 %v4777, %v4777
        %v5035 = vmul.f32 %v4778, %v4778
        %v5036 = vmul.f32 %v4779, %v4779
        %v5037 = vmul.f32 %v4780, %v4780
        %v5038 = vmul.f32 %v4781, %v4781
        %v5039 = vmul.f32 %v4782, %v4782
        %v5040 = vmul.f32 %v4783, %v4783
        %v5041 = vmul.f32 %v4784, %v4784
        %v5042 = vmul.f32 %v4785, %v4785
        %v5043 = vmul.f32 %v4786, %v4786
        %v5044 = vmul.f32 %v4787, %v4787
        %v5045 = vmul.f32 %v4788, %v4788
        %v5046 = vmul.f32 %v4789, %v4789
        %v5047 = vmul.f32 %v4790, %v4790
        %v5048 = vmul.f32 %v4791, %v4791
        %v5049 = vmul.f32 %v4792, %v4792
        %v5050 = vmul.f32 %v4793, %v4793
        %v5051 = vadd.f32 %v4987, %v4988
        %v5052 = vadd.f32 %v5051, %v4989
        %v5053 = vadd.f32 %v5052, %v4990
        %v5054 = vadd.f32 %v5053, %v4991
        %v5055 = vadd.f32 %v5054, %v4992
        %v5056 = vadd.f32 %v5055, %v4993
        %v5057 = vadd.f32 %v5056, %v4994
        %v5058 = vadd.f32 %v5057, %v4995
        %v5059 = vadd.f32 %v5058, %v4996
        %v5060 = vadd.f32 %v5059, %v4997
        %v5061 = vadd.f32 %v5060, %v4998
        %v5062 = vadd.f32 %v5061, %v4999
        %v5063 = vadd.f32 %v5062, %v5000
        %v5064 = vadd.f32 %v5063, %v5001
        %v5065 = vadd.f32 %v5064, %v5002
        %v5066 = vadd.f32 %v5065, %v5003
        %v5067 = vadd.f32 %v5066, %v5004
        %v5068 = vadd.f32 %v5067, %v5005
        %v5069 = vadd.f32 %v5068, %v5006
        %v5070 = vadd.f32 %v5069, %v5007
        %v5071 = vadd.f32 %v5070, %v5008
        %v5072 = vadd.f32 %v5071, %v5009
        %v5073 = vadd.f32 %v5072, %v5010
        %v5074 = vadd.f32 %v5073, %v5011
        %v5075 = vadd.f32 %v5074, %v5012
        %v5076 = vadd.f32 %v5075, %v5013
        %v5077 = vadd.f32 %v5076, %v5014
        %v5078 = vadd.f32 %v5077, %v5015
        %v5079 = vadd.f32 %v5078, %v5016
        %v5080 = vadd.f32 %v5079, %v5017
        %v5081 = vadd.f32 %v5080, %v5018
        %v5082 = vadd.f32 %v5081, %v5019
        %v5083 = vadd.f32 %v5082, %v5020
        %v5084 = vadd.f32 %v5083, %v5021
        %v5085 = vadd.f32 %v5084, %v5022
        %v5086 = vadd.f32 %v5085, %v5023
        %v5087 = vadd.f32 %v5086, %v5024
        %v5088 = vadd.f32 %v5087, %v5025
        %v5089 = vadd.f32 %v5088, %v5026
        %v5090 = vadd.f32 %v5089, %v5027
        %v5091 = vadd.f32 %v5090, %v5028
        %v5092 = vadd.f32 %v5091, %v5029
        %v5093 = vadd.f32 %v5092, %v5030
        %v5094 = vadd.f32 %v5093, %v5031
        %v5095 = vadd.f32 %v5094, %v5032
        %v5096 = vadd.f32 %v5095, %v5033
        %v5097 = vadd.f32 %v5096, %v5034
        %v5098 = vadd.f32 %v5097, %v5035
        %v5099 = vadd.f32 %v5098, %v5036
        %v5100 = vadd.f32 %v5099, %v5037
        %v5101 = vadd.f32 %v5100, %v5038
        %v5102 = vadd.f32 %v5101, %v5039
        %v5103 = vadd.f32 %v5102, %v5040
        %v5104 = vadd.f32 %v5103, %v5041
        %v5105 = vadd.f32 %v5104, %v5042
        %v5106 = vadd.f32 %v5105, %v5043
        %v5107 = vadd.f32 %v5106, %v5044
        %v5108 = vadd.f32 %v5107, %v5045
        %v5109 = vadd.f32 %v5108, %v5046
        %v5110 = vadd.f32 %v5109, %v5047
        %v5111 = vadd.f32 %v5110, %v5048
        %v5112 = vadd.f32 %v5111, %v5049
        %v5113 = vadd.f32 %v5112, %v5050
        %v5114 = vadd.f32 %v4472, %v5113
        %v5115 = vmul.f32 %v4795, %v4795
        %v5116 = vmul.f32 %v4796, %v4796
        %v5117 = vmul.f32 %v4797, %v4797
        %v5118 = vmul.f32 %v4798, %v4798
        %v5119 = vmul.f32 %v4799, %v4799
        %v5120 = vmul.f32 %v4800, %v4800
        %v5121 = vmul.f32 %v4801, %v4801
        %v5122 = vmul.f32 %v4802, %v4802
        %v5123 = vmul.f32 %v4803, %v4803
        %v5124 = vmul.f32 %v4804, %v4804
        %v5125 = vmul.f32 %v4805, %v4805
        %v5126 = vmul.f32 %v4806, %v4806
        %v5127 = vmul.f32 %v4807, %v4807
        %v5128 = vmul.f32 %v4808, %v4808
        %v5129 = vmul.f32 %v4809, %v4809
        %v5130 = vmul.f32 %v4810, %v4810
        %v5131 = vmul.f32 %v4811, %v4811
        %v5132 = vmul.f32 %v4812, %v4812
        %v5133 = vmul.f32 %v4813, %v4813
        %v5134 = vmul.f32 %v4814, %v4814
        %v5135 = vmul.f32 %v4815, %v4815
        %v5136 = vmul.f32 %v4816, %v4816
        %v5137 = vmul.f32 %v4817, %v4817
        %v5138 = vmul.f32 %v4818, %v4818
        %v5139 = vmul.f32 %v4819, %v4819
        %v5140 = vmul.f32 %v4820, %v4820
        %v5141 = vmul.f32 %v4821, %v4821
        %v5142 = vmul.f32 %v4822, %v4822
        %v5143 = vmul.f32 %v4823, %v4823
        %v5144 = vmul.f32 %v4824, %v4824
        %v5145 = vmul.f32 %v4825, %v4825
        %v5146 = vmul.f32 %v4826, %v4826
        %v5147 = vmul.f32 %v4827, %v4827
        %v5148 = vmul.f32 %v4828, %v4828
        %v5149 = vmul.f32 %v4829, %v4829
        %v5150 = vmul.f32 %v4830, %v4830
        %v5151 = vmul.f32 %v4831, %v4831
        %v5152 = vmul.f32 %v4832, %v4832
        %v5153 = vmul.f32 %v4833, %v4833
        %v5154 = vmul.f32 %v4834, %v4834
        %v5155 = vmul.f32 %v4835, %v4835
        %v5156 = vmul.f32 %v4836, %v4836
        %v5157 = vmul.f32 %v4837, %v4837
        %v5158 = vmul.f32 %v4838, %v4838
        %v5159 = vmul.f32 %v4839, %v4839
        %v5160 = vmul.f32 %v4840, %v4840
        %v5161 = vmul.f32 %v4841, %v4841
        %v5162 = vmul.f32 %v4842, %v4842
        %v5163 = vmul.f32 %v4843, %v4843
        %v5164 = vmul.f32 %v4844, %v4844
        %v5165 = vmul.f32 %v4845, %v4845
        %v5166 = vmul.f32 %v4846, %v4846
        %v5167 = vmul.f32 %v4847, %v4847
        %v5168 = vmul.f32 %v4848, %v4848
        %v5169 = vmul.f32 %v4849, %v4849
        %v5170 = vmul.f32 %v4850, %v4850
        %v5171 = vmul.f32 %v4851, %v4851
        %v5172 = vmul.f32 %v4852, %v4852
        %v5173 = vmul.f32 %v4853, %v4853
        %v5174 = vmul.f32 %v4854, %v4854
        %v5175 = vmul.f32 %v4855, %v4855
        %v5176 = vmul.f32 %v4856, %v4856
        %v5177 = vmul.f32 %v4857, %v4857
        %v5178 = vmul.f32 %v4858, %v4858
        %v5179 = vadd.f32 %v5115, %v5116
        %v5180 = vadd.f32 %v5179, %v5117
        %v5181 = vadd.f32 %v5180, %v5118
        %v5182 = vadd.f32 %v5181, %v5119
        %v5183 = vadd.f32 %v5182, %v5120
        %v5184 = vadd.f32 %v5183, %v5121
        %v5185 = vadd.f32 %v5184, %v5122
        %v5186 = vadd.f32 %v5185, %v5123
        %v5187 = vadd.f32 %v5186, %v5124
        %v5188 = vadd.f32 %v5187, %v5125
        %v5189 = vadd.f32 %v5188, %v5126
        %v5190 = vadd.f32 %v5189, %v5127
        %v5191 = vadd.f32 %v5190, %v5128
        %v5192 = vadd.f32 %v5191, %v5129
        %v5193 = vadd.f32 %v5192, %v5130
        %v5194 = vadd.f32 %v5193, %v5131
        %v5195 = vadd.f32 %v5194, %v5132
        %v5196 = vadd.f32 %v5195, %v5133
        %v5197 = vadd.f32 %v5196, %v5134
        %v5198 = vadd.f32 %v5197, %v5135
        %v5199 = vadd.f32 %v5198, %v5136
        %v5200 = vadd.f32 %v5199, %v5137
        %v5201 = vadd.f32 %v5200, %v5138
        %v5202 = vadd.f32 %v5201, %v5139
        %v5203 = vadd.f32 %v5202, %v5140
        %v5204 = vadd.f32 %v5203, %v5141
        %v5205 = vadd.f32 %v5204, %v5142
        %v5206 = vadd.f32 %v5205, %v5143
        %v5207 = vadd.f32 %v5206, %v5144
        %v5208 = vadd.f32 %v5207, %v5145
        %v5209 = vadd.f32 %v5208, %v5146
        %v5210 = vadd.f32 %v5209, %v5147
        %v5211 = vadd.f32 %v5210, %v5148
        %v5212 = vadd.f32 %v5211, %v5149
        %v5213 = vadd.f32 %v5212, %v5150
        %v5214 = vadd.f32 %v5213, %v5151
        %v5215 = vadd.f32 %v5214, %v5152
        %v5216 = vadd.f32 %v5215, %v5153
        %v5217 = vadd.f32 %v5216, %v5154
        %v5218 = vadd.f32 %v5217, %v5155
        %v5219 = vadd.f32 %v5218, %v5156
        %v5220 = vadd.f32 %v5219, %v5157
        %v5221 = vadd.f32 %v5220, %v5158
        %v5222 = vadd.f32 %v5221, %v5159
        %v5223 = vadd.f32 %v5222, %v5160
        %v5224 = vadd.f32 %v5223, %v5161
        %v5225 = vadd.f32 %v5224, %v5162
        %v5226 = vadd.f32 %v5225, %v5163
        %v5227 = vadd.f32 %v5226, %v5164
        %v5228 = vadd.f32 %v5227, %v5165
        %v5229 = vadd.f32 %v5228, %v5166
        %v5230 = vadd.f32 %v5229, %v5167
        %v5231 = vadd.f32 %v5230, %v5168
        %v5232 = vadd.f32 %v5231, %v5169
        %v5233 = vadd.f32 %v5232, %v5170
        %v5234 = vadd.f32 %v5233, %v5171
        %v5235 = vadd.f32 %v5234, %v5172
        %v5236 = vadd.f32 %v5235, %v5173
        %v5237 = vadd.f32 %v5236, %v5174
        %v5238 = vadd.f32 %v5237, %v5175
        %v5239 = vadd.f32 %v5238, %v5176
        %v5240 = vadd.f32 %v5239, %v5177
        %v5241 = vadd.f32 %v5240, %v5178
        %v5242 = vadd.f32 %v4600, %v5241
        %v5243 = vmul.f32 %v4730, %v4795
        %v5244 = vmul.f32 %v4731, %v4796
        %v5245 = vmul.f32 %v4732, %v4797
        %v5246 = vmul.f32 %v4733, %v4798
        %v5247 = vmul.f32 %v4734, %v4799
        %v5248 = vmul.f32 %v4735, %v4800
        %v5249 = vmul.f32 %v4736, %v4801
        %v5250 = vmul.f32 %v4737, %v4802
        %v5251 = vmul.f32 %v4738, %v4803
        %v5252 = vmul.f32 %v4739, %v4804
        %v5253 = vmul.f32 %v4740, %v4805
        %v5254 = vmul.f32 %v4741, %v4806
        %v5255 = vmul.f32 %v4742, %v4807
        %v5256 = vmul.f32 %v4743, %v4808
        %v5257 = vmul.f32 %v4744, %v4809
        %v5258 = vmul.f32 %v4745, %v4810
        %v5259 = vmul.f32 %v4746, %v4811
        %v5260 = vmul.f32 %v4747, %v4812
        %v5261 = vmul.f32 %v4748, %v4813
        %v5262 = vmul.f32 %v4749, %v4814
        %v5263 = vmul.f32 %v4750, %v4815
        %v5264 = vmul.f32 %v4751, %v4816
        %v5265 = vmul.f32 %v4752, %v4817
        %v5266 = vmul.f32 %v4753, %v4818
        %v5267 = vmul.f32 %v4754, %v4819
        %v5268 = vmul.f32 %v4755, %v4820
        %v5269 = vmul.f32 %v4756, %v4821
        %v5270 = vmul.f32 %v4757, %v4822
        %v5271 = vmul.f32 %v4758, %v4823
        %v5272 = vmul.f32 %v4759, %v4824
        %v5273 = vmul.f32 %v4760, %v4825
        %v5274 = vmul.f32 %v4761, %v4826
        %v5275 = vmul.f32 %v4762, %v4827
        %v5276 = vmul.f32 %v4763, %v4828
        %v5277 = vmul.f32 %v4764, %v4829
        %v5278 = vmul.f32 %v4765, %v4830
        %v5279 = vmul.f32 %v4766, %v4831
        %v5280 = vmul.f32 %v4767, %v4832
        %v5281 = vmul.f32 %v4768, %v4833
        %v5282 = vmul.f32 %v4769, %v4834
        %v5283 = vmul.f32 %v4770, %v4835
        %v5284 = vmul.f32 %v4771, %v4836
        %v5285 = vmul.f32 %v4772, %v4837
        %v5286 = vmul.f32 %v4773, %v4838
        %v5287 = vmul.f32 %v4774, %v4839
        %v5288 = vmul.f32 %v4775, %v4840
        %v5289 = vmul.f32 %v4776, %v4841
        %v5290 = vmul.f32 %v4777, %v4842
        %v5291 = vmul.f32 %v4778, %v4843
        %v5292 = vmul.f32 %v4779, %v4844
        %v5293 = vmul.f32 %v4780, %v4845
        %v5294 = vmul.f32 %v4781, %v4846
        %v5295 = vmul.f32 %v4782, %v4847
        %v5296 = vmul.f32 %v4783, %v4848
        %v5297 = vmul.f32 %v4784, %v4849
        %v5298 = vmul.f32 %v4785, %v4850
        %v5299 = vmul.f32 %v4786, %v4851
        %v5300 = vmul.f32 %v4787, %v4852
        %v5301 = vmul.f32 %v4788, %v4853
        %v5302 = vmul.f32 %v4789, %v4854
        %v5303 = vmul.f32 %v4790, %v4855
        %v5304 = vmul.f32 %v4791, %v4856
        %v5305 = vmul.f32 %v4792, %v4857
        %v5306 = vmul.f32 %v4793, %v4858
        %v5307 = vadd.f32 %v5243, %v5244
        %v5308 = vadd.f32 %v5307, %v5245
        %v5309 = vadd.f32 %v5308, %v5246
        %v5310 = vadd.f32 %v5309, %v5247
        %v5311 = vadd.f32 %v5310, %v5248
        %v5312 = vadd.f32 %v5311, %v5249
        %v5313 = vadd.f32 %v5312, %v5250
        %v5314 = vadd.f32 %v5313, %v5251
        %v5315 = vadd.f32 %v5314, %v5252
        %v5316 = vadd.f32 %v5315, %v5253
        %v5317 = vadd.f32 %v5316, %v5254
        %v5318 = vadd.f32 %v5317, %v5255
        %v5319 = vadd.f32 %v5318, %v5256
        %v5320 = vadd.f32 %v5319, %v5257
        %v5321 = vadd.f32 %v5320, %v5258
        %v5322 = vadd.f32 %v5321, %v5259
        %v5323 = vadd.f32 %v5322, %v5260
        %v5324 = vadd.f32 %v5323, %v5261
        %v5325 = vadd.f32 %v5324, %v5262
        %v5326 = vadd.f32 %v5325, %v5263
        %v5327 = vadd.f32 %v5326, %v5264
        %v5328 = vadd.f32 %v5327, %v5265
        %v5329 = vadd.f32 %v5328, %v5266
        %v5330 = vadd.f32 %v5329, %v5267
        %v5331 = vadd.f32 %v5330, %v5268
        %v5332 = vadd.f32 %v5331, %v5269
        %v5333 = vadd.f32 %v5332, %v5270
        %v5334 = vadd.f32 %v5333, %v5271
        %v5335 = vadd.f32 %v5334, %v5272
        %v5336 = vadd.f32 %v5335, %v5273
        %v5337 = vadd.f32 %v5336, %v5274
        %v5338 = vadd.f32 %v5337, %v5275
        %v5339 = vadd.f32 %v5338, %v5276
        %v5340 = vadd.f32 %v5339, %v5277
        %v5341 = vadd.f32 %v5340, %v5278
        %v5342 = vadd.f32 %v5341, %v5279
        %v5343 = vadd.f32 %v5342, %v5280
        %v5344 = vadd.f32 %v5343, %v5281
        %v5345 = vadd.f32 %v5344, %v5282
        %v5346 = vadd.f32 %v5345, %v5283
        %v5347 = vadd.f32 %v5346, %v5284
        %v5348 = vadd.f32 %v5347, %v5285
        %v5349 = vadd.f32 %v5348, %v5286
        %v5350 = vadd.f32 %v5349, %v5287
        %v5351 = vadd.f32 %v5350, %v5288
        %v5352 = vadd.f32 %v5351, %v5289
        %v5353 = vadd.f32 %v5352, %v5290
        %v5354 = vadd.f32 %v5353, %v5291
        %v5355 = vadd.f32 %v5354, %v5292
        %v5356 = vadd.f32 %v5355, %v5293
        %v5357 = vadd.f32 %v5356, %v5294
        %v5358 = vadd.f32 %v5357, %v5295
        %v5359 = vadd.f32 %v5358, %v5296
        %v5360 = vadd.f32 %v5359, %v5297
        %v5361 = vadd.f32 %v5360, %v5298
        %v5362 = vadd.f32 %v5361, %v5299
        %v5363 = vadd.f32 %v5362, %v5300
        %v5364 = vadd.f32 %v5363, %v5301
        %v5365 = vadd.f32 %v5364, %v5302
        %v5366 = vadd.f32 %v5365, %v5303
        %v5367 = vadd.f32 %v5366, %v5304
        %v5368 = vadd.f32 %v5367, %v5305
        %v5369 = vadd.f32 %v5368, %v5306
        %v5370 = vadd.f32 %v4728, %v5369
        %v5371 = vld [vmem:[#allocation2] sm:$0xff]
        %v5372 = vadd.f32 %v5371, %v4922
        %5373 = vst [vmem:[#allocation2] sm:$0xff] %v5372
        %v5374 = vld [vmem:[#allocation3] sm:$0xff]
        %v5375 = vadd.f32 %v5374, %v4986
        %5376 = vst [vmem:[#allocation3] sm:$0xff] %v5375
        %v5377 = vld [vmem:[#allocation4] sm:$0xff]
        %v5378 = vadd.f32 %v5377, %v5114
        %5379 = vst [vmem:[#allocation4] sm:$0xff] %v5378
        %v5380 = vld [vmem:[#allocation5] sm:$0xff]
        %v5381 = vadd.f32 %v5380, %v5242
        %5382 = vst [vmem:[#allocation5] sm:$0xff] %v5381
        %v5383 = vld [vmem:[#allocation6] sm:$0xff]
        %v5384 = vadd.f32 %v5383, %v5370
        %5385 = vst [vmem:[#allocation6] sm:$0xff] %v5384
        %p5386 = scmp.eq.s32.totalorder %s24, 1
        // Predicated region
        $region41: #{ncc_ori_loss.1} parent=27 // pred_check
          %p5387 = pneg %p5386
        $region42: #{ncc_ori_loss.1} parent=27 // pred_check_branch
          %5389 = sbr.rel (%p5387) target = $region44
        $region43: #{ncc_ori_loss.1} parent=27 // pred_region
          %v5390 = vld [vmem:[#allocation2] sm:$0xff]
          %v5391 = vrot.slane %v5390, 4
          %v5392 = vadd.f32 %v5390, %v5391
          %v5393 = vrot.slane %v5392, 2
          %v5394 = vadd.f32 %v5392, %v5393
          %v5395 = vrot.slane %v5394, 1
          %v5396 = vadd.f32 %v5394, %v5395
          %5397 = vadd.xlane.f32.xlu0 %v5396
          %v5398 = vpop.xlane.xlu0 %5397
          %v5399 = vld [vmem:[#allocation3] sm:$0xff]
          %v5400 = vrot.slane %v5399, 4
          %v5401 = vadd.f32 %v5399, %v5400
          %v5402 = vrot.slane %v5401, 2
          %v5403 = vadd.f32 %v5401, %v5402
          %v5404 = vrot.slane %v5403, 1
          %v5405 = vadd.f32 %v5403, %v5404
          %5406 = vadd.xlane.f32.xlu0 %v5405
          %v5407 = vpop.xlane.xlu0 %5406
          %v5408 = vld [vmem:[#allocation4] sm:$0xff]
          %v5409 = vrot.slane %v5408, 4
          %v5410 = vadd.f32 %v5408, %v5409
          %v5411 = vrot.slane %v5410, 2
          %v5412 = vadd.f32 %v5410, %v5411
          %v5413 = vrot.slane %v5412, 1
          %v5414 = vadd.f32 %v5412, %v5413
          %5415 = vadd.xlane.f32.xlu0 %v5414
          %v5416 = vpop.xlane.xlu0 %5415
          %v5417 = vld [vmem:[#allocation5] sm:$0xff]
          %v5418 = vrot.slane %v5417, 4
          %v5419 = vadd.f32 %v5417, %v5418
          %v5420 = vrot.slane %v5419, 2
          %v5421 = vadd.f32 %v5419, %v5420
          %v5422 = vrot.slane %v5421, 1
          %v5423 = vadd.f32 %v5421, %v5422
          %5424 = vadd.xlane.f32.xlu0 %v5423
          %v5425 = vpop.xlane.xlu0 %5424
          %v5426 = vld [vmem:[#allocation6] sm:$0xff]
          %v5427 = vrot.slane %v5426, 4
          %v5428 = vadd.f32 %v5426, %v5427
          %v5429 = vrot.slane %v5428, 2
          %v5430 = vadd.f32 %v5428, %v5429
          %v5431 = vrot.slane %v5430, 1
          %v5432 = vadd.f32 %v5430, %v5431
          %5433 = vadd.xlane.f32.xlu0 %v5432
          %v5434 = vpop.xlane.xlu0 %5433
          %v5435 = vrcp.pop 1048576.0
          %v5436 = vmul.f32 1048576.0, %v5435
          %v5437 = vsub.f32 1.0, %v5436
          %v5438 = vmul.f32 %v5435, %v5437
          %v5439 = vadd.f32 %v5435, %v5438
          %vm5440 = vweird.f32 %v5435
          %v5441 = vsel %vm5440, %v5435, %v5439
          %v5442 = vmul.f32 %v5398, %v5441
          %v5443 = vmul.f32 %v5407, %v5441
          %v5444 = vmul.f32 %v5443, %v5398
          %v5445 = vsub.f32 %v5434, %v5444
          %v5446 = vmul.f32 %v5442, %v5407
          %v5447 = vsub.f32 %v5445, %v5446
          %v5448 = vmul.f32 %v5442, %v5443
          %v5449 = vmul.f32 %v5448, 1048576.0
          %v5450 = vadd.f32 %v5447, %v5449
          %v5451 = vmul.f32 %v5442, 2.0
          %v5452 = vmul.f32 %v5451, %v5398
          %v5453 = vsub.f32 %v5416, %v5452
          %v5454 = vmul.f32 %v5442, %v5442
          %v5455 = vmul.f32 %v5454, 1048576.0
          %v5456 = vadd.f32 %v5453, %v5455
          %v5457 = vmul.f32 %v5443, 2.0
          %v5458 = vmul.f32 %v5457, %v5407
          %v5459 = vsub.f32 %v5425, %v5458
          %v5460 = vmul.f32 %v5443, %v5443
          %v5461 = vmul.f32 %v5460, 1048576.0
          %v5462 = vadd.f32 %v5459, %v5461
          %v5463 = vmul.f32 %v5450, %v5450
          %v5464 = vmul.f32 %v5456, %v5462
          %v5465 = vadd.f32 %v5464, 1e-05
          %v5466 = vrcp.pop %v5465
          %v5467 = vmul.f32 %v5465, %v5466
          %v5468 = vsub.f32 1.0, %v5467
          %v5469 = vmul.f32 %v5466, %v5468
          %v5470 = vadd.f32 %v5466, %v5469
          %vm5471 = vweird.f32 %v5465
          %vm5472 = vweird.f32 %v5466
          %vm5473 = vmor %vm5471, %vm5472
          %v5474 = vsel %vm5473, %v5466, %v5470
          %v5475 = vand.u32 2147483647, %v5465
          %vm5476 = vcmp.eq.f32.partialorder %v5475, 8.507059e+37
          %v5477 = vand.u32 %v5465, 2147483648
          %v5478 = vor.u32 1.1754944e-38, %v5477
          %v5479 = vsel %vm5476, %v5478, %v5474
          %v5480 = vmul.f32 %v5463, %v5479
          %5481 = vst [vmem:[%s227] sm:$0xff] %v5480
        $region44: #{ncc_ori_loss.1} parent=27 // pred_fallthru
          _
        %p5482 = scmp.lt.s32.totalorder %s23, 1
        %s5483 = scalar_select %p5482, %s23, 1
        %s5484 = smul.addr %s5483, 8
        %s5485 = scalar_lea.vmem %s2, %s5484
        // Predicated region
        $region45: #{ncc_ori_loss.1} parent=27 // pred_check
          %p5486 = pneg %p105
        $region46: #{ncc_ori_loss.1} parent=27 // pred_check_branch
          %5488 = sbr.rel (%p5486) target = $region48
        $region47: #{ncc_ori_loss.1} parent=27 // pred_region
          _
        $region48: #{ncc_ori_loss.1} parent=27 // pred_fallthru
          _
      $region28: #{ncc_ori_loss.1} parent=5 // pred_fallthru
        _
      %p5489 = scmp.le.s32.totalorder 2, %s14
      // Predicated region
      $region49: #{ncc_ori_loss.1} parent=5 // pred_check
        %p5490 = pneg %p5489
      $region50: #{ncc_ori_loss.1} parent=5 // pred_check_branch
        %5492 = sbr.rel (%p5490) target = $region52
      $region51: #{ncc_ori_loss.1} parent=5 // pred_region
        %s5493 = ssub.s32 %s14, 2
        // Predicated region
        $region53: #{ncc_ori_loss.1} parent=51 // pred_check
          %p5494 = pneg %p111
        $region54: #{ncc_ori_loss.1} parent=51 // pred_check_branch
          %5496 = sbr.rel (%p5494) target = $region56
        $region55: #{ncc_ori_loss.1} parent=51 // pred_region
          %p5497 = scmp.lt.s32.totalorder %s25, 1
          %s5498 = scalar_select %p5497, %s25, 1
          %s5499 = smul.addr %s5498, 8
          %s5500 = scalar_lea.vmem %s2, %s5499
        $region56: #{ncc_ori_loss.1} parent=51 // pred_fallthru
          _
      $region52: #{ncc_ori_loss.1} parent=5 // pred_fallthru
        _
    $region6: #{ncc_ori_loss.1} parent=1 // loop_footer
      %s18 = sadd.s32 1, %s14
    $region7: #{ncc_ori_loss.1} parent=1 // loop_footer_branch
      %13 = sbr.rel target = $region3
    $region8: #{ncc_ori_loss.1} parent=1 // loop_exit
      _
    %5501 = vsyncpa [#allocation8], 1
    %s5502 = scalar_lea.sflag [#allocation8], 1
    %5503 = vsyncpa %s5502, 1
    %5504 = vsyncpa [#allocation10], 1
    %s5505 = scalar_lea.sflag [#allocation10], 1
    %5506 = vsyncpa %s5505, 1

</llo_original>
